<compile_context>
chip_gen: v6e
topology: v6e:2x2x1
jax: 0.10.0
libtpu: 0.0.40
codegen_flags: <defaults>
</compile_context>

<pallas_src>
import math
import functools

import jax
import jax.numpy as jnp
from jax.experimental import pallas as pl
from jax.experimental.pallas import tpu as pltpu


# ----------------------------- kernel helpers --------------------------------

def _layer_norm(v, g, b, eps):
    mu = jnp.mean(v, axis=-1, keepdims=True)
    var = jnp.mean((v - mu) ** 2, axis=-1, keepdims=True)
    return (v - mu) * jax.lax.rsqrt(var + eps) * g + b


def _gelu_exact(x):
    # torch.nn.functional.gelu default = exact (erf) gelu
    return 0.5 * x * (1.0 + jax.lax.erf(x * (1.0 / math.sqrt(2.0))))


# ------------------------------- the kernel ----------------------------------

def bert_layer_kernel(h_ref, mask_ref,
                      wq, bq, wk, bk, wv, bv,
                      wad, bad, g1, be1,
                      wi, bi, wo, bo, g2, be2,
                      o_ref, *, num_heads, head_size, q_tile, eps):
    S = h_ref.shape[1]
    H = num_heads * head_size
    qi = pl.program_id(1)
    q_start = pl.multiple_of(qi * q_tile, q_tile)

    # Full sequence (for K/V) and the query tile (for Q + residuals).
    # TODO(synk): for large S, K/V are recomputed per query tile; cache them in a
    #             VMEM scratch (or a separate K/V pass) to avoid the recompute.
    x_full_f32 = h_ref[0]                                     # (S, H)  f32
    xq_f32 = h_ref[0, pl.ds(q_start, q_tile), :]              # (TQ, H) f32
    x_full = x_full_f32.astype(jnp.bfloat16)
    xq = xq_f32.astype(jnp.bfloat16)

    m = mask_ref[0, 0, 0, :]                                  # (S,) additive mask, f32

    # --- self-attention projections (bf16 MXU operands, f32 accumulation) ---
    q = jnp.dot(xq, wq[...], preferred_element_type=jnp.float32) + bq[...]       # (TQ, H)
    k = jnp.dot(x_full, wk[...], preferred_element_type=jnp.float32) + bk[...]   # (S, H)
    v = jnp.dot(x_full, wv[...], preferred_element_type=jnp.float32) + bv[...]   # (S, H)

    # --- batched multi-head attention (heads as a batch dim, no per-head loop) ---
    q3 = q.reshape(q_tile, num_heads, head_size).astype(jnp.bfloat16)
    k3 = k.reshape(S, num_heads, head_size).astype(jnp.bfloat16)
    v3 = v.reshape(S, num_heads, head_size).astype(jnp.bfloat16)

    scale = 1.0 / math.sqrt(head_size)
    s = jnp.einsum('qnd,knd->nqk', q3, k3,
                   preferred_element_type=jnp.float32) * scale                   # (nh, TQ, S)
    s = s + m[None, None, :]                                   # mask broadcast, once
    s = s - jnp.max(s, axis=-1, keepdims=True)
    p = jnp.exp(s)
    p = p * pl.reciprocal(jnp.sum(p, axis=-1, keepdims=True), approx=True)

    ctx = jnp.einsum('nqk,knd->qnd', p.astype(jnp.bfloat16), v3,
                     preferred_element_type=jnp.float32)                          # (TQ, nh, hd)
    ctx = ctx.reshape(q_tile, H)

    # --- add & norm (attention); dropout is eval-mode identity ---
    attn_dense = jnp.dot(ctx.astype(jnp.bfloat16), wad[...],
                         preferred_element_type=jnp.float32) + bad[...]
    y1 = _layer_norm(attn_dense + xq_f32, g1[...], be1[...], eps)

    # --- feed-forward ---
    ff = jnp.dot(y1.astype(jnp.bfloat16), wi[...],
                 preferred_element_type=jnp.float32) + bi[...]
    ff = _gelu_exact(ff)

    # --- add & norm (output) ---
    out = jnp.dot(ff.astype(jnp.bfloat16), wo[...],
                  preferred_element_type=jnp.float32) + bo[...]
    out = _layer_norm(out + y1, g2[...], be2[...], eps)

    o_ref[0] = out.astype(o_ref.dtype)


# ------------------------------- wrapper --------------------------------------

_PARAM_NAMES = ["wq", "bq", "wk", "bk", "wv", "bv",
                "wad", "bad", "g1", "be1",
                "wi", "bi", "wo", "bo", "g2", "be2"]
_BF16_MATRICES = {"wq", "wk", "wv", "wad", "wi", "wo"}


def bert_layer_forward(hidden, mask, params, *, num_heads, eps=1e-12, q_tile=None):
    B, S, H = hidden.shape
    assert H % num_heads == 0
    head_size = H // num_heads
    I = params["wi"].shape[1]

    # Query-tile size: whole sequence for small S, otherwise 512-row slabs.
    if q_tile is None:
        q_tile = S if S <= 512 else 512
    assert S % q_tile == 0
    nq = S // q_tile

    # Weight matrices go to bf16 for the MXU (halves DMA + VMEM residency);
    # biases / LayerNorm params stay f32.
    def prep(name):
        w = params[name]
        return w.astype(jnp.bfloat16) if name in _BF16_MATRICES else w.astype(jnp.float32)
    weights = [prep(n) for n in _PARAM_NAMES]

    in_specs = [
        pl.BlockSpec((1, S, H), lambda b, q: (b, 0, 0)),          # hidden: one batch row
        pl.BlockSpec((1, 1, 1, S), lambda b, q: (b, 0, 0, 0)),    # mask:   one batch row
    ]
    for w in weights:                                             # params: full, grid-invariant
        nd = w.ndim
        in_specs.append(pl.BlockSpec(w.shape, lambda b, q, nd=nd: (0,) * nd))

    # Advisory cost estimate for XLA scheduling around the custom call.
    flops = B * (2 * S * H * (4 * H + 2 * I) + 4 * S * S * H)
    transcendentals = B * (num_heads * S * S + S * I + 4 * S)
    bytes_accessed = (B * nq * S * H * 4          # hidden read (per q-tile)
                      + B * S * H * 4             # output write
                      + B * nq * S * 4            # mask
                      + 2 * (4 * H * H + 2 * H * I)   # bf16 weight matrices
                      + 4 * (7 * H + I))          # biases + LN params (f32)

    kernel = functools.partial(bert_layer_kernel, num_heads=num_heads,
                               head_size=head_size, q_tile=q_tile, eps=eps)
    return pl.pallas_call(
        kernel,
        out_shape=jax.ShapeDtypeStruct((B, S, H), hidden.dtype),
        grid=(B, nq),
        in_specs=in_specs,
        out_specs=pl.BlockSpec((1, q_tile, H), lambda b, q: (b, q, 0)),
        compiler_params=pltpu.CompilerParams(
            dimension_semantics=("parallel", "parallel"),
            vmem_limit_bytes=64 * 1024 * 1024),
        cost_estimate=pl.CostEstimate(flops=flops,
                                      transcendentals=transcendentals,
                                      bytes_accessed=bytes_accessed),
    )(hidden, mask, *weights)


# --------------------------- pure-JAX reference --------------------------------

def bert_layer_reference(hidden, mask, params, *, num_heads, eps=1e-12):
    B, S, H = hidden.shape
    hd = H // num_heads

    def lin(x, w, b):
        return x @ w + b

    def split_heads(x):
        return x.reshape(B, S, num_heads, hd).transpose(0, 2, 1, 3)

    q = split_heads(lin(hidden, params["wq"], params["bq"]))
    k = split_heads(lin(hidden, params["wk"], params["bk"]))
    v = split_heads(lin(hidden, params["wv"], params["bv"]))
    s = jnp.einsum("bhqd,bhkd->bhqk", q, k) / math.sqrt(hd)
    s = s + mask
    p = jax.nn.softmax(s, axis=-1)
    ctx = jnp.einsum("bhqk,bhkd->bhqd", p, v).transpose(0, 2, 1, 3).reshape(B, S, H)

    def ln(x, g, b):
        mu = x.mean(-1, keepdims=True)
        var = ((x - mu) ** 2).mean(-1, keepdims=True)
        return (x - mu) / jnp.sqrt(var + eps) * g + b

    y1 = ln(lin(ctx, params["wad"], params["bad"]) + hidden, params["g1"], params["be1"])
    ff = lin(y1, params["wi"], params["bi"])
    ff = 0.5 * ff * (1.0 + jax.lax.erf(ff / math.sqrt(2.0)))
    out = ln(lin(ff, params["wo"], params["bo"]) + y1, params["g2"], params["be2"])
    return out


# ----------------------------------- main --------------------------------------

def make_params(key, hidden_size, intermediate_size):
    ks = jax.random.split(key, 8)
    H, I = hidden_size, intermediate_size

    def w(k, shp):
        return (0.02 * jax.random.normal(k, shp)).astype(jnp.float32)

    return {
        "wq": w(ks[0], (H, H)), "bq": jnp.zeros((1, H), jnp.float32),
        "wk": w(ks[1], (H, H)), "bk": jnp.zeros((1, H), jnp.float32),
        "wv": w(ks[2], (H, H)), "bv": jnp.zeros((1, H), jnp.float32),
        "wad": w(ks[3], (H, H)), "bad": jnp.zeros((1, H), jnp.float32),
        "g1": jnp.ones((1, H), jnp.float32), "be1": jnp.zeros((1, H), jnp.float32),
        "wi": w(ks[4], (H, I)), "bi": jnp.zeros((1, I), jnp.float32),
        "wo": w(ks[5], (I, H)), "bo": jnp.zeros((1, H), jnp.float32),
        "g2": jnp.ones((1, H), jnp.float32), "be2": jnp.zeros((1, H), jnp.float32),
    }


if __name__ == "__main__":
    B, S, H = 2, 8, 32
    num_heads, intermediate = 2, 64
    eps = 1e-12

    key = jax.random.PRNGKey(0)
    k_x, k_p = jax.random.split(key)

    hidden = jax.random.normal(k_x, (B, S, H), dtype=jnp.float32)
    # additive mask [B,1,1,S]: last two tokens of batch 1 are padding
    pad = jnp.zeros((B, S), jnp.float32).at[1, -2:].set(1.0)
    attn_mask = (pad * -10000.0).reshape(B, 1, 1, S)

    params = make_params(k_p, H, intermediate)

    out = bert_layer_forward(hidden, attn_mask, params, num_heads=num_heads, eps=eps)
    out = jax.block_until_ready(out)

    ref = bert_layer_reference(hidden, attn_mask, params, num_heads=num_heads, eps=eps)
    assert out.shape == (B, S, H)
    # Kernel uses bf16 MXU operands (f32 accumulation / statistics); tolerance is
    # relaxed vs. the pure-f32 reference accordingly.
    assert jnp.allclose(out, ref, atol=2e-2, rtol=2e-2), \
        f"max abs err = {jnp.max(jnp.abs(out - ref))}"

    print("KERNEL_OK")
</pallas_src>

<mosaic_0001>
module attributes {stable_mosaic.version = 11 : i64} {
  func.func @bert_layer_kernel(%arg0: i32, %arg1: i32, %arg2: memref<1x8x32xf32, #tpu.memory_space<vmem>>, %arg3: memref<1x1x1x8xf32, #tpu.memory_space<vmem>>, %arg4: memref<32x32xbf16, #tpu.memory_space<vmem>>, %arg5: memref<1x32xf32, #tpu.memory_space<vmem>>, %arg6: memref<32x32xbf16, #tpu.memory_space<vmem>>, %arg7: memref<1x32xf32, #tpu.memory_space<vmem>>, %arg8: memref<32x32xbf16, #tpu.memory_space<vmem>>, %arg9: memref<1x32xf32, #tpu.memory_space<vmem>>, %arg10: memref<32x32xbf16, #tpu.memory_space<vmem>>, %arg11: memref<1x32xf32, #tpu.memory_space<vmem>>, %arg12: memref<1x32xf32, #tpu.memory_space<vmem>>, %arg13: memref<1x32xf32, #tpu.memory_space<vmem>>, %arg14: memref<32x64xbf16, #tpu.memory_space<vmem>>, %arg15: memref<1x64xf32, #tpu.memory_space<vmem>>, %arg16: memref<64x32xbf16, #tpu.memory_space<vmem>>, %arg17: memref<1x32xf32, #tpu.memory_space<vmem>>, %arg18: memref<1x32xf32, #tpu.memory_space<vmem>>, %arg19: memref<1x32xf32, #tpu.memory_space<vmem>>, %arg20: memref<1x8x32xf32, #tpu.memory_space<vmem>>) attributes {dimension_semantics = [#tpu.dimension_semantics<parallel>, #tpu.dimension_semantics<parallel>], iteration_bounds = array<i64: 2, 1>, scalar_prefetch = 0 : i64, scratch_operands = 0 : i64, tpu.core_type = #tpu.core_type<tc>, window_params = [{transform_indices = @transform_0, window_bounds = array<i64: 1, 8, 32>}, {transform_indices = @transform_1, window_bounds = array<i64: 1, 1, 1, 8>}, {pipeline_mode = #tpu.pipeline_mode<synchronous>, transform_indices = @transform_2, window_bounds = array<i64: 32, 32>}, {pipeline_mode = #tpu.pipeline_mode<synchronous>, transform_indices = @transform_3, window_bounds = array<i64: 1, 32>}, {pipeline_mode = #tpu.pipeline_mode<synchronous>, transform_indices = @transform_4, window_bounds = array<i64: 32, 32>}, {pipeline_mode = #tpu.pipeline_mode<synchronous>, transform_indices = @transform_5, window_bounds = array<i64: 1, 32>}, {pipeline_mode = #tpu.pipeline_mode<synchronous>, transform_indices = @transform_6, window_bounds = array<i64: 32, 32>}, {pipeline_mode = #tpu.pipeline_mode<synchronous>, transform_indices = @transform_7, window_bounds = array<i64: 1, 32>}, {pipeline_mode = #tpu.pipeline_mode<synchronous>, transform_indices = @transform_8, window_bounds = array<i64: 32, 32>}, {pipeline_mode = #tpu.pipeline_mode<synchronous>, transform_indices = @transform_9, window_bounds = array<i64: 1, 32>}, {pipeline_mode = #tpu.pipeline_mode<synchronous>, transform_indices = @transform_10, window_bounds = array<i64: 1, 32>}, {pipeline_mode = #tpu.pipeline_mode<synchronous>, transform_indices = @transform_11, window_bounds = array<i64: 1, 32>}, {pipeline_mode = #tpu.pipeline_mode<synchronous>, transform_indices = @transform_12, window_bounds = array<i64: 32, 64>}, {pipeline_mode = #tpu.pipeline_mode<synchronous>, transform_indices = @transform_13, window_bounds = array<i64: 1, 64>}, {pipeline_mode = #tpu.pipeline_mode<synchronous>, transform_indices = @transform_14, window_bounds = array<i64: 64, 32>}, {pipeline_mode = #tpu.pipeline_mode<synchronous>, transform_indices = @transform_15, window_bounds = array<i64: 1, 32>}, {pipeline_mode = #tpu.pipeline_mode<synchronous>, transform_indices = @transform_16, window_bounds = array<i64: 1, 32>}, {pipeline_mode = #tpu.pipeline_mode<synchronous>, transform_indices = @transform_17, window_bounds = array<i64: 1, 32>}, {transform_indices = @transform_18, window_bounds = array<i64: 1, 8, 32>}]} {
    %c8_i32 = arith.constant 8 : i32
    %0 = arith.muli %arg1, %c8_i32 : i32
    %1 = tpu.assume_multiple %0, 8 : i32
    %c0 = arith.constant 0 : index
    %c0_0 = arith.constant 0 : index
    %c0_1 = arith.constant 0 : index
    %2 = vector.load %arg2[%c0, %c0_0, %c0_1] : memref<1x8x32xf32, #tpu.memory_space<vmem>>, vector<1x8x32xf32>
    %3 = vector.shape_cast %2 : vector<1x8x32xf32> to vector<8x32xf32>
    %c0_2 = arith.constant 0 : index
    %4 = arith.index_cast %1 : i32 to index
    %c0_3 = arith.constant 0 : index
    %5 = vector.load %arg2[%c0_2, %4, %c0_3] : memref<1x8x32xf32, #tpu.memory_space<vmem>>, vector<1x8x32xf32>
    %6 = vector.shape_cast %5 : vector<1x8x32xf32> to vector<8x32xf32>
    %7 = arith.truncf %3 : vector<8x32xf32> to vector<8x32xbf16>
    %8 = arith.truncf %6 : vector<8x32xf32> to vector<8x32xbf16>
    %c0_4 = arith.constant 0 : index
    %c0_5 = arith.constant 0 : index
    %c0_6 = arith.constant 0 : index
    %c0_7 = arith.constant 0 : index
    %9 = vector.load %arg3[%c0_4, %c0_5, %c0_6, %c0_7] : memref<1x1x1x8xf32, #tpu.memory_space<vmem>>, vector<1x1x1x8xf32>
    %10 = vector.shape_cast %9 : vector<1x1x1x8xf32> to vector<8xf32>
    %c0_8 = arith.constant 0 : index
    %c0_9 = arith.constant 0 : index
    %11 = vector.load %arg4[%c0_8, %c0_9] : memref<32x32xbf16, #tpu.memory_space<vmem>>, vector<32x32xbf16>
    %cst = arith.constant dense<0.000000e+00> : vector<8x32xf32>
    %12 = tpu.matmul %8, %11, %cst {dimension_numbers = #tpu.dot_dimension_numbers<[1], [0], [0], [1], [0, 0, 1, 1], [], []>} : vector<8x32xbf16>, vector<32x32xbf16>, vector<8x32xf32> -> vector<8x32xf32>
    %c0_10 = arith.constant 0 : index
    %c0_11 = arith.constant 0 : index
    %13 = vector.load %arg5[%c0_10, %c0_11] : memref<1x32xf32, #tpu.memory_space<vmem>>, vector<1x32xf32>
    %14 = vector.broadcast %13 : vector<1x32xf32> to vector<8x32xf32>
    %15 = arith.addf %12, %14 : vector<8x32xf32>
    %c0_12 = arith.constant 0 : index
    %c0_13 = arith.constant 0 : index
    %16 = vector.load %arg6[%c0_12, %c0_13] : memref<32x32xbf16, #tpu.memory_space<vmem>>, vector<32x32xbf16>
    %cst_14 = arith.constant dense<0.000000e+00> : vector<8x32xf32>
    %17 = tpu.matmul %7, %16, %cst_14 {dimension_numbers = #tpu.dot_dimension_numbers<[1], [0], [0], [1], [0, 0, 1, 1], [], []>} : vector<8x32xbf16>, vector<32x32xbf16>, vector<8x32xf32> -> vector<8x32xf32>
    %c0_15 = arith.constant 0 : index
    %c0_16 = arith.constant 0 : index
    %18 = vector.load %arg7[%c0_15, %c0_16] : memref<1x32xf32, #tpu.memory_space<vmem>>, vector<1x32xf32>
    %19 = vector.broadcast %18 : vector<1x32xf32> to vector<8x32xf32>
    %20 = arith.addf %17, %19 : vector<8x32xf32>
    %c0_17 = arith.constant 0 : index
    %c0_18 = arith.constant 0 : index
    %21 = vector.load %arg8[%c0_17, %c0_18] : memref<32x32xbf16, #tpu.memory_space<vmem>>, vector<32x32xbf16>
    %cst_19 = arith.constant dense<0.000000e+00> : vector<8x32xf32>
    %22 = tpu.matmul %7, %21, %cst_19 {dimension_numbers = #tpu.dot_dimension_numbers<[1], [0], [0], [1], [0, 0, 1, 1], [], []>} : vector<8x32xbf16>, vector<32x32xbf16>, vector<8x32xf32> -> vector<8x32xf32>
    %c0_20 = arith.constant 0 : index
    %c0_21 = arith.constant 0 : index
    %23 = vector.load %arg9[%c0_20, %c0_21] : memref<1x32xf32, #tpu.memory_space<vmem>>, vector<1x32xf32>
    %24 = vector.broadcast %23 : vector<1x32xf32> to vector<8x32xf32>
    %25 = arith.addf %22, %24 : vector<8x32xf32>
    %26 = vector.shape_cast %15 : vector<8x32xf32> to vector<8x2x16xf32>
    %27 = arith.truncf %26 : vector<8x2x16xf32> to vector<8x2x16xbf16>
    %28 = vector.shape_cast %20 : vector<8x32xf32> to vector<8x2x16xf32>
    %29 = arith.truncf %28 : vector<8x2x16xf32> to vector<8x2x16xbf16>
    %30 = vector.shape_cast %25 : vector<8x32xf32> to vector<8x2x16xf32>
    %31 = arith.truncf %30 : vector<8x2x16xf32> to vector<8x2x16xbf16>
    "tpu.trace_start"() <{level = 10 : i32, message = "qnd,knd->nqk"}> : () -> ()
    %cst_22 = arith.constant dense<0.000000e+00> : vector<2x8x8xf32>
    %32 = tpu.matmul %27, %29, %cst_22 {dimension_numbers = #tpu.dot_dimension_numbers<[2], [2], [0], [0], [0, 1, 0, 0, 1, 0], [1], [1]>} : vector<8x2x16xbf16>, vector<8x2x16xbf16>, vector<2x8x8xf32> -> vector<2x8x8xf32>
    "tpu.trace_stop"() : () -> ()
    %cst_23 = arith.constant 2.500000e-01 : f32
    %33 = vector.broadcast %cst_23 : f32 to vector<2x8x8xf32>
    %34 = arith.mulf %32, %33 : vector<2x8x8xf32>
    %35 = vector.shape_cast %10 : vector<8xf32> to vector<1x1x8xf32>
    %36 = vector.broadcast %35 : vector<1x1x8xf32> to vector<2x8x8xf32>
    %37 = arith.addf %34, %36 : vector<2x8x8xf32>
    %cst_24 = arith.constant dense<0xFF800000> : vector<2x8xf32>
    %38 = vector.multi_reduction <maximumf>, %37, %cst_24 [2] : vector<2x8x8xf32> to vector<2x8xf32>
    %39 = vector.shape_cast %38 : vector<2x8xf32> to vector<2x8x1xf32>
    %40 = vector.broadcast %39 : vector<2x8x1xf32> to vector<2x8x8xf32>
    %41 = arith.subf %37, %40 : vector<2x8x8xf32>
    %42 = math.exp %41 : vector<2x8x8xf32>
    %cst_25 = arith.constant dense<0.000000e+00> : vector<2x8xf32>
    %43 = vector.multi_reduction <add>, %42, %cst_25 [2] : vector<2x8x8xf32> to vector<2x8xf32>
    %44 = vector.shape_cast %43 : vector<2x8xf32> to vector<2x8x1xf32>
    %45 = tpu.reciprocal %44 {approx = true} : vector<2x8x1xf32> -> vector<2x8x1xf32>
    %46 = vector.broadcast %45 : vector<2x8x1xf32> to vector<2x8x8xf32>
    %47 = arith.mulf %42, %46 : vector<2x8x8xf32>
    %48 = arith.truncf %47 : vector<2x8x8xf32> to vector<2x8x8xbf16>
    "tpu.trace_start"() <{level = 10 : i32, message = "nqk,knd->qnd"}> : () -> ()
    %cst_26 = arith.constant dense<0.000000e+00> : vector<2x16x8xf32>
    %49 = tpu.matmul %31, %48, %cst_26 {dimension_numbers = #tpu.dot_dimension_numbers<[0], [2], [2], [1], [0, 1, 0, 2, 1, 1], [1], [0]>} : vector<8x2x16xbf16>, vector<2x8x8xbf16>, vector<2x16x8xf32> -> vector<2x16x8xf32>
    %50 = tpu.transpose %49, [2, 0, 1] : vector<2x16x8xf32> -> vector<8x2x16xf32>
    "tpu.trace_stop"() : () -> ()
    %51 = vector.shape_cast %50 : vector<8x2x16xf32> to vector<8x32xf32>
    %52 = arith.truncf %51 : vector<8x32xf32> to vector<8x32xbf16>
    %c0_27 = arith.constant 0 : index
    %c0_28 = arith.constant 0 : index
    %53 = vector.load %arg10[%c0_27, %c0_28] : memref<32x32xbf16, #tpu.memory_space<vmem>>, vector<32x32xbf16>
    %cst_29 = arith.constant dense<0.000000e+00> : vector<8x32xf32>
    %54 = tpu.matmul %52, %53, %cst_29 {dimension_numbers = #tpu.dot_dimension_numbers<[1], [0], [0], [1], [0, 0, 1, 1], [], []>} : vector<8x32xbf16>, vector<32x32xbf16>, vector<8x32xf32> -> vector<8x32xf32>
    %c0_30 = arith.constant 0 : index
    %c0_31 = arith.constant 0 : index
    %55 = vector.load %arg11[%c0_30, %c0_31] : memref<1x32xf32, #tpu.memory_space<vmem>>, vector<1x32xf32>
    %56 = vector.broadcast %55 : vector<1x32xf32> to vector<8x32xf32>
    %57 = arith.addf %54, %56 : vector<8x32xf32>
    %58 = arith.addf %57, %6 : vector<8x32xf32>
    %c0_32 = arith.constant 0 : index
    %c0_33 = arith.constant 0 : index
    %59 = vector.load %arg12[%c0_32, %c0_33] : memref<1x32xf32, #tpu.memory_space<vmem>>, vector<1x32xf32>
    %c0_34 = arith.constant 0 : index
    %c0_35 = arith.constant 0 : index
    %60 = vector.load %arg13[%c0_34, %c0_35] : memref<1x32xf32, #tpu.memory_space<vmem>>, vector<1x32xf32>
    %cst_36 = arith.constant dense<0.000000e+00> : vector<8xf32>
    %61 = vector.multi_reduction <add>, %58, %cst_36 [1] : vector<8x32xf32> to vector<8xf32>
    %62 = vector.shape_cast %61 : vector<8xf32> to vector<8x1xf32>
    %cst_37 = arith.constant 3.200000e+01 : f32
    %63 = vector.broadcast %cst_37 : f32 to vector<8x1xf32>
    %64 = arith.divf %62, %63 : vector<8x1xf32>
    %65 = vector.broadcast %64 : vector<8x1xf32> to vector<8x32xf32>
    %66 = arith.subf %58, %65 : vector<8x32xf32>
    %67 = arith.mulf %66, %66 : vector<8x32xf32>
    %cst_38 = arith.constant dense<0.000000e+00> : vector<8xf32>
    %68 = vector.multi_reduction <add>, %67, %cst_38 [1] : vector<8x32xf32> to vector<8xf32>
    %69 = vector.shape_cast %68 : vector<8xf32> to vector<8x1xf32>
    %cst_39 = arith.constant 3.200000e+01 : f32
    %70 = vector.broadcast %cst_39 : f32 to vector<8x1xf32>
    %71 = arith.divf %69, %70 : vector<8x1xf32>
    %72 = vector.broadcast %64 : vector<8x1xf32> to vector<8x32xf32>
    %73 = arith.subf %58, %72 : vector<8x32xf32>
    %cst_40 = arith.constant 9.99999996E-13 : f32
    %74 = vector.broadcast %cst_40 : f32 to vector<8x1xf32>
    %75 = arith.addf %71, %74 : vector<8x1xf32>
    %76 = math.rsqrt %75 : vector<8x1xf32>
    %77 = vector.broadcast %76 : vector<8x1xf32> to vector<8x32xf32>
    %78 = arith.mulf %73, %77 : vector<8x32xf32>
    %79 = vector.broadcast %59 : vector<1x32xf32> to vector<8x32xf32>
    %80 = arith.mulf %78, %79 : vector<8x32xf32>
    %81 = vector.broadcast %60 : vector<1x32xf32> to vector<8x32xf32>
    %82 = arith.addf %80, %81 : vector<8x32xf32>
    %83 = arith.truncf %82 : vector<8x32xf32> to vector<8x32xbf16>
    %c0_41 = arith.constant 0 : index
    %c0_42 = arith.constant 0 : index
    %84 = vector.load %arg14[%c0_41, %c0_42] : memref<32x64xbf16, #tpu.memory_space<vmem>>, vector<32x64xbf16>
    %cst_43 = arith.constant dense<0.000000e+00> : vector<8x64xf32>
    %85 = tpu.matmul %83, %84, %cst_43 {dimension_numbers = #tpu.dot_dimension_numbers<[1], [0], [0], [1], [0, 0, 1, 1], [], []>} : vector<8x32xbf16>, vector<32x64xbf16>, vector<8x64xf32> -> vector<8x64xf32>
    %c0_44 = arith.constant 0 : index
    %c0_45 = arith.constant 0 : index
    %86 = vector.load %arg15[%c0_44, %c0_45] : memref<1x64xf32, #tpu.memory_space<vmem>>, vector<1x64xf32>
    %87 = vector.broadcast %86 : vector<1x64xf32> to vector<8x64xf32>
    %88 = arith.addf %85, %87 : vector<8x64xf32>
    %cst_46 = arith.constant 5.000000e-01 : f32
    %89 = vector.broadcast %cst_46 : f32 to vector<8x64xf32>
    %90 = arith.mulf %89, %88 : vector<8x64xf32>
    %cst_47 = arith.constant 0.707106769 : f32
    %91 = vector.broadcast %cst_47 : f32 to vector<8x64xf32>
    %92 = arith.mulf %88, %91 : vector<8x64xf32>
    %93 = math.erf %92 : vector<8x64xf32>
    %cst_48 = arith.constant 1.000000e+00 : f32
    %94 = vector.broadcast %cst_48 : f32 to vector<8x64xf32>
    %95 = arith.addf %94, %93 : vector<8x64xf32>
    %96 = arith.mulf %90, %95 : vector<8x64xf32>
    %97 = arith.truncf %96 : vector<8x64xf32> to vector<8x64xbf16>
    %c0_49 = arith.constant 0 : index
    %c0_50 = arith.constant 0 : index
    %98 = vector.load %arg16[%c0_49, %c0_50] : memref<64x32xbf16, #tpu.memory_space<vmem>>, vector<64x32xbf16>
    %cst_51 = arith.constant dense<0.000000e+00> : vector<8x32xf32>
    %99 = tpu.matmul %97, %98, %cst_51 {dimension_numbers = #tpu.dot_dimension_numbers<[1], [0], [0], [1], [0, 0, 1, 1], [], []>} : vector<8x64xbf16>, vector<64x32xbf16>, vector<8x32xf32> -> vector<8x32xf32>
    %c0_52 = arith.constant 0 : index
    %c0_53 = arith.constant 0 : index
    %100 = vector.load %arg17[%c0_52, %c0_53] : memref<1x32xf32, #tpu.memory_space<vmem>>, vector<1x32xf32>
    %101 = vector.broadcast %100 : vector<1x32xf32> to vector<8x32xf32>
    %102 = arith.addf %99, %101 : vector<8x32xf32>
    %103 = arith.addf %102, %82 : vector<8x32xf32>
    %c0_54 = arith.constant 0 : index
    %c0_55 = arith.constant 0 : index
    %104 = vector.load %arg18[%c0_54, %c0_55] : memref<1x32xf32, #tpu.memory_space<vmem>>, vector<1x32xf32>
    %c0_56 = arith.constant 0 : index
    %c0_57 = arith.constant 0 : index
    %105 = vector.load %arg19[%c0_56, %c0_57] : memref<1x32xf32, #tpu.memory_space<vmem>>, vector<1x32xf32>
    %cst_58 = arith.constant dense<0.000000e+00> : vector<8xf32>
    %106 = vector.multi_reduction <add>, %103, %cst_58 [1] : vector<8x32xf32> to vector<8xf32>
    %107 = vector.shape_cast %106 : vector<8xf32> to vector<8x1xf32>
    %cst_59 = arith.constant 3.200000e+01 : f32
    %108 = vector.broadcast %cst_59 : f32 to vector<8x1xf32>
    %109 = arith.divf %107, %108 : vector<8x1xf32>
    %110 = vector.broadcast %109 : vector<8x1xf32> to vector<8x32xf32>
    %111 = arith.subf %103, %110 : vector<8x32xf32>
    %112 = arith.mulf %111, %111 : vector<8x32xf32>
    %cst_60 = arith.constant dense<0.000000e+00> : vector<8xf32>
    %113 = vector.multi_reduction <add>, %112, %cst_60 [1] : vector<8x32xf32> to vector<8xf32>
    %114 = vector.shape_cast %113 : vector<8xf32> to vector<8x1xf32>
    %cst_61 = arith.constant 3.200000e+01 : f32
    %115 = vector.broadcast %cst_61 : f32 to vector<8x1xf32>
    %116 = arith.divf %114, %115 : vector<8x1xf32>
    %117 = vector.broadcast %109 : vector<8x1xf32> to vector<8x32xf32>
    %118 = arith.subf %103, %117 : vector<8x32xf32>
    %cst_62 = arith.constant 9.99999996E-13 : f32
    %119 = vector.broadcast %cst_62 : f32 to vector<8x1xf32>
    %120 = arith.addf %116, %119 : vector<8x1xf32>
    %121 = math.rsqrt %120 : vector<8x1xf32>
    %122 = vector.broadcast %121 : vector<8x1xf32> to vector<8x32xf32>
    %123 = arith.mulf %118, %122 : vector<8x32xf32>
    %124 = vector.broadcast %104 : vector<1x32xf32> to vector<8x32xf32>
    %125 = arith.mulf %123, %124 : vector<8x32xf32>
    %126 = vector.broadcast %105 : vector<1x32xf32> to vector<8x32xf32>
    %127 = arith.addf %125, %126 : vector<8x32xf32>
    %c0_63 = arith.constant 0 : index
    %c0_64 = arith.constant 0 : index
    %c0_65 = arith.constant 0 : index
    %128 = vector.load %arg20[%c0_63, %c0_64, %c0_65] : memref<1x8x32xf32, #tpu.memory_space<vmem>>, vector<1x8x32xf32>
    %129 = vector.shape_cast %128 : vector<1x8x32xf32> to vector<8x32xf32>
    %130 = vector.shape_cast %127 : vector<8x32xf32> to vector<1x8x32xf32>
    tpu.vector_store %arg20[%c0_63, %c0_64, %c0_65], %130 {strides = array<i32>} : memref<1x8x32xf32, #tpu.memory_space<vmem>>, vector<1x8x32xf32>,
    return
  }
  func.func @transform_0(%arg0: i32, %arg1: i32) -> (i32, i32, i32) {
    %c0_i32 = arith.constant 0 : i32
    %c0_i32_0 = arith.constant 0 : i32
    %c0_i32_1 = arith.constant 0 : i32
    return %arg0, %c0_i32, %c0_i32_0 : i32, i32, i32
  }
  func.func @transform_1(%arg0: i32, %arg1: i32) -> (i32, i32, i32, i32) {
    %c0_i32 = arith.constant 0 : i32
    %c0_i32_0 = arith.constant 0 : i32
    %c0_i32_1 = arith.constant 0 : i32
    %c0_i32_2 = arith.constant 0 : i32
    return %arg0, %c0_i32, %c0_i32_0, %c0_i32_1 : i32, i32, i32, i32
  }
  func.func @transform_2(%arg0: i32, %arg1: i32) -> (i32, i32) {
    %c0_i32 = arith.constant 0 : i32
    %c0_i32_0 = arith.constant 0 : i32
    %c0_i32_1 = arith.constant 0 : i32
    return %c0_i32, %c0_i32_0 : i32, i32
  }
  func.func @transform_3(%arg0: i32, %arg1: i32) -> (i32, i32) {
    %c0_i32 = arith.constant 0 : i32
    %c0_i32_0 = arith.constant 0 : i32
    %c0_i32_1 = arith.constant 0 : i32
    return %c0_i32, %c0_i32_0 : i32, i32
  }
  func.func @transform_4(%arg0: i32, %arg1: i32) -> (i32, i32) {
    %c0_i32 = arith.constant 0 : i32
    %c0_i32_0 = arith.constant 0 : i32
    %c0_i32_1 = arith.constant 0 : i32
    return %c0_i32, %c0_i32_0 : i32, i32
  }
  func.func @transform_5(%arg0: i32, %arg1: i32) -> (i32, i32) {
    %c0_i32 = arith.constant 0 : i32
    %c0_i32_0 = arith.constant 0 : i32
    %c0_i32_1 = arith.constant 0 : i32
    return %c0_i32, %c0_i32_0 : i32, i32
  }
  func.func @transform_6(%arg0: i32, %arg1: i32) -> (i32, i32) {
    %c0_i32 = arith.constant 0 : i32
    %c0_i32_0 = arith.constant 0 : i32
    %c0_i32_1 = arith.constant 0 : i32
    return %c0_i32, %c0_i32_0 : i32, i32
  }
  func.func @transform_7(%arg0: i32, %arg1: i32) -> (i32, i32) {
    %c0_i32 = arith.constant 0 : i32
    %c0_i32_0 = arith.constant 0 : i32
    %c0_i32_1 = arith.constant 0 : i32
    return %c0_i32, %c0_i32_0 : i32, i32
  }
  func.func @transform_8(%arg0: i32, %arg1: i32) -> (i32, i32) {
    %c0_i32 = arith.constant 0 : i32
    %c0_i32_0 = arith.constant 0 : i32
    %c0_i32_1 = arith.constant 0 : i32
    return %c0_i32, %c0_i32_0 : i32, i32
  }
  func.func @transform_9(%arg0: i32, %arg1: i32) -> (i32, i32) {
    %c0_i32 = arith.constant 0 : i32
    %c0_i32_0 = arith.constant 0 : i32
    %c0_i32_1 = arith.constant 0 : i32
    return %c0_i32, %c0_i32_0 : i32, i32
  }
  func.func @transform_10(%arg0: i32, %arg1: i32) -> (i32, i32) {
    %c0_i32 = arith.constant 0 : i32
    %c0_i32_0 = arith.constant 0 : i32
    %c0_i32_1 = arith.constant 0 : i32
    return %c0_i32, %c0_i32_0 : i32, i32
  }
  func.func @transform_11(%arg0: i32, %arg1: i32) -> (i32, i32) {
    %c0_i32 = arith.constant 0 : i32
    %c0_i32_0 = arith.constant 0 : i32
    %c0_i32_1 = arith.constant 0 : i32
    return %c0_i32, %c0_i32_0 : i32, i32
  }
  func.func @transform_12(%arg0: i32, %arg1: i32) -> (i32, i32) {
    %c0_i32 = arith.constant 0 : i32
    %c0_i32_0 = arith.constant 0 : i32
    %c0_i32_1 = arith.constant 0 : i32
    return %c0_i32, %c0_i32_0 : i32, i32
  }
  func.func @transform_13(%arg0: i32, %arg1: i32) -> (i32, i32) {
    %c0_i32 = arith.constant 0 : i32
    %c0_i32_0 = arith.constant 0 : i32
    %c0_i32_1 = arith.constant 0 : i32
    return %c0_i32, %c0_i32_0 : i32, i32
  }
  func.func @transform_14(%arg0: i32, %arg1: i32) -> (i32, i32) {
    %c0_i32 = arith.constant 0 : i32
    %c0_i32_0 = arith.constant 0 : i32
    %c0_i32_1 = arith.constant 0 : i32
    return %c0_i32, %c0_i32_0 : i32, i32
  }
  func.func @transform_15(%arg0: i32, %arg1: i32) -> (i32, i32) {
    %c0_i32 = arith.constant 0 : i32
    %c0_i32_0 = arith.constant 0 : i32
    %c0_i32_1 = arith.constant 0 : i32
    return %c0_i32, %c0_i32_0 : i32, i32
  }
  func.func @transform_16(%arg0: i32, %arg1: i32) -> (i32, i32) {
    %c0_i32 = arith.constant 0 : i32
    %c0_i32_0 = arith.constant 0 : i32
    %c0_i32_1 = arith.constant 0 : i32
    return %c0_i32, %c0_i32_0 : i32, i32
  }
  func.func @transform_17(%arg0: i32, %arg1: i32) -> (i32, i32) {
    %c0_i32 = arith.constant 0 : i32
    %c0_i32_0 = arith.constant 0 : i32
    %c0_i32_1 = arith.constant 0 : i32
    return %c0_i32, %c0_i32_0 : i32, i32
  }
  func.func @transform_18(%arg0: i32, %arg1: i32) -> (i32, i32, i32) {
    %c0_i32 = arith.constant 0 : i32
    %c0_i32_0 = arith.constant 0 : i32
    return %arg0, %arg1, %c0_i32 : i32, i32, i32
  }
}

</mosaic_0001>

<llo_original>
// kernel: tpu_custom_call.1
$region0: #{tpu_custom_call.1}
  #allocation0 [shape = 'u32[]', space=smem, size = 0x4, offset = 0x4, fixed_abs, tag = 'smem constant byte address 0x4 - core index']
  #allocation1 [shape = 'u32[144,128]{1,0:T(1,128)}', space=vmem, size = 0x12000, scoped, tag = 'internal scratch']
  %s0 = inlined_call_operand.vmem [shape: f32[2,8,32], index: 0, kind: input, shape index: {}]
  %s1 = inlined_call_operand.hbm [shape: f32[2,1,1,8], index: 1, kind: input, shape index: {}]
  %s2 = inlined_call_operand.vmem [shape: bf16[32,32], index: 2, kind: input, shape index: {}]
  %s3 = inlined_call_operand.hbm [shape: f32[1,32], index: 3, kind: input, shape index: {}]
  %s4 = inlined_call_operand.vmem [shape: bf16[32,32], index: 4, kind: input, shape index: {}]
  %s5 = inlined_call_operand.hbm [shape: f32[1,32], index: 5, kind: input, shape index: {}]
  %s6 = inlined_call_operand.hbm [shape: bf16[32,32], index: 6, kind: input, shape index: {}]
  %s7 = inlined_call_operand.hbm [shape: f32[1,32], index: 7, kind: input, shape index: {}]
  %s8 = inlined_call_operand.hbm [shape: bf16[32,32], index: 8, kind: input, shape index: {}]
  %s9 = inlined_call_operand.hbm [shape: f32[1,32], index: 9, kind: input, shape index: {}]
  %s10 = inlined_call_operand.vmem [shape: f32[1,32], index: 10, kind: input, shape index: {}]
  %s11 = inlined_call_operand.vmem [shape: f32[1,32], index: 11, kind: input, shape index: {}]
  %s12 = inlined_call_operand.vmem [shape: bf16[32,64], index: 12, kind: input, shape index: {}]
  %s13 = inlined_call_operand.vmem [shape: f32[1,64], index: 13, kind: input, shape index: {}]
  %s14 = inlined_call_operand.vmem [shape: bf16[64,32], index: 14, kind: input, shape index: {}]
  %s15 = inlined_call_operand.vmem [shape: f32[1,32], index: 15, kind: input, shape index: {}]
  %s16 = inlined_call_operand.vmem [shape: f32[1,32], index: 16, kind: input, shape index: {}]
  %s17 = inlined_call_operand.vmem [shape: f32[1,32], index: 17, kind: input, shape index: {}]
  %s18 = inlined_call_operand.hbm [shape: f32[2,8,32], index: 18, kind: output, shape index: {}]
  %s19 = sld [smem:[#allocation0]]
  $region133: #{tpu_custom_call.1} parent=0
    _
  %s21 = ssub.s32 1, %s19
  %s22 = scalar_select 0, %s21, %s19
  $region1: #{tpu_custom_call.1} parent=0
    #allocation2 [shape = 'u8[1024]{0}', space=vmem, size = 0x400, scoped, tag = 'input window, operand 1']
    #allocation3 [shape = 's32[2]{0}', space=sflag, size = 0x8, scoped, tag = 'scoped memory for tpu_custom_call.1']
    #allocation4 [shape = 's32[2]{0}', space=sflag, size = 0x8, scoped, tag = 'scoped memory for tpu_custom_call.1']
    #allocation5 [shape = 'u8[512]{0}', space=vmem, size = 0x400, scoped, tag = 'input window, operand 3, single buffered']
    #allocation6 [shape = 's32[1]{0}', space=sflag, size = 0x4, scoped, tag = 'scoped memory for tpu_custom_call.1']
    #allocation7 [shape = 'u8[512]{0}', space=vmem, size = 0x400, scoped, tag = 'input window, operand 5, single buffered']
    #allocation8 [shape = 'u8[8192]{0}', space=vmem, size = 0x2000, scoped, tag = 'input window, operand 6, single buffered']
    #allocation9 [shape = 's32[1]{0}', space=sflag, size = 0x4, scoped, tag = 'scoped memory for tpu_custom_call.1']
    #allocation10 [shape = 'u8[512]{0}', space=vmem, size = 0x400, scoped, tag = 'input window, operand 7, single buffered']
    #allocation11 [shape = 'u8[8192]{0}', space=vmem, size = 0x2000, scoped, tag = 'input window, operand 8, single buffered']
    #allocation12 [shape = 's32[1]{0}', space=sflag, size = 0x4, scoped, tag = 'scoped memory for tpu_custom_call.1']
    #allocation13 [shape = 'u8[512]{0}', space=vmem, size = 0x400, scoped, tag = 'input window, operand 9, single buffered']
    #allocation14 [shape = 'u8[8192]{0}', space=vmem, size = 0x2000, scoped, tag = 'output window, operand 0']
    %23 = vsyncpa [#allocation3], 0
    %s24 = scalar_lea.sflag [#allocation3], 1
    %25 = vsyncpa %s24, 0
    %26 = vsyncpa [#allocation6], 0
    %27 = vsyncpa [#allocation9], 0
    %28 = vsyncpa [#allocation12], 0
    %29 = vsyncpa [#allocation4], 0
    %s30 = scalar_lea.sflag [#allocation4], 1
    %31 = vsyncpa %s30, 0
    loop: start=0, step=1, limit=4
    $region2: #{tpu_custom_call.1} parent=1 // loop_pre_header
      _
    $region3: #{tpu_custom_call.1} parent=1 // loop_header
      %s33 = sphi 0, %s37
      %p34 = scmp.ge.s32.totalorder %s33, 4
      %s40 = sphi 0, %s52
      %s41 = sphi 0, %s48
      %s42 = sphi 0, %s40
      %s43 = sphi 0, %s41
      %s44 = sphi 0, %s42
      %s45 = sphi 0, %s43
      %s55 = sphi 0, %s57
      %s58 = sphi 0, %s55
      %s59 = sphi 0, %s58
      %s75 = sphi 0, %s59
      %s81 = sphi 0, %s83
      %s84 = sphi 0, %s81
      %s85 = sphi 0, %s84
      %s101 = sphi 0, %s85
      %s105 = sphi 0, %s105
      %s107 = sphi 0, %s105
      %s108 = sphi 0, %s107
      %s122 = sphi 0, %s108
      %s126 = sphi 0, %s126
      %s128 = sphi 0, %s126
      %s129 = sphi 0, %s128
      %s143 = sphi 0, %s129
      %s147 = sphi 0, %s147
      %s149 = sphi 0, %s147
      %s150 = sphi 0, %s149
      %s164 = sphi 0, %s150
      %s168 = sphi 0, %s168
      %s170 = sphi 0, %s168
      %s171 = sphi 0, %s170
      %s185 = sphi 0, %s171
      %s189 = sphi 0, %s189
      %s191 = sphi 0, %s189
      %s192 = sphi 0, %s191
      %s206 = sphi 0, %s192
      %s210 = sphi 0, %s210
      %s212 = sphi 0, %s210
      %s213 = sphi 0, %s212
      %s227 = sphi 0, %s213
      %s231 = sphi 0, %s231
      %s233 = sphi 0, %s231
      %s234 = sphi 0, %s233
      %s248 = sphi 0, %s234
      %s252 = sphi 0, %s252
      %s254 = sphi 0, %s252
      %s255 = sphi 0, %s254
      %s269 = sphi 0, %s255
      %s273 = sphi 0, %s273
      %s275 = sphi 0, %s273
      %s276 = sphi 0, %s275
      %s290 = sphi 0, %s276
      %s294 = sphi 0, %s294
      %s296 = sphi 0, %s294
      %s297 = sphi 0, %s296
      %s311 = sphi 0, %s297
      %s315 = sphi 0, %s315
      %s317 = sphi 0, %s315
      %s318 = sphi 0, %s317
      %s332 = sphi 0, %s318
      %s336 = sphi 0, %s336
      %s338 = sphi 0, %s336
      %s339 = sphi 0, %s338
      %s353 = sphi 0, %s339
      %s357 = sphi 0, %s357
      %s359 = sphi 0, %s357
      %s360 = sphi 0, %s359
      %s374 = sphi 0, %s360
      %s378 = sphi 0, %s378
      %s380 = sphi 0, %s378
      %s381 = sphi 0, %s380
      %s395 = sphi 0, %s381
      %s399 = sphi 0, %s399
      %s401 = sphi 0, %s399
      %s402 = sphi 0, %s401
      %s416 = sphi 0, %s402
      %s420 = sphi 0, %s420
      %s422 = sphi 0, %s420
      %s423 = sphi 0, %s422
      %s437 = sphi 0, %s423
      %s445 = sphi 0, %s447
      %s448 = sphi 0, %s445
      %s449 = sphi 0, %s448
      %s465 = sphi 0, %s449
    $region4: #{tpu_custom_call.1} parent=1 // loop_header_branch
      %36 = sbr.rel (%p34) target = $region8
    $region5: #{tpu_custom_call.1} parent=1 // loop_body
      %s38 = ssub.s32 %s33, 1
      %s39 = ssub.s32 %s33, 2
      %s46 = sadd.s32 1, %s41
      %p47 = scmp.ge.s32.totalorder %s46, 1
      %s48 = scalar_select %p47, 0, %s46
      %s49 = sadd.s32 1, %s40
      %s50 = scalar_select %p47, %s49, %s40
      %p51 = scmp.ge.s32.totalorder %s50, 2
      %s52 = scalar_select %p51, 0, %s50
      %s53 = ssub.s32 %s40, %s52
      %p54 = scmp.eq.s32.totalorder %s53, 0
      %s56 = sadd.s32 %s55, 1
      %s57 = scalar_select %p54, %s55, %s56
      %p60 = pneg %p54
      %p61 = scmp.eq.s32.totalorder %s33, 1
      %p62 = por %p60, %p61
      %p63 = scmp.ne.s32.totalorder %s55, %s58
      %p64 = scmp.eq.s32.totalorder %s33, 0
      %p65 = por %p63, %p64
      %p66 = scmp.ne.s32.totalorder %s55, %s58
      %p67 = scmp.eq.s32.totalorder %s38, 1
      %p68 = por %p66, %p67
      %p69 = scmp.ne.s32.totalorder %s58, %s59
      %p70 = scmp.eq.s32.totalorder %s38, 0
      %p71 = por %p69, %p70
      %p72 = scmp.ne.s32.totalorder %s58, %s59
      %p73 = scmp.eq.s32.totalorder %s39, 1
      %p74 = por %p72, %p73
      %p76 = scmp.ne.s32.totalorder %s59, %s75
      %p77 = scmp.eq.s32.totalorder %s39, 0
      %p78 = por %p76, %p77
      %s79 = ssub.s32 %s40, %s52
      %p80 = scmp.eq.s32.totalorder %s79, 0
      %s82 = sadd.s32 %s81, 1
      %s83 = scalar_select %p80, %s81, %s82
      %p86 = pneg %p80
      %p87 = scmp.eq.s32.totalorder %s33, 1
      %p88 = por %p86, %p87
      %p89 = scmp.ne.s32.totalorder %s81, %s84
      %p90 = scmp.eq.s32.totalorder %s33, 0
      %p91 = por %p89, %p90
      %p92 = scmp.ne.s32.totalorder %s81, %s84
      %p93 = scmp.eq.s32.totalorder %s38, 1
      %p94 = por %p92, %p93
      %p95 = scmp.ne.s32.totalorder %s84, %s85
      %p96 = scmp.eq.s32.totalorder %s38, 0
      %p97 = por %p95, %p96
      %p98 = scmp.ne.s32.totalorder %s84, %s85
      %p99 = scmp.eq.s32.totalorder %s39, 1
      %p100 = por %p98, %p99
      %p102 = scmp.ne.s32.totalorder %s85, %s101
      %p103 = scmp.eq.s32.totalorder %s39, 0
      %p104 = por %p102, %p103
      %s106 = sadd.s32 %s105, 1
      %p109 = scmp.eq.s32.totalorder %s33, 1
      %p110 = scmp.ne.s32.totalorder %s105, %s107
      %p111 = scmp.eq.s32.totalorder %s33, 0
      %p112 = por %p110, %p111
      %p113 = scmp.ne.s32.totalorder %s105, %s107
      %p114 = scmp.eq.s32.totalorder %s38, 1
      %p115 = por %p113, %p114
      %p116 = scmp.ne.s32.totalorder %s107, %s108
      %p117 = scmp.eq.s32.totalorder %s38, 0
      %p118 = por %p116, %p117
      %p119 = scmp.ne.s32.totalorder %s107, %s108
      %p120 = scmp.eq.s32.totalorder %s39, 1
      %p121 = por %p119, %p120
      %p123 = scmp.ne.s32.totalorder %s108, %s122
      %p124 = scmp.eq.s32.totalorder %s39, 0
      %p125 = por %p123, %p124
      %s127 = sadd.s32 %s126, 1
      %p130 = scmp.eq.s32.totalorder %s33, 1
      %p131 = scmp.ne.s32.totalorder %s126, %s128
      %p132 = scmp.eq.s32.totalorder %s33, 0
      %p133 = por %p131, %p132
      %p134 = scmp.ne.s32.totalorder %s126, %s128
      %p135 = scmp.eq.s32.totalorder %s38, 1
      %p136 = por %p134, %p135
      %p137 = scmp.ne.s32.totalorder %s128, %s129
      %p138 = scmp.eq.s32.totalorder %s38, 0
      %p139 = por %p137, %p138
      %p140 = scmp.ne.s32.totalorder %s128, %s129
      %p141 = scmp.eq.s32.totalorder %s39, 1
      %p142 = por %p140, %p141
      %p144 = scmp.ne.s32.totalorder %s129, %s143
      %p145 = scmp.eq.s32.totalorder %s39, 0
      %p146 = por %p144, %p145
      %s148 = sadd.s32 %s147, 1
      %p151 = scmp.eq.s32.totalorder %s33, 1
      %p152 = scmp.ne.s32.totalorder %s147, %s149
      %p153 = scmp.eq.s32.totalorder %s33, 0
      %p154 = por %p152, %p153
      %p155 = scmp.ne.s32.totalorder %s147, %s149
      %p156 = scmp.eq.s32.totalorder %s38, 1
      %p157 = por %p155, %p156
      %p158 = scmp.ne.s32.totalorder %s149, %s150
      %p159 = scmp.eq.s32.totalorder %s38, 0
      %p160 = por %p158, %p159
      %p161 = scmp.ne.s32.totalorder %s149, %s150
      %p162 = scmp.eq.s32.totalorder %s39, 1
      %p163 = por %p161, %p162
      %p165 = scmp.ne.s32.totalorder %s150, %s164
      %p166 = scmp.eq.s32.totalorder %s39, 0
      %p167 = por %p165, %p166
      %s169 = sadd.s32 %s168, 1
      %p172 = scmp.eq.s32.totalorder %s33, 1
      %p173 = scmp.ne.s32.totalorder %s168, %s170
      %p174 = scmp.eq.s32.totalorder %s33, 0
      %p175 = por %p173, %p174
      %p176 = scmp.ne.s32.totalorder %s168, %s170
      %p177 = scmp.eq.s32.totalorder %s38, 1
      %p178 = por %p176, %p177
      %p179 = scmp.ne.s32.totalorder %s170, %s171
      %p180 = scmp.eq.s32.totalorder %s38, 0
      %p181 = por %p179, %p180
      %p182 = scmp.ne.s32.totalorder %s170, %s171
      %p183 = scmp.eq.s32.totalorder %s39, 1
      %p184 = por %p182, %p183
      %p186 = scmp.ne.s32.totalorder %s171, %s185
      %p187 = scmp.eq.s32.totalorder %s39, 0
      %p188 = por %p186, %p187
      %s190 = sadd.s32 %s189, 1
      %p193 = scmp.eq.s32.totalorder %s33, 1
      %p194 = scmp.ne.s32.totalorder %s189, %s191
      %p195 = scmp.eq.s32.totalorder %s33, 0
      %p196 = por %p194, %p195
      %p197 = scmp.ne.s32.totalorder %s189, %s191
      %p198 = scmp.eq.s32.totalorder %s38, 1
      %p199 = por %p197, %p198
      %p200 = scmp.ne.s32.totalorder %s191, %s192
      %p201 = scmp.eq.s32.totalorder %s38, 0
      %p202 = por %p200, %p201
      %p203 = scmp.ne.s32.totalorder %s191, %s192
      %p204 = scmp.eq.s32.totalorder %s39, 1
      %p205 = por %p203, %p204
      %p207 = scmp.ne.s32.totalorder %s192, %s206
      %p208 = scmp.eq.s32.totalorder %s39, 0
      %p209 = por %p207, %p208
      %s211 = sadd.s32 %s210, 1
      %p214 = scmp.eq.s32.totalorder %s33, 1
      %p215 = scmp.ne.s32.totalorder %s210, %s212
      %p216 = scmp.eq.s32.totalorder %s33, 0
      %p217 = por %p215, %p216
      %p218 = scmp.ne.s32.totalorder %s210, %s212
      %p219 = scmp.eq.s32.totalorder %s38, 1
      %p220 = por %p218, %p219
      %p221 = scmp.ne.s32.totalorder %s212, %s213
      %p222 = scmp.eq.s32.totalorder %s38, 0
      %p223 = por %p221, %p222
      %p224 = scmp.ne.s32.totalorder %s212, %s213
      %p225 = scmp.eq.s32.totalorder %s39, 1
      %p226 = por %p224, %p225
      %p228 = scmp.ne.s32.totalorder %s213, %s227
      %p229 = scmp.eq.s32.totalorder %s39, 0
      %p230 = por %p228, %p229
      %s232 = sadd.s32 %s231, 1
      %p235 = scmp.eq.s32.totalorder %s33, 1
      %p236 = scmp.ne.s32.totalorder %s231, %s233
      %p237 = scmp.eq.s32.totalorder %s33, 0
      %p238 = por %p236, %p237
      %p239 = scmp.ne.s32.totalorder %s231, %s233
      %p240 = scmp.eq.s32.totalorder %s38, 1
      %p241 = por %p239, %p240
      %p242 = scmp.ne.s32.totalorder %s233, %s234
      %p243 = scmp.eq.s32.totalorder %s38, 0
      %p244 = por %p242, %p243
      %p245 = scmp.ne.s32.totalorder %s233, %s234
      %p246 = scmp.eq.s32.totalorder %s39, 1
      %p247 = por %p245, %p246
      %p249 = scmp.ne.s32.totalorder %s234, %s248
      %p250 = scmp.eq.s32.totalorder %s39, 0
      %p251 = por %p249, %p250
      %s253 = sadd.s32 %s252, 1
      %p256 = scmp.eq.s32.totalorder %s33, 1
      %p257 = scmp.ne.s32.totalorder %s252, %s254
      %p258 = scmp.eq.s32.totalorder %s33, 0
      %p259 = por %p257, %p258
      %p260 = scmp.ne.s32.totalorder %s252, %s254
      %p261 = scmp.eq.s32.totalorder %s38, 1
      %p262 = por %p260, %p261
      %p263 = scmp.ne.s32.totalorder %s254, %s255
      %p264 = scmp.eq.s32.totalorder %s38, 0
      %p265 = por %p263, %p264
      %p266 = scmp.ne.s32.totalorder %s254, %s255
      %p267 = scmp.eq.s32.totalorder %s39, 1
      %p268 = por %p266, %p267
      %p270 = scmp.ne.s32.totalorder %s255, %s269
      %p271 = scmp.eq.s32.totalorder %s39, 0
      %p272 = por %p270, %p271
      %s274 = sadd.s32 %s273, 1
      %p277 = scmp.eq.s32.totalorder %s33, 1
      %p278 = scmp.ne.s32.totalorder %s273, %s275
      %p279 = scmp.eq.s32.totalorder %s33, 0
      %p280 = por %p278, %p279
      %p281 = scmp.ne.s32.totalorder %s273, %s275
      %p282 = scmp.eq.s32.totalorder %s38, 1
      %p283 = por %p281, %p282
      %p284 = scmp.ne.s32.totalorder %s275, %s276
      %p285 = scmp.eq.s32.totalorder %s38, 0
      %p286 = por %p284, %p285
      %p287 = scmp.ne.s32.totalorder %s275, %s276
      %p288 = scmp.eq.s32.totalorder %s39, 1
      %p289 = por %p287, %p288
      %p291 = scmp.ne.s32.totalorder %s276, %s290
      %p292 = scmp.eq.s32.totalorder %s39, 0
      %p293 = por %p291, %p292
      %s295 = sadd.s32 %s294, 1
      %p298 = scmp.eq.s32.totalorder %s33, 1
      %p299 = scmp.ne.s32.totalorder %s294, %s296
      %p300 = scmp.eq.s32.totalorder %s33, 0
      %p301 = por %p299, %p300
      %p302 = scmp.ne.s32.totalorder %s294, %s296
      %p303 = scmp.eq.s32.totalorder %s38, 1
      %p304 = por %p302, %p303
      %p305 = scmp.ne.s32.totalorder %s296, %s297
      %p306 = scmp.eq.s32.totalorder %s38, 0
      %p307 = por %p305, %p306
      %p308 = scmp.ne.s32.totalorder %s296, %s297
      %p309 = scmp.eq.s32.totalorder %s39, 1
      %p310 = por %p308, %p309
      %p312 = scmp.ne.s32.totalorder %s297, %s311
      %p313 = scmp.eq.s32.totalorder %s39, 0
      %p314 = por %p312, %p313
      %s316 = sadd.s32 %s315, 1
      %p319 = scmp.eq.s32.totalorder %s33, 1
      %p320 = scmp.ne.s32.totalorder %s315, %s317
      %p321 = scmp.eq.s32.totalorder %s33, 0
      %p322 = por %p320, %p321
      %p323 = scmp.ne.s32.totalorder %s315, %s317
      %p324 = scmp.eq.s32.totalorder %s38, 1
      %p325 = por %p323, %p324
      %p326 = scmp.ne.s32.totalorder %s317, %s318
      %p327 = scmp.eq.s32.totalorder %s38, 0
      %p328 = por %p326, %p327
      %p329 = scmp.ne.s32.totalorder %s317, %s318
      %p330 = scmp.eq.s32.totalorder %s39, 1
      %p331 = por %p329, %p330
      %p333 = scmp.ne.s32.totalorder %s318, %s332
      %p334 = scmp.eq.s32.totalorder %s39, 0
      %p335 = por %p333, %p334
      %s337 = sadd.s32 %s336, 1
      %p340 = scmp.eq.s32.totalorder %s33, 1
      %p341 = scmp.ne.s32.totalorder %s336, %s338
      %p342 = scmp.eq.s32.totalorder %s33, 0
      %p343 = por %p341, %p342
      %p344 = scmp.ne.s32.totalorder %s336, %s338
      %p345 = scmp.eq.s32.totalorder %s38, 1
      %p346 = por %p344, %p345
      %p347 = scmp.ne.s32.totalorder %s338, %s339
      %p348 = scmp.eq.s32.totalorder %s38, 0
      %p349 = por %p347, %p348
      %p350 = scmp.ne.s32.totalorder %s338, %s339
      %p351 = scmp.eq.s32.totalorder %s39, 1
      %p352 = por %p350, %p351
      %p354 = scmp.ne.s32.totalorder %s339, %s353
      %p355 = scmp.eq.s32.totalorder %s39, 0
      %p356 = por %p354, %p355
      %s358 = sadd.s32 %s357, 1
      %p361 = scmp.eq.s32.totalorder %s33, 1
      %p362 = scmp.ne.s32.totalorder %s357, %s359
      %p363 = scmp.eq.s32.totalorder %s33, 0
      %p364 = por %p362, %p363
      %p365 = scmp.ne.s32.totalorder %s357, %s359
      %p366 = scmp.eq.s32.totalorder %s38, 1
      %p367 = por %p365, %p366
      %p368 = scmp.ne.s32.totalorder %s359, %s360
      %p369 = scmp.eq.s32.totalorder %s38, 0
      %p370 = por %p368, %p369
      %p371 = scmp.ne.s32.totalorder %s359, %s360
      %p372 = scmp.eq.s32.totalorder %s39, 1
      %p373 = por %p371, %p372
      %p375 = scmp.ne.s32.totalorder %s360, %s374
      %p376 = scmp.eq.s32.totalorder %s39, 0
      %p377 = por %p375, %p376
      %s379 = sadd.s32 %s378, 1
      %p382 = scmp.eq.s32.totalorder %s33, 1
      %p383 = scmp.ne.s32.totalorder %s378, %s380
      %p384 = scmp.eq.s32.totalorder %s33, 0
      %p385 = por %p383, %p384
      %p386 = scmp.ne.s32.totalorder %s378, %s380
      %p387 = scmp.eq.s32.totalorder %s38, 1
      %p388 = por %p386, %p387
      %p389 = scmp.ne.s32.totalorder %s380, %s381
      %p390 = scmp.eq.s32.totalorder %s38, 0
      %p391 = por %p389, %p390
      %p392 = scmp.ne.s32.totalorder %s380, %s381
      %p393 = scmp.eq.s32.totalorder %s39, 1
      %p394 = por %p392, %p393
      %p396 = scmp.ne.s32.totalorder %s381, %s395
      %p397 = scmp.eq.s32.totalorder %s39, 0
      %p398 = por %p396, %p397
      %s400 = sadd.s32 %s399, 1
      %p403 = scmp.eq.s32.totalorder %s33, 1
      %p404 = scmp.ne.s32.totalorder %s399, %s401
      %p405 = scmp.eq.s32.totalorder %s33, 0
      %p406 = por %p404, %p405
      %p407 = scmp.ne.s32.totalorder %s399, %s401
      %p408 = scmp.eq.s32.totalorder %s38, 1
      %p409 = por %p407, %p408
      %p410 = scmp.ne.s32.totalorder %s401, %s402
      %p411 = scmp.eq.s32.totalorder %s38, 0
      %p412 = por %p410, %p411
      %p413 = scmp.ne.s32.totalorder %s401, %s402
      %p414 = scmp.eq.s32.totalorder %s39, 1
      %p415 = por %p413, %p414
      %p417 = scmp.ne.s32.totalorder %s402, %s416
      %p418 = scmp.eq.s32.totalorder %s39, 0
      %p419 = por %p417, %p418
      %s421 = sadd.s32 %s420, 1
      %p424 = scmp.eq.s32.totalorder %s33, 1
      %p425 = scmp.ne.s32.totalorder %s420, %s422
      %p426 = scmp.eq.s32.totalorder %s33, 0
      %p427 = por %p425, %p426
      %p428 = scmp.ne.s32.totalorder %s420, %s422
      %p429 = scmp.eq.s32.totalorder %s38, 1
      %p430 = por %p428, %p429
      %p431 = scmp.ne.s32.totalorder %s422, %s423
      %p432 = scmp.eq.s32.totalorder %s38, 0
      %p433 = por %p431, %p432
      %p434 = scmp.ne.s32.totalorder %s422, %s423
      %p435 = scmp.eq.s32.totalorder %s39, 1
      %p436 = por %p434, %p435
      %p438 = scmp.ne.s32.totalorder %s423, %s437
      %p439 = scmp.eq.s32.totalorder %s39, 0
      %p440 = por %p438, %p439
      %s441 = ssub.s32 %s40, %s52
      %s442 = ssub.s32 %s41, %s48
      %s443 = sor.u32 %s441, %s442
      %p444 = scmp.eq.s32.totalorder %s443, 0
      %s446 = sadd.s32 %s445, 1
      %s447 = scalar_select %p444, %s445, %s446
      %p450 = pneg %p444
      %p451 = scmp.eq.s32.totalorder %s33, 1
      %p452 = por %p450, %p451
      %p453 = scmp.ne.s32.totalorder %s445, %s448
      %p454 = scmp.eq.s32.totalorder %s33, 0
      %p455 = por %p453, %p454
      %p456 = scmp.ne.s32.totalorder %s445, %s448
      %p457 = scmp.eq.s32.totalorder %s38, 1
      %p458 = por %p456, %p457
      %p459 = scmp.ne.s32.totalorder %s448, %s449
      %p460 = scmp.eq.s32.totalorder %s38, 0
      %p461 = por %p459, %p460
      %p462 = scmp.ne.s32.totalorder %s448, %s449
      %p463 = scmp.eq.s32.totalorder %s39, 1
      %p464 = por %p462, %p463
      %p466 = scmp.ne.s32.totalorder %s449, %s465
      %p467 = scmp.eq.s32.totalorder %s39, 0
      %p468 = por %p466, %p467
      %p469 = scmp.le.s32.totalorder 1, %s33
      %p470 = scmp.lt.s32.totalorder %s33, 3
      %p471 = pnand %p469, %p470
      %p472 = pneg %p471
      // Predicated region
      $region9: #{tpu_custom_call.1} parent=5 // pred_check
        _
      $region10: #{tpu_custom_call.1} parent=5 // pred_check_branch
        %474 = sbr.rel (%p471) target = $region12
      $region11: #{tpu_custom_call.1} parent=5 // pred_region
        %s475 = ssub.s32 %s33, 1
        // Predicated region
        $region13: #{tpu_custom_call.1} parent=11 // pred_check
          %p476 = pneg %p118
        $region14: #{tpu_custom_call.1} parent=11 // pred_check_branch
          %478 = sbr.rel (%p476) target = $region16
        $region15: #{tpu_custom_call.1} parent=11 // pred_region
          _
        $region16: #{tpu_custom_call.1} parent=11 // pred_fallthru
          _
        // Predicated region
        $region17: #{tpu_custom_call.1} parent=11 // pred_check
          %p479 = pneg %p139
        $region18: #{tpu_custom_call.1} parent=11 // pred_check_branch
          %481 = sbr.rel (%p479) target = $region20
        $region19: #{tpu_custom_call.1} parent=11 // pred_region
          %s483 = ssub.s32 16, 16
          %484 = vsyncadd [#allocation6], %s483
          %s486 = sshll.u32 [#allocation5], 4
          %s487 = int_to_ptr.vmem [resolvable:$true] %s486
          %489 = dma.hbm_to_vmem [thread:$0]  %s3, 16, %s487, [#allocation6]
        $region20: #{tpu_custom_call.1} parent=11 // pred_fallthru
          _
        // Predicated region
        $region21: #{tpu_custom_call.1} parent=11 // pred_check
          %p490 = pneg %p160
        $region22: #{tpu_custom_call.1} parent=11 // pred_check_branch
          %492 = sbr.rel (%p490) target = $region24
        $region23: #{tpu_custom_call.1} parent=11 // pred_region
          _
        $region24: #{tpu_custom_call.1} parent=11 // pred_fallthru
          _
        // Predicated region
        $region25: #{tpu_custom_call.1} parent=11 // pred_check
          %p493 = pneg %p181
        $region26: #{tpu_custom_call.1} parent=11 // pred_check_branch
          %495 = sbr.rel (%p493) target = $region28
        $region27: #{tpu_custom_call.1} parent=11 // pred_region
          %s497 = ssub.s32 16, 16
          %498 = vsyncadd [#allocation6], %s497
          %s500 = sshll.u32 [#allocation7], 4
          %s501 = int_to_ptr.vmem [resolvable:$true] %s500
          %503 = dma.hbm_to_vmem [thread:$0]  %s5, 16, %s501, [#allocation6]
        $region28: #{tpu_custom_call.1} parent=11 // pred_fallthru
          _
        // Predicated region
        $region29: #{tpu_custom_call.1} parent=11 // pred_check
          %p504 = pneg %p202
        $region30: #{tpu_custom_call.1} parent=11 // pred_check_branch
          %506 = sbr.rel (%p504) target = $region32
        $region31: #{tpu_custom_call.1} parent=11 // pred_region
          %s508 = ssub.s32 256, 256
          %509 = vsyncadd [#allocation9], %s508
          %s510 = sshll.u32 [#allocation8], 4
          %s511 = int_to_ptr.vmem [resolvable:$true] %s510
          %516 = dma.hbm_to_vmem [thread:$0]  %s6, 256, %s511, [#allocation9], 64, 64, 4
        $region32: #{tpu_custom_call.1} parent=11 // pred_fallthru
          _
        // Predicated region
        $region33: #{tpu_custom_call.1} parent=11 // pred_check
          %p517 = pneg %p223
        $region34: #{tpu_custom_call.1} parent=11 // pred_check_branch
          %519 = sbr.rel (%p517) target = $region36
        $region35: #{tpu_custom_call.1} parent=11 // pred_region
          %s521 = ssub.s32 16, 16
          %522 = vsyncadd [#allocation9], %s521
          %s524 = sshll.u32 [#allocation10], 4
          %s525 = int_to_ptr.vmem [resolvable:$true] %s524
          %527 = dma.hbm_to_vmem [thread:$0]  %s7, 16, %s525, [#allocation9]
        $region36: #{tpu_custom_call.1} parent=11 // pred_fallthru
          _
        // Predicated region
        $region37: #{tpu_custom_call.1} parent=11 // pred_check
          %p528 = pneg %p244
        $region38: #{tpu_custom_call.1} parent=11 // pred_check_branch
          %530 = sbr.rel (%p528) target = $region40
        $region39: #{tpu_custom_call.1} parent=11 // pred_region
          %s532 = ssub.s32 256, 256
          %533 = vsyncadd [#allocation12], %s532
          %s534 = sshll.u32 [#allocation11], 4
          %s535 = int_to_ptr.vmem [resolvable:$true] %s534
          %540 = dma.hbm_to_vmem [thread:$0]  %s8, 256, %s535, [#allocation12], 64, 64, 4
        $region40: #{tpu_custom_call.1} parent=11 // pred_fallthru
          _
        // Predicated region
        $region41: #{tpu_custom_call.1} parent=11 // pred_check
          %p541 = pneg %p265
        $region42: #{tpu_custom_call.1} parent=11 // pred_check_branch
          %543 = sbr.rel (%p541) target = $region44
        $region43: #{tpu_custom_call.1} parent=11 // pred_region
          %s545 = ssub.s32 16, 16
          %546 = vsyncadd [#allocation12], %s545
          %s548 = sshll.u32 [#allocation13], 4
          %s549 = int_to_ptr.vmem [resolvable:$true] %s548
          %551 = dma.hbm_to_vmem [thread:$0]  %s9, 16, %s549, [#allocation12]
        $region44: #{tpu_custom_call.1} parent=11 // pred_fallthru
          _
        // Predicated region
        $region45: #{tpu_custom_call.1} parent=11 // pred_check
          %p552 = pneg %p286
        $region46: #{tpu_custom_call.1} parent=11 // pred_check_branch
          %554 = sbr.rel (%p552) target = $region48
        $region47: #{tpu_custom_call.1} parent=11 // pred_region
          _
        $region48: #{tpu_custom_call.1} parent=11 // pred_fallthru
          _
        // Predicated region
        $region49: #{tpu_custom_call.1} parent=11 // pred_check
          %p555 = pneg %p307
        $region50: #{tpu_custom_call.1} parent=11 // pred_check_branch
          %557 = sbr.rel (%p555) target = $region52
        $region51: #{tpu_custom_call.1} parent=11 // pred_region
          _
        $region52: #{tpu_custom_call.1} parent=11 // pred_fallthru
          _
        // Predicated region
        $region53: #{tpu_custom_call.1} parent=11 // pred_check
          %p558 = pneg %p328
        $region54: #{tpu_custom_call.1} parent=11 // pred_check_branch
          %560 = sbr.rel (%p558) target = $region56
        $region55: #{tpu_custom_call.1} parent=11 // pred_region
          _
        $region56: #{tpu_custom_call.1} parent=11 // pred_fallthru
          _
        // Predicated region
        $region57: #{tpu_custom_call.1} parent=11 // pred_check
          %p561 = pneg %p349
        $region58: #{tpu_custom_call.1} parent=11 // pred_check_branch
          %563 = sbr.rel (%p561) target = $region60
        $region59: #{tpu_custom_call.1} parent=11 // pred_region
          _
        $region60: #{tpu_custom_call.1} parent=11 // pred_fallthru
          _
        // Predicated region
        $region61: #{tpu_custom_call.1} parent=11 // pred_check
          %p564 = pneg %p370
        $region62: #{tpu_custom_call.1} parent=11 // pred_check_branch
          %566 = sbr.rel (%p564) target = $region64
        $region63: #{tpu_custom_call.1} parent=11 // pred_region
          _
        $region64: #{tpu_custom_call.1} parent=11 // pred_fallthru
          _
        // Predicated region
        $region65: #{tpu_custom_call.1} parent=11 // pred_check
          %p567 = pneg %p391
        $region66: #{tpu_custom_call.1} parent=11 // pred_check_branch
          %569 = sbr.rel (%p567) target = $region68
        $region67: #{tpu_custom_call.1} parent=11 // pred_region
          _
        $region68: #{tpu_custom_call.1} parent=11 // pred_fallthru
          _
        // Predicated region
        $region69: #{tpu_custom_call.1} parent=11 // pred_check
          %p570 = pneg %p412
        $region70: #{tpu_custom_call.1} parent=11 // pred_check_branch
          %572 = sbr.rel (%p570) target = $region72
        $region71: #{tpu_custom_call.1} parent=11 // pred_region
          _
        $region72: #{tpu_custom_call.1} parent=11 // pred_fallthru
          _
        // Predicated region
        $region73: #{tpu_custom_call.1} parent=11 // pred_check
          %p573 = pneg %p433
        $region74: #{tpu_custom_call.1} parent=11 // pred_check_branch
          %575 = sbr.rel (%p573) target = $region76
        $region75: #{tpu_custom_call.1} parent=11 // pred_region
          _
        $region76: #{tpu_custom_call.1} parent=11 // pred_fallthru
          _
      $region12: #{tpu_custom_call.1} parent=5 // pred_fallthru
        _
      %p576 = scmp.lt.s32.totalorder %s33, 2
      // Predicated region
      $region77: #{tpu_custom_call.1} parent=5 // pred_check
        %p577 = pneg %p576
      $region78: #{tpu_custom_call.1} parent=5 // pred_check_branch
        %579 = sbr.rel (%p577) target = $region80
      $region79: #{tpu_custom_call.1} parent=5 // pred_region
        // Predicated region
        $region81: #{tpu_custom_call.1} parent=79 // pred_check
          %p580 = pneg %p65
        $region82: #{tpu_custom_call.1} parent=79 // pred_check_branch
          %582 = sbr.rel (%p580) target = $region84
        $region83: #{tpu_custom_call.1} parent=79 // pred_region
          %p583 = scmp.lt.s32.totalorder %s40, 1
          %s584 = scalar_select %p583, %s40, 1
          %s585 = smul.addr %s584, 8
          %s586 = scalar_lea.vmem %s0, %s585
        $region84: #{tpu_custom_call.1} parent=79 // pred_fallthru
          _
        // Predicated region
        $region85: #{tpu_custom_call.1} parent=79 // pred_check
          %p587 = pneg %p91
        $region86: #{tpu_custom_call.1} parent=79 // pred_check_branch
          %589 = sbr.rel (%p587) target = $region88
        $region87: #{tpu_custom_call.1} parent=79 // pred_region
          %s590 = sand.u32 %s81, 1
          %s591 = scalar_lea.sflag [#allocation3], %s590
          %s592 = sand.u32 %s81, 1
          %s593 = scalar_lea.vmem [#allocation2], %s592
          %s595 = ssub.s32 16, 16
          %596 = vsyncadd %s591, %s595
          %s597 = smul.addr %s40, 16
          %s598 = scalar_lea.hbm %s1, %s597
          %s600 = sshll.u32 %s593, 4
          %s601 = int_to_ptr.vmem [resolvable:$true] %s600
          %603 = dma.hbm_to_vmem [thread:$0]  %s598, 16, %s601, %s591
        $region88: #{tpu_custom_call.1} parent=79 // pred_fallthru
          _
      $region80: #{tpu_custom_call.1} parent=5 // pred_fallthru
        _
      %p604 = scmp.le.s32.totalorder 1, %s33
      %p605 = scmp.lt.s32.totalorder %s33, 3
      %p606 = pnand %p604, %p605
      %p607 = pneg %p606
      // Predicated region
      $region89: #{tpu_custom_call.1} parent=5 // pred_check
        _
      $region90: #{tpu_custom_call.1} parent=5 // pred_check_branch
        %609 = sbr.rel (%p606) target = $region92
      $region91: #{tpu_custom_call.1} parent=5 // pred_region
        %s610 = ssub.s32 %s33, 1
        %s611 = sand.u32 %s84, 1
        %s612 = scalar_lea.sflag [#allocation3], %s611
        %s613 = sand.u32 %s84, 1
        %s614 = scalar_lea.vmem [#allocation2], %s613
        // Predicated region
        $region93: #{tpu_custom_call.1} parent=91 // pred_check
          %p615 = pneg %p97
        $region94: #{tpu_custom_call.1} parent=91 // pred_check_branch
          %617 = sbr.rel (%p615) target = $region96
        $region95: #{tpu_custom_call.1} parent=91 // pred_region
          %618 = dma.done %s612, 16
        $region96: #{tpu_custom_call.1} parent=91 // pred_fallthru
          _
        // Predicated region
        $region97: #{tpu_custom_call.1} parent=91 // pred_check
          %p619 = pneg %p139
        $region98: #{tpu_custom_call.1} parent=91 // pred_check_branch
          %621 = sbr.rel (%p619) target = $region100
        $region99: #{tpu_custom_call.1} parent=91 // pred_region
          %622 = dma.done [#allocation6], 16
        $region100: #{tpu_custom_call.1} parent=91 // pred_fallthru
          _
        // Predicated region
        $region101: #{tpu_custom_call.1} parent=91 // pred_check
          %p623 = pneg %p181
        $region102: #{tpu_custom_call.1} parent=91 // pred_check_branch
          %625 = sbr.rel (%p623) target = $region104
        $region103: #{tpu_custom_call.1} parent=91 // pred_region
          %626 = dma.done [#allocation6], 16
        $region104: #{tpu_custom_call.1} parent=91 // pred_fallthru
          _
        // Predicated region
        $region105: #{tpu_custom_call.1} parent=91 // pred_check
          %p627 = pneg %p202
        $region106: #{tpu_custom_call.1} parent=91 // pred_check_branch
          %629 = sbr.rel (%p627) target = $region108
        $region107: #{tpu_custom_call.1} parent=91 // pred_region
          %630 = dma.done [#allocation9], 256
        $region108: #{tpu_custom_call.1} parent=91 // pred_fallthru
          _
        // Predicated region
        $region109: #{tpu_custom_call.1} parent=91 // pred_check
          %p631 = pneg %p223
        $region110: #{tpu_custom_call.1} parent=91 // pred_check_branch
          %633 = sbr.rel (%p631) target = $region112
        $region111: #{tpu_custom_call.1} parent=91 // pred_region
          %634 = dma.done [#allocation9], 16
        $region112: #{tpu_custom_call.1} parent=91 // pred_fallthru
          _
        // Predicated region
        $region113: #{tpu_custom_call.1} parent=91 // pred_check
          %p635 = pneg %p244
        $region114: #{tpu_custom_call.1} parent=91 // pred_check_branch
          %637 = sbr.rel (%p635) target = $region116
        $region115: #{tpu_custom_call.1} parent=91 // pred_region
          %638 = dma.done [#allocation12], 256
        $region116: #{tpu_custom_call.1} parent=91 // pred_fallthru
          _
        // Predicated region
        $region117: #{tpu_custom_call.1} parent=91 // pred_check
          %p639 = pneg %p265
        $region118: #{tpu_custom_call.1} parent=91 // pred_check_branch
          %641 = sbr.rel (%p639) target = $region120
        $region119: #{tpu_custom_call.1} parent=91 // pred_region
          %642 = dma.done [#allocation12], 16
        $region120: #{tpu_custom_call.1} parent=91 // pred_fallthru
          _
        %p643 = scmp.lt.s32.totalorder %s42, 1
        %s644 = scalar_select %p643, %s42, 1
        %s645 = smul.addr %s644, 8
        %s646 = scalar_lea.vmem %s0, %s645
        %p647 = pneg %p71
        %p648 = pneg %p68
        %s649 = sand.u32 %s84, 1
        %s650 = scalar_lea.sflag [#allocation3], %s649
        %s651 = sand.u32 %s84, 1
        %s652 = scalar_lea.vmem [#allocation2], %s651
        %p653 = pneg %p97
        %p654 = pneg %p94
        %p655 = pneg %p118
        %p656 = pneg %p115
        %p657 = pneg %p139
        %p658 = pneg %p136
        %p659 = pneg %p160
        %p660 = pneg %p157
        %p661 = pneg %p181
        %p662 = pneg %p178
        %p663 = pneg %p202
        %p664 = pneg %p199
        %p665 = pneg %p223
        %p666 = pneg %p220
        %p667 = pneg %p244
        %p668 = pneg %p241
        %p669 = pneg %p265
        %p670 = pneg %p262
        %p671 = pneg %p286
        %p672 = pneg %p283
        %p673 = pneg %p307
        %p674 = pneg %p304
        %p675 = pneg %p328
        %p676 = pneg %p325
        %p677 = pneg %p349
        %p678 = pneg %p346
        %p679 = pneg %p370
        %p680 = pneg %p367
        %p681 = pneg %p391
        %p682 = pneg %p388
        %p683 = pneg %p412
        %p684 = pneg %p409
        %p685 = pneg %p433
        %p686 = pneg %p430
        %p687 = pneg %p461
        %p688 = pneg %p458
        %s689 = sand.u32 %s448, 1
        %s690 = scalar_lea.sflag [#allocation4], %s689
        %s691 = sand.u32 %s448, 1
        %s692 = smul.addr %s691, 8
        %s693 = scalar_lea.vmem [#allocation14], %s692
        %p694 = scmp.lt.s32.totalorder %s42, 1
        %s695 = scalar_select %p694, %s42, 1
        %s696 = smul.addr %s695, 8
        %s697 = scalar_lea.vmem %s0, %s696
        %s699 = smul.u32 %s43, 8
        %v700 = vld [vmem:[%s697] sm:$0xff]
        %s701 = scalar_lea.vmem %s697, %s699
        %v702 = vld [vmem:[%s701] sm:$0xff]
        %v703 = vpack.c.bf16 %v700, %v700
        %v704 = vpack.c.bf16 %v702, %v702
        %v705 = vld [vmem:[%s614] sm:$0x1]
        %v706 = vld [vmem:[%s2] sm:$0xf]
        %v707 = vld [vmem:[%s2 + $0x4] sm:$0xf]
        %v708 = vld [vmem:[%s2 + $0x8] sm:$0xf]
        %v709 = vld [vmem:[%s2 + $0xc] sm:$0xf]
        %v710 = vld [vmem:[#allocation5] sm:$0x1]
        %v712 = vlaneseq
        %v713 = vshrl.u32 %v712, 7
        %v714 = vsub.s32 0, %v713
        %v715 = vrot.slane %v710, %v714
        %v721 = vunpack.c.l.b16 %v706
        %v722 = vunpack.c.l.b16 %v707
        %v723 = vunpack.c.l.b16 %v708
        %v724 = vunpack.c.l.b16 %v709
        %v725 = vpack.c.b16 %v722, %v721
        %v726 = vpack.c.b16 %v724, %v723
        %vm729 = vcmask 261120
        %v731 = vsel %vm729, %v704, 0
        %733 = vmatprep.subr.bf16.mxu0 0
        %734 = vmatpush1.bf16.msra.mxu0 0
        %735 = vmatprep.subr.bf16.mxu0 0
        %736 = vmatpush1.bf16.msra.mxu0 0
        %737 = vmatprep.subr.bf16.mxu0 0
        %738 = vmatpush1.bf16.msra.mxu0 0
        %739 = vmatprep.subr.bf16.mxu0 0
        %740 = vmatpush1.bf16.msra.mxu0 0
        %741 = vmatprep.subr.bf16.mxu0 0
        %742 = vmatpush1.bf16.msra.mxu0 0
        %743 = vmatprep.subr.bf16.mxu0 0
        %744 = vmatpush1.bf16.msra.mxu0 0
        %745 = vmatprep.subr.bf16.mxu0 0
        %746 = vmatpush1.bf16.msra.mxu0 %v726
        %747 = vmatprep.subr.bf16.mxu0 0
        %748 = vmatpush1.bf16.msra.mxu0 %v725
        %749 = vmatprep.subr.bf16.mxu0 0
        %750 = vmatpush2.bf16.msra.mxu0 0
        %751 = vmatprep.subr.bf16.mxu0 0
        %752 = vmatpush2.bf16.msra.mxu0 0
        %753 = vmatprep.subr.bf16.mxu0 0
        %754 = vmatpush2.bf16.msra.mxu0 0
        %755 = vmatprep.subr.bf16.mxu0 0
        %756 = vmatpush2.bf16.msra.mxu0 0
        %757 = vmatprep.subr.bf16.mxu0 0
        %758 = vmatpush2.bf16.msra.mxu0 0
        %759 = vmatprep.subr.bf16.mxu0 0
        %760 = vmatpush2.bf16.msra.mxu0 0
        %761 = vmatprep.subr.bf16.mxu0 0
        %762 = vmatpush2.bf16.msra.mxu0 0
        %763 = vmatprep.subr.bf16.mxu0 0
        %764 = vmatpush2.bf16.msra.mxu0 0
        %765 = vmatprep.mubr.bf16.mxu0 0
        %766 = vmatmul.mubr.bf16.gmra.mxu0 %v731
        %v767 = vpop.f32.mrf.mxu0
        %v768 = vadd.f32 %v715, %v767
        %v769 = vpop.f32.mrf.mxu0
        %v770 = vpop.f32.mrf.mxu0
        %v771 = vpop.f32.mrf.mxu0
        %772 = vdwg.mxu0
        %v773 = vld [vmem:[%s4] sm:$0xf]
        %v774 = vld [vmem:[%s4 + $0x4] sm:$0xf]
        %v775 = vld [vmem:[%s4 + $0x8] sm:$0xf]
        %v776 = vld [vmem:[%s4 + $0xc] sm:$0xf]
        %v777 = vld [vmem:[#allocation7] sm:$0x1]
        %v779 = vlaneseq
        %v780 = vshrl.u32 %v779, 7
        %v781 = vsub.s32 0, %v780
        %v782 = vrot.slane %v777, %v781
        %v788 = vunpack.c.l.b16 %v773
        %v789 = vunpack.c.l.b16 %v774
        %v790 = vunpack.c.l.b16 %v775
        %v791 = vunpack.c.l.b16 %v776
        %v792 = vpack.c.b16 %v789, %v788
        %v793 = vpack.c.b16 %v791, %v790
        %v797 = vsel %vm729, %v703, 0
        %799 = vmatprep.subr.bf16.mxu0 0
        %800 = vmatpush1.bf16.msra.mxu0 0
        %801 = vmatprep.subr.bf16.mxu0 0
        %802 = vmatpush1.bf16.msra.mxu0 0
        %803 = vmatprep.subr.bf16.mxu0 0
        %804 = vmatpush1.bf16.msra.mxu0 0
        %805 = vmatprep.subr.bf16.mxu0 0
        %806 = vmatpush1.bf16.msra.mxu0 0
        %807 = vmatprep.subr.bf16.mxu0 0
        %808 = vmatpush1.bf16.msra.mxu0 0
        %809 = vmatprep.subr.bf16.mxu0 0
        %810 = vmatpush1.bf16.msra.mxu0 0
        %811 = vmatprep.subr.bf16.mxu0 0
        %812 = vmatpush1.bf16.msra.mxu0 %v793
        %813 = vmatprep.subr.bf16.mxu0 0
        %814 = vmatpush1.bf16.msra.mxu0 %v792
        %815 = vmatprep.subr.bf16.mxu0 0
        %816 = vmatpush2.bf16.msra.mxu0 0
        %817 = vmatprep.subr.bf16.mxu0 0
        %818 = vmatpush2.bf16.msra.mxu0 0
        %819 = vmatprep.subr.bf16.mxu0 0
        %820 = vmatpush2.bf16.msra.mxu0 0
        %821 = vmatprep.subr.bf16.mxu0 0
        %822 = vmatpush2.bf16.msra.mxu0 0
        %823 = vmatprep.subr.bf16.mxu0 0
        %824 = vmatpush2.bf16.msra.mxu0 0
        %825 = vmatprep.subr.bf16.mxu0 0
        %826 = vmatpush2.bf16.msra.mxu0 0
        %827 = vmatprep.subr.bf16.mxu0 0
        %828 = vmatpush2.bf16.msra.mxu0 0
        %829 = vmatprep.subr.bf16.mxu0 0
        %830 = vmatpush2.bf16.msra.mxu0 0
        %831 = vmatprep.mubr.bf16.mxu0 0
        %832 = vmatmul.mubr.bf16.gmra.mxu0 %v797
        %v833 = vpop.f32.mrf.mxu0
        %v834 = vadd.f32 %v782, %v833
        %v835 = vpop.f32.mrf.mxu0
        %v836 = vpop.f32.mrf.mxu0
        %v837 = vpop.f32.mrf.mxu0
        %838 = vdwg.mxu0
        %v839 = vld [vmem:[#allocation8] sm:$0xf]
        %v840 = vld [vmem:[#allocation8 + $0x4] sm:$0xf]
        %v841 = vld [vmem:[#allocation8 + $0x8] sm:$0xf]
        %v842 = vld [vmem:[#allocation8 + $0xc] sm:$0xf]
        %v843 = vld [vmem:[#allocation10] sm:$0x1]
        %v845 = vlaneseq
        %v846 = vshrl.u32 %v845, 7
        %v847 = vsub.s32 0, %v846
        %v848 = vrot.slane %v843, %v847
        %v854 = vunpack.c.l.b16 %v839
        %v855 = vunpack.c.l.b16 %v840
        %v856 = vunpack.c.l.b16 %v841
        %v857 = vunpack.c.l.b16 %v842
        %v858 = vpack.c.b16 %v855, %v854
        %v859 = vpack.c.b16 %v857, %v856
        %862 = vmatprep.subr.bf16.mxu0 0
        %863 = vmatpush1.bf16.msra.mxu0 0
        %864 = vmatprep.subr.bf16.mxu0 0
        %865 = vmatpush1.bf16.msra.mxu0 0
        %866 = vmatprep.subr.bf16.mxu0 0
        %867 = vmatpush1.bf16.msra.mxu0 0
        %868 = vmatprep.subr.bf16.mxu0 0
        %869 = vmatpush1.bf16.msra.mxu0 0
        %870 = vmatprep.subr.bf16.mxu0 0
        %871 = vmatpush1.bf16.msra.mxu0 0
        %872 = vmatprep.subr.bf16.mxu0 0
        %873 = vmatpush1.bf16.msra.mxu0 0
        %874 = vmatprep.subr.bf16.mxu0 0
        %875 = vmatpush1.bf16.msra.mxu0 %v859
        %876 = vmatprep.subr.bf16.mxu0 0
        %877 = vmatpush1.bf16.msra.mxu0 %v858
        %878 = vmatprep.subr.bf16.mxu0 0
        %879 = vmatpush2.bf16.msra.mxu0 0
        %880 = vmatprep.subr.bf16.mxu0 0
        %881 = vmatpush2.bf16.msra.mxu0 0
        %882 = vmatprep.subr.bf16.mxu0 0
        %883 = vmatpush2.bf16.msra.mxu0 0
        %884 = vmatprep.subr.bf16.mxu0 0
        %885 = vmatpush2.bf16.msra.mxu0 0
        %886 = vmatprep.subr.bf16.mxu0 0
        %887 = vmatpush2.bf16.msra.mxu0 0
        %888 = vmatprep.subr.bf16.mxu0 0
        %889 = vmatpush2.bf16.msra.mxu0 0
        %890 = vmatprep.subr.bf16.mxu0 0
        %891 = vmatpush2.bf16.msra.mxu0 0
        %892 = vmatprep.subr.bf16.mxu0 0
        %893 = vmatpush2.bf16.msra.mxu0 0
        %894 = vmatprep.mubr.bf16.mxu0 0
        %895 = vmatmul.mubr.bf16.gmra.mxu0 %v797
        %v896 = vpop.f32.mrf.mxu0
        %v897 = vadd.f32 %v848, %v896
        %v898 = vpop.f32.mrf.mxu0
        %v899 = vpop.f32.mrf.mxu0
        %v900 = vpop.f32.mrf.mxu0
        %901 = vdwg.mxu0
        %903 = vrot.lane.b32.xlu0 %v768, 112
        %v904 = vpop.permute.xlu0 %903
        %v906 = vcombine.high %v768, 0.0
        %v908 = vunpack.c.l.s4 1983009808
        %v909 = vunpack.c.0.s8 %v908
        %v910 = vlaneseq
        %v911 = vshrl.u32 %v910, 7
        %v912 = vsub.s32 %v909, %v911
        %v913 = vrot.slane %v768, %v912
        %v915 = vunpack.c.l.s4 1983009808
        %v916 = vunpack.c.0.s8 %v915
        %v917 = vlaneseq
        %v918 = vshrl.u32 %v917, 7
        %v919 = vsub.s32 %v916, %v918
        %v920 = vrot.slane %v906, %v919
        %v921 = vcombine.high %v904, 0.0
        %v923 = vunpack.c.l.s4 1983009808
        %v924 = vunpack.c.0.s8 %v923
        %v925 = vlaneseq
        %v926 = vshrl.u32 %v925, 7
        %v927 = vsub.s32 %v924, %v926
        %v928 = vrot.slane %v904, %v927
        %v930 = vunpack.c.l.s4 1983009808
        %v931 = vunpack.c.0.s8 %v930
        %v932 = vlaneseq
        %v933 = vshrl.u32 %v932, 7
        %v934 = vsub.s32 %v931, %v933
        %v935 = vrot.slane %v921, %v934
        %v936 = vcombine.low %v913, %v928
        %v937 = vcombine.high %v913, %v928
        %v939 = vunpack.c.l.s4 1934713408
        %v940 = vunpack.c.0.s8 %v939
        %v941 = vlaneseq
        %v942 = vshrl.u32 %v941, 7
        %v943 = vsub.s32 %v940, %v942
        %v944 = vrot.slane %v936, %v943
        %v946 = vunpack.c.l.s4 1934713408
        %v947 = vunpack.c.0.s8 %v946
        %v948 = vlaneseq
        %v949 = vshrl.u32 %v948, 7
        %v950 = vsub.s32 %v947, %v949
        %v951 = vrot.slane %v937, %v950
        %v952 = vcombine.low %v920, %v935
        %v953 = vcombine.high %v920, %v935
        %v955 = vunpack.c.l.s4 1934713408
        %v956 = vunpack.c.0.s8 %v955
        %v957 = vlaneseq
        %v958 = vshrl.u32 %v957, 7
        %v959 = vsub.s32 %v956, %v958
        %v960 = vrot.slane %v952, %v959
        %v962 = vunpack.c.l.s4 1934713408
        %v963 = vunpack.c.0.s8 %v962
        %v964 = vlaneseq
        %v965 = vshrl.u32 %v964, 7
        %v966 = vsub.s32 %v963, %v965
        %v967 = vrot.slane %v953, %v966
        %v968 = vcombine.high %v944, 0.0
        %v969 = vcombine.high %v951, 0.0
        %v970 = vcombine.high %v960, 0.0
        %v971 = vcombine.high %v967, 0.0
        %v972 = vpack.c.bf16 %v944, %v944
        %v973 = vpack.c.bf16 %v968, %v968
        %v974 = vpack.c.bf16 %v951, %v951
        %v975 = vpack.c.bf16 %v969, %v969
        %v976 = vpack.c.bf16 %v960, %v960
        %v977 = vpack.c.bf16 %v970, %v970
        %v978 = vpack.c.bf16 %v967, %v967
        %v979 = vpack.c.bf16 %v971, %v971
        %981 = vrot.lane.b32.xlu0 %v834, 112
        %v982 = vpop.permute.xlu0 %981
        %v984 = vcombine.high %v834, 0.0
        %v986 = vunpack.c.l.s4 1983009808
        %v987 = vunpack.c.0.s8 %v986
        %v988 = vlaneseq
        %v989 = vshrl.u32 %v988, 7
        %v990 = vsub.s32 %v987, %v989
        %v991 = vrot.slane %v834, %v990
        %v993 = vunpack.c.l.s4 1983009808
        %v994 = vunpack.c.0.s8 %v993
        %v995 = vlaneseq
        %v996 = vshrl.u32 %v995, 7
        %v997 = vsub.s32 %v994, %v996
        %v998 = vrot.slane %v984, %v997
        %v999 = vcombine.high %v982, 0.0
        %v1001 = vunpack.c.l.s4 1983009808
        %v1002 = vunpack.c.0.s8 %v1001
        %v1003 = vlaneseq
        %v1004 = vshrl.u32 %v1003, 7
        %v1005 = vsub.s32 %v1002, %v1004
        %v1006 = vrot.slane %v982, %v1005
        %v1008 = vunpack.c.l.s4 1983009808
        %v1009 = vunpack.c.0.s8 %v1008
        %v1010 = vlaneseq
        %v1011 = vshrl.u32 %v1010, 7
        %v1012 = vsub.s32 %v1009, %v1011
        %v1013 = vrot.slane %v999, %v1012
        %v1014 = vcombine.low %v991, %v1006
        %v1015 = vcombine.high %v991, %v1006
        %v1017 = vunpack.c.l.s4 1934713408
        %v1018 = vunpack.c.0.s8 %v1017
        %v1019 = vlaneseq
        %v1020 = vshrl.u32 %v1019, 7
        %v1021 = vsub.s32 %v1018, %v1020
        %v1022 = vrot.slane %v1014, %v1021
        %v1024 = vunpack.c.l.s4 1934713408
        %v1025 = vunpack.c.0.s8 %v1024
        %v1026 = vlaneseq
        %v1027 = vshrl.u32 %v1026, 7
        %v1028 = vsub.s32 %v1025, %v1027
        %v1029 = vrot.slane %v1015, %v1028
        %v1030 = vcombine.low %v998, %v1013
        %v1031 = vcombine.high %v998, %v1013
        %v1033 = vunpack.c.l.s4 1934713408
        %v1034 = vunpack.c.0.s8 %v1033
        %v1035 = vlaneseq
        %v1036 = vshrl.u32 %v1035, 7
        %v1037 = vsub.s32 %v1034, %v1036
        %v1038 = vrot.slane %v1030, %v1037
        %v1040 = vunpack.c.l.s4 1934713408
        %v1041 = vunpack.c.0.s8 %v1040
        %v1042 = vlaneseq
        %v1043 = vshrl.u32 %v1042, 7
        %v1044 = vsub.s32 %v1041, %v1043
        %v1045 = vrot.slane %v1031, %v1044
        %v1046 = vcombine.high %v1022, 0.0
        %v1047 = vcombine.high %v1029, 0.0
        %v1048 = vcombine.high %v1038, 0.0
        %v1049 = vcombine.high %v1045, 0.0
        %v1050 = vpack.c.bf16 %v1022, %v1022
        %v1051 = vpack.c.bf16 %v1046, %v1046
        %v1052 = vpack.c.bf16 %v1029, %v1029
        %v1053 = vpack.c.bf16 %v1047, %v1047
        %v1054 = vpack.c.bf16 %v1038, %v1038
        %v1055 = vpack.c.bf16 %v1048, %v1048
        %v1056 = vpack.c.bf16 %v1045, %v1045
        %v1057 = vpack.c.bf16 %v1049, %v1049
        %1059 = vrot.lane.b32.xlu0 %v897, 112
        %v1060 = vpop.permute.xlu0 %1059
        %v1062 = vcombine.high %v897, 0.0
        %v1064 = vunpack.c.l.s4 1983009808
        %v1065 = vunpack.c.0.s8 %v1064
        %v1066 = vlaneseq
        %v1067 = vshrl.u32 %v1066, 7
        %v1068 = vsub.s32 %v1065, %v1067
        %v1069 = vrot.slane %v897, %v1068
        %v1071 = vunpack.c.l.s4 1983009808
        %v1072 = vunpack.c.0.s8 %v1071
        %v1073 = vlaneseq
        %v1074 = vshrl.u32 %v1073, 7
        %v1075 = vsub.s32 %v1072, %v1074
        %v1076 = vrot.slane %v1062, %v1075
        %v1077 = vcombine.high %v1060, 0.0
        %v1079 = vunpack.c.l.s4 1983009808
        %v1080 = vunpack.c.0.s8 %v1079
        %v1081 = vlaneseq
        %v1082 = vshrl.u32 %v1081, 7
        %v1083 = vsub.s32 %v1080, %v1082
        %v1084 = vrot.slane %v1060, %v1083
        %v1086 = vunpack.c.l.s4 1983009808
        %v1087 = vunpack.c.0.s8 %v1086
        %v1088 = vlaneseq
        %v1089 = vshrl.u32 %v1088, 7
        %v1090 = vsub.s32 %v1087, %v1089
        %v1091 = vrot.slane %v1077, %v1090
        %v1092 = vcombine.low %v1069, %v1084
        %v1093 = vcombine.high %v1069, %v1084
        %v1095 = vunpack.c.l.s4 1934713408
        %v1096 = vunpack.c.0.s8 %v1095
        %v1097 = vlaneseq
        %v1098 = vshrl.u32 %v1097, 7
        %v1099 = vsub.s32 %v1096, %v1098
        %v1100 = vrot.slane %v1092, %v1099
        %v1102 = vunpack.c.l.s4 1934713408
        %v1103 = vunpack.c.0.s8 %v1102
        %v1104 = vlaneseq
        %v1105 = vshrl.u32 %v1104, 7
        %v1106 = vsub.s32 %v1103, %v1105
        %v1107 = vrot.slane %v1093, %v1106
        %v1108 = vcombine.low %v1076, %v1091
        %v1109 = vcombine.high %v1076, %v1091
        %v1111 = vunpack.c.l.s4 1934713408
        %v1112 = vunpack.c.0.s8 %v1111
        %v1113 = vlaneseq
        %v1114 = vshrl.u32 %v1113, 7
        %v1115 = vsub.s32 %v1112, %v1114
        %v1116 = vrot.slane %v1108, %v1115
        %v1118 = vunpack.c.l.s4 1934713408
        %v1119 = vunpack.c.0.s8 %v1118
        %v1120 = vlaneseq
        %v1121 = vshrl.u32 %v1120, 7
        %v1122 = vsub.s32 %v1119, %v1121
        %v1123 = vrot.slane %v1109, %v1122
        %v1124 = vcombine.high %v1100, 0.0
        %v1125 = vcombine.high %v1107, 0.0
        %v1126 = vcombine.high %v1116, 0.0
        %v1127 = vcombine.high %v1123, 0.0
        %v1128 = vpack.c.bf16 %v1100, %v1100
        %v1129 = vpack.c.bf16 %v1124, %v1124
        %v1130 = vpack.c.bf16 %v1107, %v1107
        %v1131 = vpack.c.bf16 %v1125, %v1125
        %v1132 = vpack.c.bf16 %v1116, %v1116
        %v1133 = vpack.c.bf16 %v1126, %v1126
        %v1134 = vpack.c.bf16 %v1123, %v1123
        %v1135 = vpack.c.bf16 %v1127, %v1127
        %v1136 = vcombine.low %v972, %v976
        %v1138 = vunpack.c.l.s4 1983009808
        %v1139 = vunpack.c.0.s8 %v1138
        %v1140 = vlaneseq
        %v1141 = vshrl.u32 %v1140, 7
        %v1142 = vsub.s32 %v1139, %v1141
        %v1143 = vrot.slane %v1136, %v1142
        %v1144 = vcombine.low %v974, %v978
        %v1146 = vunpack.c.l.s4 1983009808
        %v1147 = vunpack.c.0.s8 %v1146
        %v1148 = vlaneseq
        %v1149 = vshrl.u32 %v1148, 7
        %v1150 = vsub.s32 %v1147, %v1149
        %v1151 = vrot.slane %v1144, %v1150
        %v1152 = vcombine.low %v1143, %v1151
        %v1154 = vunpack.c.l.s4 1934713408
        %v1155 = vunpack.c.0.s8 %v1154
        %v1156 = vlaneseq
        %v1157 = vshrl.u32 %v1156, 7
        %v1158 = vsub.s32 %v1155, %v1157
        %v1159 = vrot.slane %v1152, %v1158
        %v1160 = vcombine.low %v973, %v977
        %v1162 = vunpack.c.l.s4 1983009808
        %v1163 = vunpack.c.0.s8 %v1162
        %v1164 = vlaneseq
        %v1165 = vshrl.u32 %v1164, 7
        %v1166 = vsub.s32 %v1163, %v1165
        %v1167 = vrot.slane %v1160, %v1166
        %v1168 = vcombine.low %v975, %v979
        %v1170 = vunpack.c.l.s4 1983009808
        %v1171 = vunpack.c.0.s8 %v1170
        %v1172 = vlaneseq
        %v1173 = vshrl.u32 %v1172, 7
        %v1174 = vsub.s32 %v1171, %v1173
        %v1175 = vrot.slane %v1168, %v1174
        %v1176 = vcombine.low %v1167, %v1175
        %v1178 = vunpack.c.l.s4 1934713408
        %v1179 = vunpack.c.0.s8 %v1178
        %v1180 = vlaneseq
        %v1181 = vshrl.u32 %v1180, 7
        %v1182 = vsub.s32 %v1179, %v1181
        %v1183 = vrot.slane %v1176, %v1182
        %v1186 = vpack.i.b16 %v1183, %v1159
        %v1187 = vshrl.u32 %v1159, 16
        %v1188 = vshrl.u32 %v1183, 16
        %v1189 = vpack.i.b16 %v1188, %v1187
        %1190 = vxpose.xlu0.c.b16.start [1/8] %v1050, 128
        %1191 = vxpose.xlu0.c.b16.cont [2/8] 0, 128
        %1192 = vxpose.xlu0.c.b16.cont [3/8] 0, 128
        %1193 = vxpose.xlu0.c.b16.cont [4/8] 0, 128
        %1194 = vxpose.xlu0.c.b16.cont [5/8] 0, 128
        %1195 = vxpose.xlu0.c.b16.cont [6/8] 0, 128
        %1196 = vxpose.xlu0.c.b16.cont [7/8] 0, 128
        %1197 = vxpose.xlu0.c.b16.end [8/8] 0, 128
        %v1198 = vpop.trf.xlu0
        %v1199 = vpop.trf.xlu0
        %v1200 = vpop.trf.xlu0
        %v1201 = vpop.trf.xlu0
        %v1202 = vpop.trf.xlu0
        %v1203 = vpop.trf.xlu0
        %v1204 = vpop.trf.xlu0
        %v1205 = vpop.trf.xlu0
        %1206 = vxpose.xlu0.c.b16.start [1/8] %v1051, 128
        %1207 = vxpose.xlu0.c.b16.cont [2/8] 0, 128
        %1208 = vxpose.xlu0.c.b16.cont [3/8] 0, 128
        %1209 = vxpose.xlu0.c.b16.cont [4/8] 0, 128
        %1210 = vxpose.xlu0.c.b16.cont [5/8] 0, 128
        %1211 = vxpose.xlu0.c.b16.cont [6/8] 0, 128
        %1212 = vxpose.xlu0.c.b16.cont [7/8] 0, 128
        %1213 = vxpose.xlu0.c.b16.end [8/8] 0, 128
        %v1214 = vpop.trf.xlu0
        %v1215 = vpop.trf.xlu0
        %v1216 = vpop.trf.xlu0
        %v1217 = vpop.trf.xlu0
        %v1218 = vpop.trf.xlu0
        %v1219 = vpop.trf.xlu0
        %v1220 = vpop.trf.xlu0
        %v1221 = vpop.trf.xlu0
        %1222 = vxpose.xlu0.c.b16.start [1/8] %v1052, 128
        %1223 = vxpose.xlu0.c.b16.cont [2/8] 0, 128
        %1224 = vxpose.xlu0.c.b16.cont [3/8] 0, 128
        %1225 = vxpose.xlu0.c.b16.cont [4/8] 0, 128
        %1226 = vxpose.xlu0.c.b16.cont [5/8] 0, 128
        %1227 = vxpose.xlu0.c.b16.cont [6/8] 0, 128
        %1228 = vxpose.xlu0.c.b16.cont [7/8] 0, 128
        %1229 = vxpose.xlu0.c.b16.end [8/8] 0, 128
        %v1230 = vpop.trf.xlu0
        %v1231 = vpop.trf.xlu0
        %v1232 = vpop.trf.xlu0
        %v1233 = vpop.trf.xlu0
        %v1234 = vpop.trf.xlu0
        %v1235 = vpop.trf.xlu0
        %v1236 = vpop.trf.xlu0
        %v1237 = vpop.trf.xlu0
        %1238 = vxpose.xlu0.c.b16.start [1/8] %v1053, 128
        %1239 = vxpose.xlu0.c.b16.cont [2/8] 0, 128
        %1240 = vxpose.xlu0.c.b16.cont [3/8] 0, 128
        %1241 = vxpose.xlu0.c.b16.cont [4/8] 0, 128
        %1242 = vxpose.xlu0.c.b16.cont [5/8] 0, 128
        %1243 = vxpose.xlu0.c.b16.cont [6/8] 0, 128
        %1244 = vxpose.xlu0.c.b16.cont [7/8] 0, 128
        %1245 = vxpose.xlu0.c.b16.end [8/8] 0, 128
        %v1246 = vpop.trf.xlu0
        %v1247 = vpop.trf.xlu0
        %v1248 = vpop.trf.xlu0
        %v1249 = vpop.trf.xlu0
        %v1250 = vpop.trf.xlu0
        %v1251 = vpop.trf.xlu0
        %v1252 = vpop.trf.xlu0
        %v1253 = vpop.trf.xlu0
        %1254 = vxpose.xlu0.c.b16.start [1/8] %v1054, 128
        %1255 = vxpose.xlu0.c.b16.cont [2/8] 0, 128
        %1256 = vxpose.xlu0.c.b16.cont [3/8] 0, 128
        %1257 = vxpose.xlu0.c.b16.cont [4/8] 0, 128
        %1258 = vxpose.xlu0.c.b16.cont [5/8] 0, 128
        %1259 = vxpose.xlu0.c.b16.cont [6/8] 0, 128
        %1260 = vxpose.xlu0.c.b16.cont [7/8] 0, 128
        %1261 = vxpose.xlu0.c.b16.end [8/8] 0, 128
        %v1262 = vpop.trf.xlu0
        %v1263 = vpop.trf.xlu0
        %v1264 = vpop.trf.xlu0
        %v1265 = vpop.trf.xlu0
        %v1266 = vpop.trf.xlu0
        %v1267 = vpop.trf.xlu0
        %v1268 = vpop.trf.xlu0
        %v1269 = vpop.trf.xlu0
        %1270 = vxpose.xlu0.c.b16.start [1/8] %v1055, 128
        %1271 = vxpose.xlu0.c.b16.cont [2/8] 0, 128
        %1272 = vxpose.xlu0.c.b16.cont [3/8] 0, 128
        %1273 = vxpose.xlu0.c.b16.cont [4/8] 0, 128
        %1274 = vxpose.xlu0.c.b16.cont [5/8] 0, 128
        %1275 = vxpose.xlu0.c.b16.cont [6/8] 0, 128
        %1276 = vxpose.xlu0.c.b16.cont [7/8] 0, 128
        %1277 = vxpose.xlu0.c.b16.end [8/8] 0, 128
        %v1278 = vpop.trf.xlu0
        %v1279 = vpop.trf.xlu0
        %v1280 = vpop.trf.xlu0
        %v1281 = vpop.trf.xlu0
        %v1282 = vpop.trf.xlu0
        %v1283 = vpop.trf.xlu0
        %v1284 = vpop.trf.xlu0
        %v1285 = vpop.trf.xlu0
        %1286 = vxpose.xlu0.c.b16.start [1/8] %v1056, 128
        %1287 = vxpose.xlu0.c.b16.cont [2/8] 0, 128
        %1288 = vxpose.xlu0.c.b16.cont [3/8] 0, 128
        %1289 = vxpose.xlu0.c.b16.cont [4/8] 0, 128
        %1290 = vxpose.xlu0.c.b16.cont [5/8] 0, 128
        %1291 = vxpose.xlu0.c.b16.cont [6/8] 0, 128
        %1292 = vxpose.xlu0.c.b16.cont [7/8] 0, 128
        %1293 = vxpose.xlu0.c.b16.end [8/8] 0, 128
        %v1294 = vpop.trf.xlu0
        %v1295 = vpop.trf.xlu0
        %v1296 = vpop.trf.xlu0
        %v1297 = vpop.trf.xlu0
        %v1298 = vpop.trf.xlu0
        %v1299 = vpop.trf.xlu0
        %v1300 = vpop.trf.xlu0
        %v1301 = vpop.trf.xlu0
        %1302 = vxpose.xlu0.c.b16.start [1/8] %v1057, 128
        %1303 = vxpose.xlu0.c.b16.cont [2/8] 0, 128
        %1304 = vxpose.xlu0.c.b16.cont [3/8] 0, 128
        %1305 = vxpose.xlu0.c.b16.cont [4/8] 0, 128
        %1306 = vxpose.xlu0.c.b16.cont [5/8] 0, 128
        %1307 = vxpose.xlu0.c.b16.cont [6/8] 0, 128
        %1308 = vxpose.xlu0.c.b16.cont [7/8] 0, 128
        %1309 = vxpose.xlu0.c.b16.end [8/8] 0, 128
        %v1310 = vpop.trf.xlu0
        %v1311 = vpop.trf.xlu0
        %v1312 = vpop.trf.xlu0
        %v1313 = vpop.trf.xlu0
        %v1314 = vpop.trf.xlu0
        %v1315 = vpop.trf.xlu0
        %v1316 = vpop.trf.xlu0
        %v1317 = vpop.trf.xlu0
        %v1320 = vpack.i.b16 %v1214, %v1198
        %v1322 = vshrl.u32 %v1198, 16
        %v1323 = vshrl.u32 %v1214, 16
        %v1324 = vpack.i.b16 %v1323, %v1322
        %v1328 = vpack.i.b16 %v1246, %v1230
        %v1330 = vshrl.u32 %v1230, 16
        %v1331 = vshrl.u32 %v1246, 16
        %v1332 = vpack.i.b16 %v1331, %v1330
        %v1336 = vpack.i.b16 %v1278, %v1262
        %v1338 = vshrl.u32 %v1262, 16
        %v1339 = vshrl.u32 %v1278, 16
        %v1340 = vpack.i.b16 %v1339, %v1338
        %v1344 = vpack.i.b16 %v1310, %v1294
        %v1346 = vshrl.u32 %v1294, 16
        %v1347 = vshrl.u32 %v1310, 16
        %v1348 = vpack.i.b16 %v1347, %v1346
        %v1350 = vcombine.low %v1320, %v1336
        %v1351 = vcombine.high %v1320, %v1336
        %v1353 = vunpack.c.l.s4 1983009808
        %v1354 = vunpack.c.0.s8 %v1353
        %v1355 = vlaneseq
        %v1356 = vshrl.u32 %v1355, 7
        %v1357 = vsub.s32 %v1354, %v1356
        %v1358 = vrot.slane %v1350, %v1357
        %v1360 = vunpack.c.l.s4 1983009808
        %v1361 = vunpack.c.0.s8 %v1360
        %v1362 = vlaneseq
        %v1363 = vshrl.u32 %v1362, 7
        %v1364 = vsub.s32 %v1361, %v1363
        %v1365 = vrot.slane %v1351, %v1364
        %v1366 = vcombine.low %v1328, %v1344
        %v1367 = vcombine.high %v1328, %v1344
        %v1369 = vunpack.c.l.s4 1983009808
        %v1370 = vunpack.c.0.s8 %v1369
        %v1371 = vlaneseq
        %v1372 = vshrl.u32 %v1371, 7
        %v1373 = vsub.s32 %v1370, %v1372
        %v1374 = vrot.slane %v1366, %v1373
        %v1376 = vunpack.c.l.s4 1983009808
        %v1377 = vunpack.c.0.s8 %v1376
        %v1378 = vlaneseq
        %v1379 = vshrl.u32 %v1378, 7
        %v1380 = vsub.s32 %v1377, %v1379
        %v1381 = vrot.slane %v1367, %v1380
        %v1382 = vcombine.low %v1358, %v1374
        %v1383 = vcombine.high %v1358, %v1374
        %v1385 = vunpack.c.l.s4 1934713408
        %v1386 = vunpack.c.0.s8 %v1385
        %v1387 = vlaneseq
        %v1388 = vshrl.u32 %v1387, 7
        %v1389 = vsub.s32 %v1386, %v1388
        %v1390 = vrot.slane %v1382, %v1389
        %v1392 = vunpack.c.l.s4 1934713408
        %v1393 = vunpack.c.0.s8 %v1392
        %v1394 = vlaneseq
        %v1395 = vshrl.u32 %v1394, 7
        %v1396 = vsub.s32 %v1393, %v1395
        %v1397 = vrot.slane %v1383, %v1396
        %v1398 = vcombine.low %v1365, %v1381
        %v1399 = vcombine.high %v1365, %v1381
        %v1401 = vunpack.c.l.s4 1934713408
        %v1402 = vunpack.c.0.s8 %v1401
        %v1403 = vlaneseq
        %v1404 = vshrl.u32 %v1403, 7
        %v1405 = vsub.s32 %v1402, %v1404
        %v1406 = vrot.slane %v1398, %v1405
        %v1408 = vunpack.c.l.s4 1934713408
        %v1409 = vunpack.c.0.s8 %v1408
        %v1410 = vlaneseq
        %v1411 = vshrl.u32 %v1410, 7
        %v1412 = vsub.s32 %v1409, %v1411
        %v1413 = vrot.slane %v1399, %v1412
        %v1414 = vcombine.high %v1390, 0
        %v1415 = vcombine.high %v1397, 0
        %v1416 = vcombine.high %v1406, 0
        %v1417 = vcombine.high %v1413, 0
        %v1418 = vcombine.low %v1324, %v1340
        %v1419 = vcombine.high %v1324, %v1340
        %v1421 = vunpack.c.l.s4 1983009808
        %v1422 = vunpack.c.0.s8 %v1421
        %v1423 = vlaneseq
        %v1424 = vshrl.u32 %v1423, 7
        %v1425 = vsub.s32 %v1422, %v1424
        %v1426 = vrot.slane %v1418, %v1425
        %v1428 = vunpack.c.l.s4 1983009808
        %v1429 = vunpack.c.0.s8 %v1428
        %v1430 = vlaneseq
        %v1431 = vshrl.u32 %v1430, 7
        %v1432 = vsub.s32 %v1429, %v1431
        %v1433 = vrot.slane %v1419, %v1432
        %v1434 = vcombine.low %v1332, %v1348
        %v1435 = vcombine.high %v1332, %v1348
        %v1437 = vunpack.c.l.s4 1983009808
        %v1438 = vunpack.c.0.s8 %v1437
        %v1439 = vlaneseq
        %v1440 = vshrl.u32 %v1439, 7
        %v1441 = vsub.s32 %v1438, %v1440
        %v1442 = vrot.slane %v1434, %v1441
        %v1444 = vunpack.c.l.s4 1983009808
        %v1445 = vunpack.c.0.s8 %v1444
        %v1446 = vlaneseq
        %v1447 = vshrl.u32 %v1446, 7
        %v1448 = vsub.s32 %v1445, %v1447
        %v1449 = vrot.slane %v1435, %v1448
        %v1450 = vcombine.low %v1426, %v1442
        %v1451 = vcombine.high %v1426, %v1442
        %v1453 = vunpack.c.l.s4 1934713408
        %v1454 = vunpack.c.0.s8 %v1453
        %v1455 = vlaneseq
        %v1456 = vshrl.u32 %v1455, 7
        %v1457 = vsub.s32 %v1454, %v1456
        %v1458 = vrot.slane %v1450, %v1457
        %v1460 = vunpack.c.l.s4 1934713408
        %v1461 = vunpack.c.0.s8 %v1460
        %v1462 = vlaneseq
        %v1463 = vshrl.u32 %v1462, 7
        %v1464 = vsub.s32 %v1461, %v1463
        %v1465 = vrot.slane %v1451, %v1464
        %v1466 = vcombine.low %v1433, %v1449
        %v1467 = vcombine.high %v1433, %v1449
        %v1469 = vunpack.c.l.s4 1934713408
        %v1470 = vunpack.c.0.s8 %v1469
        %v1471 = vlaneseq
        %v1472 = vshrl.u32 %v1471, 7
        %v1473 = vsub.s32 %v1470, %v1472
        %v1474 = vrot.slane %v1466, %v1473
        %v1476 = vunpack.c.l.s4 1934713408
        %v1477 = vunpack.c.0.s8 %v1476
        %v1478 = vlaneseq
        %v1479 = vshrl.u32 %v1478, 7
        %v1480 = vsub.s32 %v1477, %v1479
        %v1481 = vrot.slane %v1467, %v1480
        %v1482 = vcombine.high %v1458, 0
        %v1483 = vcombine.high %v1465, 0
        %v1484 = vcombine.high %v1474, 0
        %v1485 = vcombine.high %v1481, 0
        %1486 = vxpose.xlu0.c.b16.start [1/8] %v1390, 128
        %1487 = vxpose.xlu0.c.b16.cont [2/8] 0, 128
        %1488 = vxpose.xlu0.c.b16.cont [3/8] 0, 128
        %1489 = vxpose.xlu0.c.b16.cont [4/8] 0, 128
        %1490 = vxpose.xlu0.c.b16.cont [5/8] 0, 128
        %1491 = vxpose.xlu0.c.b16.cont [6/8] 0, 128
        %1492 = vxpose.xlu0.c.b16.cont [7/8] 0, 128
        %1493 = vxpose.xlu0.c.b16.end [8/8] 0, 128
        %v1494 = vpop.trf.xlu0
        %v1495 = vpop.trf.xlu0
        %v1496 = vpop.trf.xlu0
        %v1497 = vpop.trf.xlu0
        %v1498 = vpop.trf.xlu0
        %v1499 = vpop.trf.xlu0
        %v1500 = vpop.trf.xlu0
        %v1501 = vpop.trf.xlu0
        %1502 = vxpose.xlu0.c.b16.start [1/8] %v1458, 128
        %1503 = vxpose.xlu0.c.b16.cont [2/8] 0, 128
        %1504 = vxpose.xlu0.c.b16.cont [3/8] 0, 128
        %1505 = vxpose.xlu0.c.b16.cont [4/8] 0, 128
        %1506 = vxpose.xlu0.c.b16.cont [5/8] 0, 128
        %1507 = vxpose.xlu0.c.b16.cont [6/8] 0, 128
        %1508 = vxpose.xlu0.c.b16.cont [7/8] 0, 128
        %1509 = vxpose.xlu0.c.b16.end [8/8] 0, 128
        %v1510 = vpop.trf.xlu0
        %v1511 = vpop.trf.xlu0
        %v1512 = vpop.trf.xlu0
        %v1513 = vpop.trf.xlu0
        %v1514 = vpop.trf.xlu0
        %v1515 = vpop.trf.xlu0
        %v1516 = vpop.trf.xlu0
        %v1517 = vpop.trf.xlu0
        %1518 = vxpose.xlu0.c.b16.start [1/8] %v1414, 128
        %1519 = vxpose.xlu0.c.b16.cont [2/8] 0, 128
        %1520 = vxpose.xlu0.c.b16.cont [3/8] 0, 128
        %1521 = vxpose.xlu0.c.b16.cont [4/8] 0, 128
        %1522 = vxpose.xlu0.c.b16.cont [5/8] 0, 128
        %1523 = vxpose.xlu0.c.b16.cont [6/8] 0, 128
        %1524 = vxpose.xlu0.c.b16.cont [7/8] 0, 128
        %1525 = vxpose.xlu0.c.b16.end [8/8] 0, 128
        %v1526 = vpop.trf.xlu0
        %v1527 = vpop.trf.xlu0
        %v1528 = vpop.trf.xlu0
        %v1529 = vpop.trf.xlu0
        %v1530 = vpop.trf.xlu0
        %v1531 = vpop.trf.xlu0
        %v1532 = vpop.trf.xlu0
        %v1533 = vpop.trf.xlu0
        %1534 = vxpose.xlu0.c.b16.start [1/8] %v1482, 128
        %1535 = vxpose.xlu0.c.b16.cont [2/8] 0, 128
        %1536 = vxpose.xlu0.c.b16.cont [3/8] 0, 128
        %1537 = vxpose.xlu0.c.b16.cont [4/8] 0, 128
        %1538 = vxpose.xlu0.c.b16.cont [5/8] 0, 128
        %1539 = vxpose.xlu0.c.b16.cont [6/8] 0, 128
        %1540 = vxpose.xlu0.c.b16.cont [7/8] 0, 128
        %1541 = vxpose.xlu0.c.b16.end [8/8] 0, 128
        %v1542 = vpop.trf.xlu0
        %v1543 = vpop.trf.xlu0
        %v1544 = vpop.trf.xlu0
        %v1545 = vpop.trf.xlu0
        %v1546 = vpop.trf.xlu0
        %v1547 = vpop.trf.xlu0
        %v1548 = vpop.trf.xlu0
        %v1549 = vpop.trf.xlu0
        %1550 = vxpose.xlu0.c.b16.start [1/8] %v1397, 128
        %1551 = vxpose.xlu0.c.b16.cont [2/8] 0, 128
        %1552 = vxpose.xlu0.c.b16.cont [3/8] 0, 128
        %1553 = vxpose.xlu0.c.b16.cont [4/8] 0, 128
        %1554 = vxpose.xlu0.c.b16.cont [5/8] 0, 128
        %1555 = vxpose.xlu0.c.b16.cont [6/8] 0, 128
        %1556 = vxpose.xlu0.c.b16.cont [7/8] 0, 128
        %1557 = vxpose.xlu0.c.b16.end [8/8] 0, 128
        %v1558 = vpop.trf.xlu0
        %v1559 = vpop.trf.xlu0
        %v1560 = vpop.trf.xlu0
        %v1561 = vpop.trf.xlu0
        %v1562 = vpop.trf.xlu0
        %v1563 = vpop.trf.xlu0
        %v1564 = vpop.trf.xlu0
        %v1565 = vpop.trf.xlu0
        %1566 = vxpose.xlu0.c.b16.start [1/8] %v1465, 128
        %1567 = vxpose.xlu0.c.b16.cont [2/8] 0, 128
        %1568 = vxpose.xlu0.c.b16.cont [3/8] 0, 128
        %1569 = vxpose.xlu0.c.b16.cont [4/8] 0, 128
        %1570 = vxpose.xlu0.c.b16.cont [5/8] 0, 128
        %1571 = vxpose.xlu0.c.b16.cont [6/8] 0, 128
        %1572 = vxpose.xlu0.c.b16.cont [7/8] 0, 128
        %1573 = vxpose.xlu0.c.b16.end [8/8] 0, 128
        %v1574 = vpop.trf.xlu0
        %v1575 = vpop.trf.xlu0
        %v1576 = vpop.trf.xlu0
        %v1577 = vpop.trf.xlu0
        %v1578 = vpop.trf.xlu0
        %v1579 = vpop.trf.xlu0
        %v1580 = vpop.trf.xlu0
        %v1581 = vpop.trf.xlu0
        %1582 = vxpose.xlu0.c.b16.start [1/8] %v1415, 128
        %1583 = vxpose.xlu0.c.b16.cont [2/8] 0, 128
        %1584 = vxpose.xlu0.c.b16.cont [3/8] 0, 128
        %1585 = vxpose.xlu0.c.b16.cont [4/8] 0, 128
        %1586 = vxpose.xlu0.c.b16.cont [5/8] 0, 128
        %1587 = vxpose.xlu0.c.b16.cont [6/8] 0, 128
        %1588 = vxpose.xlu0.c.b16.cont [7/8] 0, 128
        %1589 = vxpose.xlu0.c.b16.end [8/8] 0, 128
        %v1590 = vpop.trf.xlu0
        %v1591 = vpop.trf.xlu0
        %v1592 = vpop.trf.xlu0
        %v1593 = vpop.trf.xlu0
        %v1594 = vpop.trf.xlu0
        %v1595 = vpop.trf.xlu0
        %v1596 = vpop.trf.xlu0
        %v1597 = vpop.trf.xlu0
        %1598 = vxpose.xlu0.c.b16.start [1/8] %v1483, 128
        %1599 = vxpose.xlu0.c.b16.cont [2/8] 0, 128
        %1600 = vxpose.xlu0.c.b16.cont [3/8] 0, 128
        %1601 = vxpose.xlu0.c.b16.cont [4/8] 0, 128
        %1602 = vxpose.xlu0.c.b16.cont [5/8] 0, 128
        %1603 = vxpose.xlu0.c.b16.cont [6/8] 0, 128
        %1604 = vxpose.xlu0.c.b16.cont [7/8] 0, 128
        %1605 = vxpose.xlu0.c.b16.end [8/8] 0, 128
        %v1606 = vpop.trf.xlu0
        %v1607 = vpop.trf.xlu0
        %v1608 = vpop.trf.xlu0
        %v1609 = vpop.trf.xlu0
        %v1610 = vpop.trf.xlu0
        %v1611 = vpop.trf.xlu0
        %v1612 = vpop.trf.xlu0
        %v1613 = vpop.trf.xlu0
        %1614 = vxpose.xlu0.c.b16.start [1/8] %v1406, 128
        %1615 = vxpose.xlu0.c.b16.cont [2/8] 0, 128
        %1616 = vxpose.xlu0.c.b16.cont [3/8] 0, 128
        %1617 = vxpose.xlu0.c.b16.cont [4/8] 0, 128
        %1618 = vxpose.xlu0.c.b16.cont [5/8] 0, 128
        %1619 = vxpose.xlu0.c.b16.cont [6/8] 0, 128
        %1620 = vxpose.xlu0.c.b16.cont [7/8] 0, 128
        %1621 = vxpose.xlu0.c.b16.end [8/8] 0, 128
        %v1622 = vpop.trf.xlu0
        %v1623 = vpop.trf.xlu0
        %v1624 = vpop.trf.xlu0
        %v1625 = vpop.trf.xlu0
        %v1626 = vpop.trf.xlu0
        %v1627 = vpop.trf.xlu0
        %v1628 = vpop.trf.xlu0
        %v1629 = vpop.trf.xlu0
        %1630 = vxpose.xlu0.c.b16.start [1/8] %v1474, 128
        %1631 = vxpose.xlu0.c.b16.cont [2/8] 0, 128
        %1632 = vxpose.xlu0.c.b16.cont [3/8] 0, 128
        %1633 = vxpose.xlu0.c.b16.cont [4/8] 0, 128
        %1634 = vxpose.xlu0.c.b16.cont [5/8] 0, 128
        %1635 = vxpose.xlu0.c.b16.cont [6/8] 0, 128
        %1636 = vxpose.xlu0.c.b16.cont [7/8] 0, 128
        %1637 = vxpose.xlu0.c.b16.end [8/8] 0, 128
        %v1638 = vpop.trf.xlu0
        %v1639 = vpop.trf.xlu0
        %v1640 = vpop.trf.xlu0
        %v1641 = vpop.trf.xlu0
        %v1642 = vpop.trf.xlu0
        %v1643 = vpop.trf.xlu0
        %v1644 = vpop.trf.xlu0
        %v1645 = vpop.trf.xlu0
        %1646 = vxpose.xlu0.c.b16.start [1/8] %v1416, 128
        %1647 = vxpose.xlu0.c.b16.cont [2/8] 0, 128
        %1648 = vxpose.xlu0.c.b16.cont [3/8] 0, 128
        %1649 = vxpose.xlu0.c.b16.cont [4/8] 0, 128
        %1650 = vxpose.xlu0.c.b16.cont [5/8] 0, 128
        %1651 = vxpose.xlu0.c.b16.cont [6/8] 0, 128
        %1652 = vxpose.xlu0.c.b16.cont [7/8] 0, 128
        %1653 = vxpose.xlu0.c.b16.end [8/8] 0, 128
        %v1654 = vpop.trf.xlu0
        %v1655 = vpop.trf.xlu0
        %v1656 = vpop.trf.xlu0
        %v1657 = vpop.trf.xlu0
        %v1658 = vpop.trf.xlu0
        %v1659 = vpop.trf.xlu0
        %v1660 = vpop.trf.xlu0
        %v1661 = vpop.trf.xlu0
        %1662 = vxpose.xlu0.c.b16.start [1/8] %v1484, 128
        %1663 = vxpose.xlu0.c.b16.cont [2/8] 0, 128
        %1664 = vxpose.xlu0.c.b16.cont [3/8] 0, 128
        %1665 = vxpose.xlu0.c.b16.cont [4/8] 0, 128
        %1666 = vxpose.xlu0.c.b16.cont [5/8] 0, 128
        %1667 = vxpose.xlu0.c.b16.cont [6/8] 0, 128
        %1668 = vxpose.xlu0.c.b16.cont [7/8] 0, 128
        %1669 = vxpose.xlu0.c.b16.end [8/8] 0, 128
        %v1670 = vpop.trf.xlu0
        %v1671 = vpop.trf.xlu0
        %v1672 = vpop.trf.xlu0
        %v1673 = vpop.trf.xlu0
        %v1674 = vpop.trf.xlu0
        %v1675 = vpop.trf.xlu0
        %v1676 = vpop.trf.xlu0
        %v1677 = vpop.trf.xlu0
        %1678 = vxpose.xlu0.c.b16.start [1/8] %v1413, 128
        %1679 = vxpose.xlu0.c.b16.cont [2/8] 0, 128
        %1680 = vxpose.xlu0.c.b16.cont [3/8] 0, 128
        %1681 = vxpose.xlu0.c.b16.cont [4/8] 0, 128
        %1682 = vxpose.xlu0.c.b16.cont [5/8] 0, 128
        %1683 = vxpose.xlu0.c.b16.cont [6/8] 0, 128
        %1684 = vxpose.xlu0.c.b16.cont [7/8] 0, 128
        %1685 = vxpose.xlu0.c.b16.end [8/8] 0, 128
        %v1686 = vpop.trf.xlu0
        %v1687 = vpop.trf.xlu0
        %v1688 = vpop.trf.xlu0
        %v1689 = vpop.trf.xlu0
        %v1690 = vpop.trf.xlu0
        %v1691 = vpop.trf.xlu0
        %v1692 = vpop.trf.xlu0
        %v1693 = vpop.trf.xlu0
        %1694 = vxpose.xlu0.c.b16.start [1/8] %v1481, 128
        %1695 = vxpose.xlu0.c.b16.cont [2/8] 0, 128
        %1696 = vxpose.xlu0.c.b16.cont [3/8] 0, 128
        %1697 = vxpose.xlu0.c.b16.cont [4/8] 0, 128
        %1698 = vxpose.xlu0.c.b16.cont [5/8] 0, 128
        %1699 = vxpose.xlu0.c.b16.cont [6/8] 0, 128
        %1700 = vxpose.xlu0.c.b16.cont [7/8] 0, 128
        %1701 = vxpose.xlu0.c.b16.end [8/8] 0, 128
        %v1702 = vpop.trf.xlu0
        %v1703 = vpop.trf.xlu0
        %v1704 = vpop.trf.xlu0
        %v1705 = vpop.trf.xlu0
        %v1706 = vpop.trf.xlu0
        %v1707 = vpop.trf.xlu0
        %v1708 = vpop.trf.xlu0
        %v1709 = vpop.trf.xlu0
        %1710 = vxpose.xlu0.c.b16.start [1/8] %v1417, 128
        %1711 = vxpose.xlu0.c.b16.cont [2/8] 0, 128
        %1712 = vxpose.xlu0.c.b16.cont [3/8] 0, 128
        %1713 = vxpose.xlu0.c.b16.cont [4/8] 0, 128
        %1714 = vxpose.xlu0.c.b16.cont [5/8] 0, 128
        %1715 = vxpose.xlu0.c.b16.cont [6/8] 0, 128
        %1716 = vxpose.xlu0.c.b16.cont [7/8] 0, 128
        %1717 = vxpose.xlu0.c.b16.end [8/8] 0, 128
        %v1718 = vpop.trf.xlu0
        %v1719 = vpop.trf.xlu0
        %v1720 = vpop.trf.xlu0
        %v1721 = vpop.trf.xlu0
        %v1722 = vpop.trf.xlu0
        %v1723 = vpop.trf.xlu0
        %v1724 = vpop.trf.xlu0
        %v1725 = vpop.trf.xlu0
        %1726 = vxpose.xlu0.c.b16.start [1/8] %v1485, 128
        %1727 = vxpose.xlu0.c.b16.cont [2/8] 0, 128
        %1728 = vxpose.xlu0.c.b16.cont [3/8] 0, 128
        %1729 = vxpose.xlu0.c.b16.cont [4/8] 0, 128
        %1730 = vxpose.xlu0.c.b16.cont [5/8] 0, 128
        %1731 = vxpose.xlu0.c.b16.cont [6/8] 0, 128
        %1732 = vxpose.xlu0.c.b16.cont [7/8] 0, 128
        %1733 = vxpose.xlu0.c.b16.end [8/8] 0, 128
        %v1734 = vpop.trf.xlu0
        %v1735 = vpop.trf.xlu0
        %v1736 = vpop.trf.xlu0
        %v1737 = vpop.trf.xlu0
        %v1738 = vpop.trf.xlu0
        %v1739 = vpop.trf.xlu0
        %v1740 = vpop.trf.xlu0
        %v1741 = vpop.trf.xlu0
        %v1742 = vcombine.low %v1494, %v1558
        %v1744 = vunpack.c.l.s4 1983009808
        %v1745 = vunpack.c.0.s8 %v1744
        %v1746 = vlaneseq
        %v1747 = vshrl.u32 %v1746, 7
        %v1748 = vsub.s32 %v1745, %v1747
        %v1749 = vrot.slane %v1742, %v1748
        %v1750 = vcombine.low %v1526, %v1590
        %v1752 = vunpack.c.l.s4 1983009808
        %v1753 = vunpack.c.0.s8 %v1752
        %v1754 = vlaneseq
        %v1755 = vshrl.u32 %v1754, 7
        %v1756 = vsub.s32 %v1753, %v1755
        %v1757 = vrot.slane %v1750, %v1756
        %v1758 = vcombine.low %v1622, %v1686
        %v1760 = vunpack.c.l.s4 1983009808
        %v1761 = vunpack.c.0.s8 %v1760
        %v1762 = vlaneseq
        %v1763 = vshrl.u32 %v1762, 7
        %v1764 = vsub.s32 %v1761, %v1763
        %v1765 = vrot.slane %v1758, %v1764
        %v1766 = vcombine.low %v1654, %v1718
        %v1768 = vunpack.c.l.s4 1983009808
        %v1769 = vunpack.c.0.s8 %v1768
        %v1770 = vlaneseq
        %v1771 = vshrl.u32 %v1770, 7
        %v1772 = vsub.s32 %v1769, %v1771
        %v1773 = vrot.slane %v1766, %v1772
        %v1774 = vcombine.low %v1749, %v1757
        %v1776 = vunpack.c.l.s4 1934713408
        %v1777 = vunpack.c.0.s8 %v1776
        %v1778 = vlaneseq
        %v1779 = vshrl.u32 %v1778, 7
        %v1780 = vsub.s32 %v1777, %v1779
        %v1781 = vrot.slane %v1774, %v1780
        %v1782 = vcombine.low %v1765, %v1773
        %v1784 = vunpack.c.l.s4 1934713408
        %v1785 = vunpack.c.0.s8 %v1784
        %v1786 = vlaneseq
        %v1787 = vshrl.u32 %v1786, 7
        %v1788 = vsub.s32 %v1785, %v1787
        %v1789 = vrot.slane %v1782, %v1788
        %v1790 = vcombine.low %v1781, %v1789
        %v1791 = vcombine.low %v1510, %v1574
        %v1793 = vunpack.c.l.s4 1983009808
        %v1794 = vunpack.c.0.s8 %v1793
        %v1795 = vlaneseq
        %v1796 = vshrl.u32 %v1795, 7
        %v1797 = vsub.s32 %v1794, %v1796
        %v1798 = vrot.slane %v1791, %v1797
        %v1799 = vcombine.low %v1542, %v1606
        %v1801 = vunpack.c.l.s4 1983009808
        %v1802 = vunpack.c.0.s8 %v1801
        %v1803 = vlaneseq
        %v1804 = vshrl.u32 %v1803, 7
        %v1805 = vsub.s32 %v1802, %v1804
        %v1806 = vrot.slane %v1799, %v1805
        %v1807 = vcombine.low %v1638, %v1702
        %v1809 = vunpack.c.l.s4 1983009808
        %v1810 = vunpack.c.0.s8 %v1809
        %v1811 = vlaneseq
        %v1812 = vshrl.u32 %v1811, 7
        %v1813 = vsub.s32 %v1810, %v1812
        %v1814 = vrot.slane %v1807, %v1813
        %v1815 = vcombine.low %v1670, %v1734
        %v1817 = vunpack.c.l.s4 1983009808
        %v1818 = vunpack.c.0.s8 %v1817
        %v1819 = vlaneseq
        %v1820 = vshrl.u32 %v1819, 7
        %v1821 = vsub.s32 %v1818, %v1820
        %v1822 = vrot.slane %v1815, %v1821
        %v1823 = vcombine.low %v1798, %v1806
        %v1825 = vunpack.c.l.s4 1934713408
        %v1826 = vunpack.c.0.s8 %v1825
        %v1827 = vlaneseq
        %v1828 = vshrl.u32 %v1827, 7
        %v1829 = vsub.s32 %v1826, %v1828
        %v1830 = vrot.slane %v1823, %v1829
        %v1831 = vcombine.low %v1814, %v1822
        %v1833 = vunpack.c.l.s4 1934713408
        %v1834 = vunpack.c.0.s8 %v1833
        %v1835 = vlaneseq
        %v1836 = vshrl.u32 %v1835, 7
        %v1837 = vsub.s32 %v1834, %v1836
        %v1838 = vrot.slane %v1831, %v1837
        %v1839 = vcombine.low %v1830, %v1838
        %v1842 = vpack.i.b16 %v1839, %v1790
        %v1844 = vshrl.u32 %v1790, 16
        %v1845 = vshrl.u32 %v1839, 16
        %v1846 = vpack.i.b16 %v1845, %v1844
        %vm1848 = vcmask 130048
        %v1850 = vsel %vm1848, %v1186, 0
        %1852 = vmatprep.subr.bf16.mxu0 0
        %1853 = vmatpush1.bf16.msra.mxu0 0
        %1854 = vmatprep.subr.bf16.mxu0 0
        %1855 = vmatpush1.bf16.msra.mxu0 0
        %1856 = vmatprep.subr.bf16.mxu0 0
        %1857 = vmatpush1.bf16.msra.mxu0 0
        %1858 = vmatprep.subr.bf16.mxu0 0
        %1859 = vmatpush1.bf16.msra.mxu0 0
        %1860 = vmatprep.subr.bf16.mxu0 0
        %1861 = vmatpush1.bf16.msra.mxu0 0
        %1862 = vmatprep.subr.bf16.mxu0 0
        %1863 = vmatpush1.bf16.msra.mxu0 0
        %1864 = vmatprep.subr.bf16.mxu0 0
        %1865 = vmatpush1.bf16.msra.mxu0 0
        %1866 = vmatprep.subr.bf16.mxu0 0
        %1867 = vmatpush1.bf16.msra.mxu0 %v1842
        %1868 = vmatprep.subr.bf16.mxu0 0
        %1869 = vmatpush2.bf16.msra.mxu0 0
        %1870 = vmatprep.subr.bf16.mxu0 0
        %1871 = vmatpush2.bf16.msra.mxu0 0
        %1872 = vmatprep.subr.bf16.mxu0 0
        %1873 = vmatpush2.bf16.msra.mxu0 0
        %1874 = vmatprep.subr.bf16.mxu0 0
        %1875 = vmatpush2.bf16.msra.mxu0 0
        %1876 = vmatprep.subr.bf16.mxu0 0
        %1877 = vmatpush2.bf16.msra.mxu0 0
        %1878 = vmatprep.subr.bf16.mxu0 0
        %1879 = vmatpush2.bf16.msra.mxu0 0
        %1880 = vmatprep.subr.bf16.mxu0 0
        %1881 = vmatpush2.bf16.msra.mxu0 0
        %1882 = vmatprep.subr.bf16.mxu0 0
        %1883 = vmatpush2.bf16.msra.mxu0 0
        %1884 = vmatprep.mubr.bf16.mxu0 0
        %1885 = vmatmul.mubr.bf16.gmra.mxu0 %v1850
        %v1886 = vpop.f32.mrf.mxu0
        %v1887 = vadd.f32 0.0, %v1886
        %v1888 = vpop.f32.mrf.mxu0
        %v1889 = vpop.f32.mrf.mxu0
        %v1890 = vpop.f32.mrf.mxu0
        %1891 = vdwg.mxu0
        %v1893 = vsel %vm1848, %v1189, 0
        %1895 = vmatprep.subr.bf16.mxu0 0
        %1896 = vmatpush1.bf16.msra.mxu0 0
        %1897 = vmatprep.subr.bf16.mxu0 0
        %1898 = vmatpush1.bf16.msra.mxu0 0
        %1899 = vmatprep.subr.bf16.mxu0 0
        %1900 = vmatpush1.bf16.msra.mxu0 0
        %1901 = vmatprep.subr.bf16.mxu0 0
        %1902 = vmatpush1.bf16.msra.mxu0 0
        %1903 = vmatprep.subr.bf16.mxu0 0
        %1904 = vmatpush1.bf16.msra.mxu0 0
        %1905 = vmatprep.subr.bf16.mxu0 0
        %1906 = vmatpush1.bf16.msra.mxu0 0
        %1907 = vmatprep.subr.bf16.mxu0 0
        %1908 = vmatpush1.bf16.msra.mxu0 0
        %1909 = vmatprep.subr.bf16.mxu0 0
        %1910 = vmatpush1.bf16.msra.mxu0 %v1846
        %1911 = vmatprep.subr.bf16.mxu0 0
        %1912 = vmatpush2.bf16.msra.mxu0 0
        %1913 = vmatprep.subr.bf16.mxu0 0
        %1914 = vmatpush2.bf16.msra.mxu0 0
        %1915 = vmatprep.subr.bf16.mxu0 0
        %1916 = vmatpush2.bf16.msra.mxu0 0
        %1917 = vmatprep.subr.bf16.mxu0 0
        %1918 = vmatpush2.bf16.msra.mxu0 0
        %1919 = vmatprep.subr.bf16.mxu0 0
        %1920 = vmatpush2.bf16.msra.mxu0 0
        %1921 = vmatprep.subr.bf16.mxu0 0
        %1922 = vmatpush2.bf16.msra.mxu0 0
        %1923 = vmatprep.subr.bf16.mxu0 0
        %1924 = vmatpush2.bf16.msra.mxu0 0
        %1925 = vmatprep.subr.bf16.mxu0 0
        %1926 = vmatpush2.bf16.msra.mxu0 0
        %1927 = vmatprep.mubr.bf16.mxu0 0
        %1928 = vmatmul.mubr.bf16.gmra.mxu0 %v1893
        %v1929 = vpop.f32.mrf.mxu0
        %v1930 = vadd.f32 0.0, %v1929
        %v1931 = vpop.f32.mrf.mxu0
        %v1932 = vpop.f32.mrf.mxu0
        %v1933 = vpop.f32.mrf.mxu0
        %1934 = vdwg.mxu0
        %v1935 = vmul.f32 %v1887, 0.25
        %v1936 = vmul.f32 %v1930, 0.25
        %v1938 = vlaneseq
        %v1939 = vshrl.u32 %v1938, 7
        %v1940 = vsub.s32 0, %v1939
        %v1941 = vrot.slane %v705, %v1940
        %v1943 = vadd.f32 %v1935, %v1941
        %v1944 = vadd.f32 %v1936, %v1941
        %vm1945 = vcmask 64512
        %v1946 = vsel %vm1945, %v1943, -inf
        %1947 = vmax.xlane.f32.xlu0 %v1946
        %v1948 = vpop.xlane.xlu0 %1947
        %v1949 = vsel %vm1945, %v1944, -inf
        %1950 = vmax.xlane.f32.xlu0 %v1949
        %v1951 = vpop.xlane.xlu0 %1950
        %v1952 = vsub.f32 %v1943, %v1948
        %v1953 = vsub.f32 %v1944, %v1951
        %v1954 = vmul.f32 %v1952, 1.442695
        %v1955 = vpow.pop %v1954
        %v1956 = vmul.f32 %v1953, 1.442695
        %v1957 = vpow.pop %v1956
        %v1958 = vsel %vm1945, %v1955, 0.0
        %1959 = vadd.xlane.f32.xlu0 %v1958
        %v1960 = vpop.xlane.xlu0 %1959
        %v1961 = vsel %vm1945, %v1957, 0.0
        %1962 = vadd.xlane.f32.xlu0 %v1961
        %v1963 = vpop.xlane.xlu0 %1962
        %v1964 = vrcp.pop %v1960
        %v1965 = vrcp.pop %v1963
        %v1966 = vmul.f32 %v1955, %v1964
        %v1967 = vmul.f32 %v1957, %v1965
        %v1968 = vpack.c.bf16 %v1966, %v1966
        %v1969 = vpack.c.bf16 %v1967, %v1967
        %1970 = vxpose.xlu0.c.b16.start [1/8] %v1128, 128
        %1971 = vxpose.xlu0.c.b16.cont [2/8] 0, 128
        %1972 = vxpose.xlu0.c.b16.cont [3/8] 0, 128
        %1973 = vxpose.xlu0.c.b16.cont [4/8] 0, 128
        %1974 = vxpose.xlu0.c.b16.cont [5/8] 0, 128
        %1975 = vxpose.xlu0.c.b16.cont [6/8] 0, 128
        %1976 = vxpose.xlu0.c.b16.cont [7/8] 0, 128
        %1977 = vxpose.xlu0.c.b16.end [8/8] 0, 128
        %v1978 = vpop.trf.xlu0
        %v1979 = vpop.trf.xlu0
        %v1980 = vpop.trf.xlu0
        %v1981 = vpop.trf.xlu0
        %v1982 = vpop.trf.xlu0
        %v1983 = vpop.trf.xlu0
        %v1984 = vpop.trf.xlu0
        %v1985 = vpop.trf.xlu0
        %1986 = vxpose.xlu0.c.b16.start [1/8] %v1129, 128
        %1987 = vxpose.xlu0.c.b16.cont [2/8] 0, 128
        %1988 = vxpose.xlu0.c.b16.cont [3/8] 0, 128
        %1989 = vxpose.xlu0.c.b16.cont [4/8] 0, 128
        %1990 = vxpose.xlu0.c.b16.cont [5/8] 0, 128
        %1991 = vxpose.xlu0.c.b16.cont [6/8] 0, 128
        %1992 = vxpose.xlu0.c.b16.cont [7/8] 0, 128
        %1993 = vxpose.xlu0.c.b16.end [8/8] 0, 128
        %v1994 = vpop.trf.xlu0
        %v1995 = vpop.trf.xlu0
        %v1996 = vpop.trf.xlu0
        %v1997 = vpop.trf.xlu0
        %v1998 = vpop.trf.xlu0
        %v1999 = vpop.trf.xlu0
        %v2000 = vpop.trf.xlu0
        %v2001 = vpop.trf.xlu0
        %2002 = vxpose.xlu0.c.b16.start [1/8] %v1130, 128
        %2003 = vxpose.xlu0.c.b16.cont [2/8] 0, 128
        %2004 = vxpose.xlu0.c.b16.cont [3/8] 0, 128
        %2005 = vxpose.xlu0.c.b16.cont [4/8] 0, 128
        %2006 = vxpose.xlu0.c.b16.cont [5/8] 0, 128
        %2007 = vxpose.xlu0.c.b16.cont [6/8] 0, 128
        %2008 = vxpose.xlu0.c.b16.cont [7/8] 0, 128
        %2009 = vxpose.xlu0.c.b16.end [8/8] 0, 128
        %v2010 = vpop.trf.xlu0
        %v2011 = vpop.trf.xlu0
        %v2012 = vpop.trf.xlu0
        %v2013 = vpop.trf.xlu0
        %v2014 = vpop.trf.xlu0
        %v2015 = vpop.trf.xlu0
        %v2016 = vpop.trf.xlu0
        %v2017 = vpop.trf.xlu0
        %2018 = vxpose.xlu0.c.b16.start [1/8] %v1131, 128
        %2019 = vxpose.xlu0.c.b16.cont [2/8] 0, 128
        %2020 = vxpose.xlu0.c.b16.cont [3/8] 0, 128
        %2021 = vxpose.xlu0.c.b16.cont [4/8] 0, 128
        %2022 = vxpose.xlu0.c.b16.cont [5/8] 0, 128
        %2023 = vxpose.xlu0.c.b16.cont [6/8] 0, 128
        %2024 = vxpose.xlu0.c.b16.cont [7/8] 0, 128
        %2025 = vxpose.xlu0.c.b16.end [8/8] 0, 128
        %v2026 = vpop.trf.xlu0
        %v2027 = vpop.trf.xlu0
        %v2028 = vpop.trf.xlu0
        %v2029 = vpop.trf.xlu0
        %v2030 = vpop.trf.xlu0
        %v2031 = vpop.trf.xlu0
        %v2032 = vpop.trf.xlu0
        %v2033 = vpop.trf.xlu0
        %2034 = vxpose.xlu0.c.b16.start [1/8] %v1132, 128
        %2035 = vxpose.xlu0.c.b16.cont [2/8] 0, 128
        %2036 = vxpose.xlu0.c.b16.cont [3/8] 0, 128
        %2037 = vxpose.xlu0.c.b16.cont [4/8] 0, 128
        %2038 = vxpose.xlu0.c.b16.cont [5/8] 0, 128
        %2039 = vxpose.xlu0.c.b16.cont [6/8] 0, 128
        %2040 = vxpose.xlu0.c.b16.cont [7/8] 0, 128
        %2041 = vxpose.xlu0.c.b16.end [8/8] 0, 128
        %v2042 = vpop.trf.xlu0
        %v2043 = vpop.trf.xlu0
        %v2044 = vpop.trf.xlu0
        %v2045 = vpop.trf.xlu0
        %v2046 = vpop.trf.xlu0
        %v2047 = vpop.trf.xlu0
        %v2048 = vpop.trf.xlu0
        %v2049 = vpop.trf.xlu0
        %2050 = vxpose.xlu0.c.b16.start [1/8] %v1133, 128
        %2051 = vxpose.xlu0.c.b16.cont [2/8] 0, 128
        %2052 = vxpose.xlu0.c.b16.cont [3/8] 0, 128
        %2053 = vxpose.xlu0.c.b16.cont [4/8] 0, 128
        %2054 = vxpose.xlu0.c.b16.cont [5/8] 0, 128
        %2055 = vxpose.xlu0.c.b16.cont [6/8] 0, 128
        %2056 = vxpose.xlu0.c.b16.cont [7/8] 0, 128
        %2057 = vxpose.xlu0.c.b16.end [8/8] 0, 128
        %v2058 = vpop.trf.xlu0
        %v2059 = vpop.trf.xlu0
        %v2060 = vpop.trf.xlu0
        %v2061 = vpop.trf.xlu0
        %v2062 = vpop.trf.xlu0
        %v2063 = vpop.trf.xlu0
        %v2064 = vpop.trf.xlu0
        %v2065 = vpop.trf.xlu0
        %2066 = vxpose.xlu0.c.b16.start [1/8] %v1134, 128
        %2067 = vxpose.xlu0.c.b16.cont [2/8] 0, 128
        %2068 = vxpose.xlu0.c.b16.cont [3/8] 0, 128
        %2069 = vxpose.xlu0.c.b16.cont [4/8] 0, 128
        %2070 = vxpose.xlu0.c.b16.cont [5/8] 0, 128
        %2071 = vxpose.xlu0.c.b16.cont [6/8] 0, 128
        %2072 = vxpose.xlu0.c.b16.cont [7/8] 0, 128
        %2073 = vxpose.xlu0.c.b16.end [8/8] 0, 128
        %v2074 = vpop.trf.xlu0
        %v2075 = vpop.trf.xlu0
        %v2076 = vpop.trf.xlu0
        %v2077 = vpop.trf.xlu0
        %v2078 = vpop.trf.xlu0
        %v2079 = vpop.trf.xlu0
        %v2080 = vpop.trf.xlu0
        %v2081 = vpop.trf.xlu0
        %2082 = vxpose.xlu0.c.b16.start [1/8] %v1135, 128
        %2083 = vxpose.xlu0.c.b16.cont [2/8] 0, 128
        %2084 = vxpose.xlu0.c.b16.cont [3/8] 0, 128
        %2085 = vxpose.xlu0.c.b16.cont [4/8] 0, 128
        %2086 = vxpose.xlu0.c.b16.cont [5/8] 0, 128
        %2087 = vxpose.xlu0.c.b16.cont [6/8] 0, 128
        %2088 = vxpose.xlu0.c.b16.cont [7/8] 0, 128
        %2089 = vxpose.xlu0.c.b16.end [8/8] 0, 128
        %v2090 = vpop.trf.xlu0
        %v2091 = vpop.trf.xlu0
        %v2092 = vpop.trf.xlu0
        %v2093 = vpop.trf.xlu0
        %v2094 = vpop.trf.xlu0
        %v2095 = vpop.trf.xlu0
        %v2096 = vpop.trf.xlu0
        %v2097 = vpop.trf.xlu0
        %v2100 = vpack.i.b16 %v1994, %v1978
        %v2102 = vshrl.u32 %v1978, 16
        %v2103 = vshrl.u32 %v1994, 16
        %v2104 = vpack.i.b16 %v2103, %v2102
        %v2108 = vpack.i.b16 %v2026, %v2010
        %v2110 = vshrl.u32 %v2010, 16
        %v2111 = vshrl.u32 %v2026, 16
        %v2112 = vpack.i.b16 %v2111, %v2110
        %v2116 = vpack.i.b16 %v2058, %v2042
        %v2118 = vshrl.u32 %v2042, 16
        %v2119 = vshrl.u32 %v2058, 16
        %v2120 = vpack.i.b16 %v2119, %v2118
        %v2124 = vpack.i.b16 %v2090, %v2074
        %v2126 = vshrl.u32 %v2074, 16
        %v2127 = vshrl.u32 %v2090, 16
        %v2128 = vpack.i.b16 %v2127, %v2126
        %v2130 = vcombine.low %v2100, %v2116
        %v2131 = vcombine.high %v2100, %v2116
        %v2133 = vunpack.c.l.s4 1983009808
        %v2134 = vunpack.c.0.s8 %v2133
        %v2135 = vlaneseq
        %v2136 = vshrl.u32 %v2135, 7
        %v2137 = vsub.s32 %v2134, %v2136
        %v2138 = vrot.slane %v2130, %v2137
        %v2140 = vunpack.c.l.s4 1983009808
        %v2141 = vunpack.c.0.s8 %v2140
        %v2142 = vlaneseq
        %v2143 = vshrl.u32 %v2142, 7
        %v2144 = vsub.s32 %v2141, %v2143
        %v2145 = vrot.slane %v2131, %v2144
        %v2146 = vcombine.low %v2108, %v2124
        %v2147 = vcombine.high %v2108, %v2124
        %v2149 = vunpack.c.l.s4 1983009808
        %v2150 = vunpack.c.0.s8 %v2149
        %v2151 = vlaneseq
        %v2152 = vshrl.u32 %v2151, 7
        %v2153 = vsub.s32 %v2150, %v2152
        %v2154 = vrot.slane %v2146, %v2153
        %v2156 = vunpack.c.l.s4 1983009808
        %v2157 = vunpack.c.0.s8 %v2156
        %v2158 = vlaneseq
        %v2159 = vshrl.u32 %v2158, 7
        %v2160 = vsub.s32 %v2157, %v2159
        %v2161 = vrot.slane %v2147, %v2160
        %v2162 = vcombine.low %v2138, %v2154
        %v2163 = vcombine.high %v2138, %v2154
        %v2165 = vunpack.c.l.s4 1934713408
        %v2166 = vunpack.c.0.s8 %v2165
        %v2167 = vlaneseq
        %v2168 = vshrl.u32 %v2167, 7
        %v2169 = vsub.s32 %v2166, %v2168
        %v2170 = vrot.slane %v2162, %v2169
        %v2172 = vunpack.c.l.s4 1934713408
        %v2173 = vunpack.c.0.s8 %v2172
        %v2174 = vlaneseq
        %v2175 = vshrl.u32 %v2174, 7
        %v2176 = vsub.s32 %v2173, %v2175
        %v2177 = vrot.slane %v2163, %v2176
        %v2178 = vcombine.low %v2145, %v2161
        %v2179 = vcombine.high %v2145, %v2161
        %v2181 = vunpack.c.l.s4 1934713408
        %v2182 = vunpack.c.0.s8 %v2181
        %v2183 = vlaneseq
        %v2184 = vshrl.u32 %v2183, 7
        %v2185 = vsub.s32 %v2182, %v2184
        %v2186 = vrot.slane %v2178, %v2185
        %v2188 = vunpack.c.l.s4 1934713408
        %v2189 = vunpack.c.0.s8 %v2188
        %v2190 = vlaneseq
        %v2191 = vshrl.u32 %v2190, 7
        %v2192 = vsub.s32 %v2189, %v2191
        %v2193 = vrot.slane %v2179, %v2192
        %v2194 = vcombine.high %v2170, 0
        %v2195 = vcombine.high %v2177, 0
        %v2196 = vcombine.high %v2186, 0
        %v2197 = vcombine.high %v2193, 0
        %v2198 = vcombine.low %v2104, %v2120
        %v2199 = vcombine.high %v2104, %v2120
        %v2201 = vunpack.c.l.s4 1983009808
        %v2202 = vunpack.c.0.s8 %v2201
        %v2203 = vlaneseq
        %v2204 = vshrl.u32 %v2203, 7
        %v2205 = vsub.s32 %v2202, %v2204
        %v2206 = vrot.slane %v2198, %v2205
        %v2208 = vunpack.c.l.s4 1983009808
        %v2209 = vunpack.c.0.s8 %v2208
        %v2210 = vlaneseq
        %v2211 = vshrl.u32 %v2210, 7
        %v2212 = vsub.s32 %v2209, %v2211
        %v2213 = vrot.slane %v2199, %v2212
        %v2214 = vcombine.low %v2112, %v2128
        %v2215 = vcombine.high %v2112, %v2128
        %v2217 = vunpack.c.l.s4 1983009808
        %v2218 = vunpack.c.0.s8 %v2217
        %v2219 = vlaneseq
        %v2220 = vshrl.u32 %v2219, 7
        %v2221 = vsub.s32 %v2218, %v2220
        %v2222 = vrot.slane %v2214, %v2221
        %v2224 = vunpack.c.l.s4 1983009808
        %v2225 = vunpack.c.0.s8 %v2224
        %v2226 = vlaneseq
        %v2227 = vshrl.u32 %v2226, 7
        %v2228 = vsub.s32 %v2225, %v2227
        %v2229 = vrot.slane %v2215, %v2228
        %v2230 = vcombine.low %v2206, %v2222
        %v2231 = vcombine.high %v2206, %v2222
        %v2233 = vunpack.c.l.s4 1934713408
        %v2234 = vunpack.c.0.s8 %v2233
        %v2235 = vlaneseq
        %v2236 = vshrl.u32 %v2235, 7
        %v2237 = vsub.s32 %v2234, %v2236
        %v2238 = vrot.slane %v2230, %v2237
        %v2240 = vunpack.c.l.s4 1934713408
        %v2241 = vunpack.c.0.s8 %v2240
        %v2242 = vlaneseq
        %v2243 = vshrl.u32 %v2242, 7
        %v2244 = vsub.s32 %v2241, %v2243
        %v2245 = vrot.slane %v2231, %v2244
        %v2246 = vcombine.low %v2213, %v2229
        %v2247 = vcombine.high %v2213, %v2229
        %v2249 = vunpack.c.l.s4 1934713408
        %v2250 = vunpack.c.0.s8 %v2249
        %v2251 = vlaneseq
        %v2252 = vshrl.u32 %v2251, 7
        %v2253 = vsub.s32 %v2250, %v2252
        %v2254 = vrot.slane %v2246, %v2253
        %v2256 = vunpack.c.l.s4 1934713408
        %v2257 = vunpack.c.0.s8 %v2256
        %v2258 = vlaneseq
        %v2259 = vshrl.u32 %v2258, 7
        %v2260 = vsub.s32 %v2257, %v2259
        %v2261 = vrot.slane %v2247, %v2260
        %v2262 = vcombine.high %v2238, 0
        %v2263 = vcombine.high %v2245, 0
        %v2264 = vcombine.high %v2254, 0
        %v2265 = vcombine.high %v2261, 0
        %2266 = vxpose.xlu0.c.b16.start [1/8] %v2170, 128
        %2267 = vxpose.xlu0.c.b16.cont [2/8] 0, 128
        %2268 = vxpose.xlu0.c.b16.cont [3/8] 0, 128
        %2269 = vxpose.xlu0.c.b16.cont [4/8] 0, 128
        %2270 = vxpose.xlu0.c.b16.cont [5/8] 0, 128
        %2271 = vxpose.xlu0.c.b16.cont [6/8] 0, 128
        %2272 = vxpose.xlu0.c.b16.cont [7/8] 0, 128
        %2273 = vxpose.xlu0.c.b16.end [8/8] 0, 128
        %v2274 = vpop.trf.xlu0
        %v2275 = vpop.trf.xlu0
        %v2276 = vpop.trf.xlu0
        %v2277 = vpop.trf.xlu0
        %v2278 = vpop.trf.xlu0
        %v2279 = vpop.trf.xlu0
        %v2280 = vpop.trf.xlu0
        %v2281 = vpop.trf.xlu0
        %2282 = vxpose.xlu0.c.b16.start [1/8] %v2238, 128
        %2283 = vxpose.xlu0.c.b16.cont [2/8] 0, 128
        %2284 = vxpose.xlu0.c.b16.cont [3/8] 0, 128
        %2285 = vxpose.xlu0.c.b16.cont [4/8] 0, 128
        %2286 = vxpose.xlu0.c.b16.cont [5/8] 0, 128
        %2287 = vxpose.xlu0.c.b16.cont [6/8] 0, 128
        %2288 = vxpose.xlu0.c.b16.cont [7/8] 0, 128
        %2289 = vxpose.xlu0.c.b16.end [8/8] 0, 128
        %v2290 = vpop.trf.xlu0
        %v2291 = vpop.trf.xlu0
        %v2292 = vpop.trf.xlu0
        %v2293 = vpop.trf.xlu0
        %v2294 = vpop.trf.xlu0
        %v2295 = vpop.trf.xlu0
        %v2296 = vpop.trf.xlu0
        %v2297 = vpop.trf.xlu0
        %2298 = vxpose.xlu0.c.b16.start [1/8] %v2194, 128
        %2299 = vxpose.xlu0.c.b16.cont [2/8] 0, 128
        %2300 = vxpose.xlu0.c.b16.cont [3/8] 0, 128
        %2301 = vxpose.xlu0.c.b16.cont [4/8] 0, 128
        %2302 = vxpose.xlu0.c.b16.cont [5/8] 0, 128
        %2303 = vxpose.xlu0.c.b16.cont [6/8] 0, 128
        %2304 = vxpose.xlu0.c.b16.cont [7/8] 0, 128
        %2305 = vxpose.xlu0.c.b16.end [8/8] 0, 128
        %v2306 = vpop.trf.xlu0
        %v2307 = vpop.trf.xlu0
        %v2308 = vpop.trf.xlu0
        %v2309 = vpop.trf.xlu0
        %v2310 = vpop.trf.xlu0
        %v2311 = vpop.trf.xlu0
        %v2312 = vpop.trf.xlu0
        %v2313 = vpop.trf.xlu0
        %2314 = vxpose.xlu0.c.b16.start [1/8] %v2262, 128
        %2315 = vxpose.xlu0.c.b16.cont [2/8] 0, 128
        %2316 = vxpose.xlu0.c.b16.cont [3/8] 0, 128
        %2317 = vxpose.xlu0.c.b16.cont [4/8] 0, 128
        %2318 = vxpose.xlu0.c.b16.cont [5/8] 0, 128
        %2319 = vxpose.xlu0.c.b16.cont [6/8] 0, 128
        %2320 = vxpose.xlu0.c.b16.cont [7/8] 0, 128
        %2321 = vxpose.xlu0.c.b16.end [8/8] 0, 128
        %v2322 = vpop.trf.xlu0
        %v2323 = vpop.trf.xlu0
        %v2324 = vpop.trf.xlu0
        %v2325 = vpop.trf.xlu0
        %v2326 = vpop.trf.xlu0
        %v2327 = vpop.trf.xlu0
        %v2328 = vpop.trf.xlu0
        %v2329 = vpop.trf.xlu0
        %2330 = vxpose.xlu0.c.b16.start [1/8] %v2177, 128
        %2331 = vxpose.xlu0.c.b16.cont [2/8] 0, 128
        %2332 = vxpose.xlu0.c.b16.cont [3/8] 0, 128
        %2333 = vxpose.xlu0.c.b16.cont [4/8] 0, 128
        %2334 = vxpose.xlu0.c.b16.cont [5/8] 0, 128
        %2335 = vxpose.xlu0.c.b16.cont [6/8] 0, 128
        %2336 = vxpose.xlu0.c.b16.cont [7/8] 0, 128
        %2337 = vxpose.xlu0.c.b16.end [8/8] 0, 128
        %v2338 = vpop.trf.xlu0
        %v2339 = vpop.trf.xlu0
        %v2340 = vpop.trf.xlu0
        %v2341 = vpop.trf.xlu0
        %v2342 = vpop.trf.xlu0
        %v2343 = vpop.trf.xlu0
        %v2344 = vpop.trf.xlu0
        %v2345 = vpop.trf.xlu0
        %2346 = vxpose.xlu0.c.b16.start [1/8] %v2245, 128
        %2347 = vxpose.xlu0.c.b16.cont [2/8] 0, 128
        %2348 = vxpose.xlu0.c.b16.cont [3/8] 0, 128
        %2349 = vxpose.xlu0.c.b16.cont [4/8] 0, 128
        %2350 = vxpose.xlu0.c.b16.cont [5/8] 0, 128
        %2351 = vxpose.xlu0.c.b16.cont [6/8] 0, 128
        %2352 = vxpose.xlu0.c.b16.cont [7/8] 0, 128
        %2353 = vxpose.xlu0.c.b16.end [8/8] 0, 128
        %v2354 = vpop.trf.xlu0
        %v2355 = vpop.trf.xlu0
        %v2356 = vpop.trf.xlu0
        %v2357 = vpop.trf.xlu0
        %v2358 = vpop.trf.xlu0
        %v2359 = vpop.trf.xlu0
        %v2360 = vpop.trf.xlu0
        %v2361 = vpop.trf.xlu0
        %2362 = vxpose.xlu0.c.b16.start [1/8] %v2195, 128
        %2363 = vxpose.xlu0.c.b16.cont [2/8] 0, 128
        %2364 = vxpose.xlu0.c.b16.cont [3/8] 0, 128
        %2365 = vxpose.xlu0.c.b16.cont [4/8] 0, 128
        %2366 = vxpose.xlu0.c.b16.cont [5/8] 0, 128
        %2367 = vxpose.xlu0.c.b16.cont [6/8] 0, 128
        %2368 = vxpose.xlu0.c.b16.cont [7/8] 0, 128
        %2369 = vxpose.xlu0.c.b16.end [8/8] 0, 128
        %v2370 = vpop.trf.xlu0
        %v2371 = vpop.trf.xlu0
        %v2372 = vpop.trf.xlu0
        %v2373 = vpop.trf.xlu0
        %v2374 = vpop.trf.xlu0
        %v2375 = vpop.trf.xlu0
        %v2376 = vpop.trf.xlu0
        %v2377 = vpop.trf.xlu0
        %2378 = vxpose.xlu0.c.b16.start [1/8] %v2263, 128
        %2379 = vxpose.xlu0.c.b16.cont [2/8] 0, 128
        %2380 = vxpose.xlu0.c.b16.cont [3/8] 0, 128
        %2381 = vxpose.xlu0.c.b16.cont [4/8] 0, 128
        %2382 = vxpose.xlu0.c.b16.cont [5/8] 0, 128
        %2383 = vxpose.xlu0.c.b16.cont [6/8] 0, 128
        %2384 = vxpose.xlu0.c.b16.cont [7/8] 0, 128
        %2385 = vxpose.xlu0.c.b16.end [8/8] 0, 128
        %v2386 = vpop.trf.xlu0
        %v2387 = vpop.trf.xlu0
        %v2388 = vpop.trf.xlu0
        %v2389 = vpop.trf.xlu0
        %v2390 = vpop.trf.xlu0
        %v2391 = vpop.trf.xlu0
        %v2392 = vpop.trf.xlu0
        %v2393 = vpop.trf.xlu0
        %2394 = vxpose.xlu0.c.b16.start [1/8] %v2186, 128
        %2395 = vxpose.xlu0.c.b16.cont [2/8] 0, 128
        %2396 = vxpose.xlu0.c.b16.cont [3/8] 0, 128
        %2397 = vxpose.xlu0.c.b16.cont [4/8] 0, 128
        %2398 = vxpose.xlu0.c.b16.cont [5/8] 0, 128
        %2399 = vxpose.xlu0.c.b16.cont [6/8] 0, 128
        %2400 = vxpose.xlu0.c.b16.cont [7/8] 0, 128
        %2401 = vxpose.xlu0.c.b16.end [8/8] 0, 128
        %v2402 = vpop.trf.xlu0
        %v2403 = vpop.trf.xlu0
        %v2404 = vpop.trf.xlu0
        %v2405 = vpop.trf.xlu0
        %v2406 = vpop.trf.xlu0
        %v2407 = vpop.trf.xlu0
        %v2408 = vpop.trf.xlu0
        %v2409 = vpop.trf.xlu0
        %2410 = vxpose.xlu0.c.b16.start [1/8] %v2254, 128
        %2411 = vxpose.xlu0.c.b16.cont [2/8] 0, 128
        %2412 = vxpose.xlu0.c.b16.cont [3/8] 0, 128
        %2413 = vxpose.xlu0.c.b16.cont [4/8] 0, 128
        %2414 = vxpose.xlu0.c.b16.cont [5/8] 0, 128
        %2415 = vxpose.xlu0.c.b16.cont [6/8] 0, 128
        %2416 = vxpose.xlu0.c.b16.cont [7/8] 0, 128
        %2417 = vxpose.xlu0.c.b16.end [8/8] 0, 128
        %v2418 = vpop.trf.xlu0
        %v2419 = vpop.trf.xlu0
        %v2420 = vpop.trf.xlu0
        %v2421 = vpop.trf.xlu0
        %v2422 = vpop.trf.xlu0
        %v2423 = vpop.trf.xlu0
        %v2424 = vpop.trf.xlu0
        %v2425 = vpop.trf.xlu0
        %2426 = vxpose.xlu0.c.b16.start [1/8] %v2196, 128
        %2427 = vxpose.xlu0.c.b16.cont [2/8] 0, 128
        %2428 = vxpose.xlu0.c.b16.cont [3/8] 0, 128
        %2429 = vxpose.xlu0.c.b16.cont [4/8] 0, 128
        %2430 = vxpose.xlu0.c.b16.cont [5/8] 0, 128
        %2431 = vxpose.xlu0.c.b16.cont [6/8] 0, 128
        %2432 = vxpose.xlu0.c.b16.cont [7/8] 0, 128
        %2433 = vxpose.xlu0.c.b16.end [8/8] 0, 128
        %v2434 = vpop.trf.xlu0
        %v2435 = vpop.trf.xlu0
        %v2436 = vpop.trf.xlu0
        %v2437 = vpop.trf.xlu0
        %v2438 = vpop.trf.xlu0
        %v2439 = vpop.trf.xlu0
        %v2440 = vpop.trf.xlu0
        %v2441 = vpop.trf.xlu0
        %2442 = vxpose.xlu0.c.b16.start [1/8] %v2264, 128
        %2443 = vxpose.xlu0.c.b16.cont [2/8] 0, 128
        %2444 = vxpose.xlu0.c.b16.cont [3/8] 0, 128
        %2445 = vxpose.xlu0.c.b16.cont [4/8] 0, 128
        %2446 = vxpose.xlu0.c.b16.cont [5/8] 0, 128
        %2447 = vxpose.xlu0.c.b16.cont [6/8] 0, 128
        %2448 = vxpose.xlu0.c.b16.cont [7/8] 0, 128
        %2449 = vxpose.xlu0.c.b16.end [8/8] 0, 128
        %v2450 = vpop.trf.xlu0
        %v2451 = vpop.trf.xlu0
        %v2452 = vpop.trf.xlu0
        %v2453 = vpop.trf.xlu0
        %v2454 = vpop.trf.xlu0
        %v2455 = vpop.trf.xlu0
        %v2456 = vpop.trf.xlu0
        %v2457 = vpop.trf.xlu0
        %2458 = vxpose.xlu0.c.b16.start [1/8] %v2193, 128
        %2459 = vxpose.xlu0.c.b16.cont [2/8] 0, 128
        %2460 = vxpose.xlu0.c.b16.cont [3/8] 0, 128
        %2461 = vxpose.xlu0.c.b16.cont [4/8] 0, 128
        %2462 = vxpose.xlu0.c.b16.cont [5/8] 0, 128
        %2463 = vxpose.xlu0.c.b16.cont [6/8] 0, 128
        %2464 = vxpose.xlu0.c.b16.cont [7/8] 0, 128
        %2465 = vxpose.xlu0.c.b16.end [8/8] 0, 128
        %v2466 = vpop.trf.xlu0
        %v2467 = vpop.trf.xlu0
        %v2468 = vpop.trf.xlu0
        %v2469 = vpop.trf.xlu0
        %v2470 = vpop.trf.xlu0
        %v2471 = vpop.trf.xlu0
        %v2472 = vpop.trf.xlu0
        %v2473 = vpop.trf.xlu0
        %2474 = vxpose.xlu0.c.b16.start [1/8] %v2261, 128
        %2475 = vxpose.xlu0.c.b16.cont [2/8] 0, 128
        %2476 = vxpose.xlu0.c.b16.cont [3/8] 0, 128
        %2477 = vxpose.xlu0.c.b16.cont [4/8] 0, 128
        %2478 = vxpose.xlu0.c.b16.cont [5/8] 0, 128
        %2479 = vxpose.xlu0.c.b16.cont [6/8] 0, 128
        %2480 = vxpose.xlu0.c.b16.cont [7/8] 0, 128
        %2481 = vxpose.xlu0.c.b16.end [8/8] 0, 128
        %v2482 = vpop.trf.xlu0
        %v2483 = vpop.trf.xlu0
        %v2484 = vpop.trf.xlu0
        %v2485 = vpop.trf.xlu0
        %v2486 = vpop.trf.xlu0
        %v2487 = vpop.trf.xlu0
        %v2488 = vpop.trf.xlu0
        %v2489 = vpop.trf.xlu0
        %2490 = vxpose.xlu0.c.b16.start [1/8] %v2197, 128
        %2491 = vxpose.xlu0.c.b16.cont [2/8] 0, 128
        %2492 = vxpose.xlu0.c.b16.cont [3/8] 0, 128
        %2493 = vxpose.xlu0.c.b16.cont [4/8] 0, 128
        %2494 = vxpose.xlu0.c.b16.cont [5/8] 0, 128
        %2495 = vxpose.xlu0.c.b16.cont [6/8] 0, 128
        %2496 = vxpose.xlu0.c.b16.cont [7/8] 0, 128
        %2497 = vxpose.xlu0.c.b16.end [8/8] 0, 128
        %v2498 = vpop.trf.xlu0
        %v2499 = vpop.trf.xlu0
        %v2500 = vpop.trf.xlu0
        %v2501 = vpop.trf.xlu0
        %v2502 = vpop.trf.xlu0
        %v2503 = vpop.trf.xlu0
        %v2504 = vpop.trf.xlu0
        %v2505 = vpop.trf.xlu0
        %2506 = vxpose.xlu0.c.b16.start [1/8] %v2265, 128
        %2507 = vxpose.xlu0.c.b16.cont [2/8] 0, 128
        %2508 = vxpose.xlu0.c.b16.cont [3/8] 0, 128
        %2509 = vxpose.xlu0.c.b16.cont [4/8] 0, 128
        %2510 = vxpose.xlu0.c.b16.cont [5/8] 0, 128
        %2511 = vxpose.xlu0.c.b16.cont [6/8] 0, 128
        %2512 = vxpose.xlu0.c.b16.cont [7/8] 0, 128
        %2513 = vxpose.xlu0.c.b16.end [8/8] 0, 128
        %v2514 = vpop.trf.xlu0
        %v2515 = vpop.trf.xlu0
        %v2516 = vpop.trf.xlu0
        %v2517 = vpop.trf.xlu0
        %v2518 = vpop.trf.xlu0
        %v2519 = vpop.trf.xlu0
        %v2520 = vpop.trf.xlu0
        %v2521 = vpop.trf.xlu0
        %v2522 = vcombine.low %v2274, %v2338
        %v2524 = vunpack.c.l.s4 1983009808
        %v2525 = vunpack.c.0.s8 %v2524
        %v2526 = vlaneseq
        %v2527 = vshrl.u32 %v2526, 7
        %v2528 = vsub.s32 %v2525, %v2527
        %v2529 = vrot.slane %v2522, %v2528
        %v2530 = vcombine.low %v2306, %v2370
        %v2532 = vunpack.c.l.s4 1983009808
        %v2533 = vunpack.c.0.s8 %v2532
        %v2534 = vlaneseq
        %v2535 = vshrl.u32 %v2534, 7
        %v2536 = vsub.s32 %v2533, %v2535
        %v2537 = vrot.slane %v2530, %v2536
        %v2538 = vcombine.low %v2402, %v2466
        %v2540 = vunpack.c.l.s4 1983009808
        %v2541 = vunpack.c.0.s8 %v2540
        %v2542 = vlaneseq
        %v2543 = vshrl.u32 %v2542, 7
        %v2544 = vsub.s32 %v2541, %v2543
        %v2545 = vrot.slane %v2538, %v2544
        %v2546 = vcombine.low %v2434, %v2498
        %v2548 = vunpack.c.l.s4 1983009808
        %v2549 = vunpack.c.0.s8 %v2548
        %v2550 = vlaneseq
        %v2551 = vshrl.u32 %v2550, 7
        %v2552 = vsub.s32 %v2549, %v2551
        %v2553 = vrot.slane %v2546, %v2552
        %v2554 = vcombine.low %v2529, %v2537
        %v2556 = vunpack.c.l.s4 1934713408
        %v2557 = vunpack.c.0.s8 %v2556
        %v2558 = vlaneseq
        %v2559 = vshrl.u32 %v2558, 7
        %v2560 = vsub.s32 %v2557, %v2559
        %v2561 = vrot.slane %v2554, %v2560
        %v2562 = vcombine.low %v2545, %v2553
        %v2564 = vunpack.c.l.s4 1934713408
        %v2565 = vunpack.c.0.s8 %v2564
        %v2566 = vlaneseq
        %v2567 = vshrl.u32 %v2566, 7
        %v2568 = vsub.s32 %v2565, %v2567
        %v2569 = vrot.slane %v2562, %v2568
        %v2570 = vcombine.low %v2561, %v2569
        %v2571 = vcombine.low %v2290, %v2354
        %v2573 = vunpack.c.l.s4 1983009808
        %v2574 = vunpack.c.0.s8 %v2573
        %v2575 = vlaneseq
        %v2576 = vshrl.u32 %v2575, 7
        %v2577 = vsub.s32 %v2574, %v2576
        %v2578 = vrot.slane %v2571, %v2577
        %v2579 = vcombine.low %v2322, %v2386
        %v2581 = vunpack.c.l.s4 1983009808
        %v2582 = vunpack.c.0.s8 %v2581
        %v2583 = vlaneseq
        %v2584 = vshrl.u32 %v2583, 7
        %v2585 = vsub.s32 %v2582, %v2584
        %v2586 = vrot.slane %v2579, %v2585
        %v2587 = vcombine.low %v2418, %v2482
        %v2589 = vunpack.c.l.s4 1983009808
        %v2590 = vunpack.c.0.s8 %v2589
        %v2591 = vlaneseq
        %v2592 = vshrl.u32 %v2591, 7
        %v2593 = vsub.s32 %v2590, %v2592
        %v2594 = vrot.slane %v2587, %v2593
        %v2595 = vcombine.low %v2450, %v2514
        %v2597 = vunpack.c.l.s4 1983009808
        %v2598 = vunpack.c.0.s8 %v2597
        %v2599 = vlaneseq
        %v2600 = vshrl.u32 %v2599, 7
        %v2601 = vsub.s32 %v2598, %v2600
        %v2602 = vrot.slane %v2595, %v2601
        %v2603 = vcombine.low %v2578, %v2586
        %v2605 = vunpack.c.l.s4 1934713408
        %v2606 = vunpack.c.0.s8 %v2605
        %v2607 = vlaneseq
        %v2608 = vshrl.u32 %v2607, 7
        %v2609 = vsub.s32 %v2606, %v2608
        %v2610 = vrot.slane %v2603, %v2609
        %v2611 = vcombine.low %v2594, %v2602
        %v2613 = vunpack.c.l.s4 1934713408
        %v2614 = vunpack.c.0.s8 %v2613
        %v2615 = vlaneseq
        %v2616 = vshrl.u32 %v2615, 7
        %v2617 = vsub.s32 %v2614, %v2616
        %v2618 = vrot.slane %v2611, %v2617
        %v2619 = vcombine.low %v2610, %v2618
        %v2622 = vpack.i.b16 %v2619, %v2570
        %v2623 = vshrl.u32 %v2570, 16
        %v2624 = vshrl.u32 %v2619, 16
        %v2625 = vpack.i.b16 %v2624, %v2623
        %v2627 = vsel %vm1945, %v2622, 0
        %v2630 = vsel %vm1945, %v1968, 0
        %2632 = vmatprep.subr.bf16.mxu0 0
        %2633 = vmatpush1.bf16.xpose.msra.mxu0 0
        %2634 = vmatprep.subr.bf16.mxu0 0
        %2635 = vmatpush1.bf16.xpose.msra.mxu0 0
        %2636 = vmatprep.subr.bf16.mxu0 0
        %2637 = vmatpush1.bf16.xpose.msra.mxu0 0
        %2638 = vmatprep.subr.bf16.mxu0 0
        %2639 = vmatpush1.bf16.xpose.msra.mxu0 0
        %2640 = vmatprep.subr.bf16.mxu0 0
        %2641 = vmatpush1.bf16.xpose.msra.mxu0 0
        %2642 = vmatprep.subr.bf16.mxu0 0
        %2643 = vmatpush1.bf16.xpose.msra.mxu0 0
        %2644 = vmatprep.subr.bf16.mxu0 0
        %2645 = vmatpush1.bf16.xpose.msra.mxu0 0
        %2646 = vmatprep.subr.bf16.mxu0 0
        %2647 = vmatpush1.bf16.xpose.msra.mxu0 %v2630
        %2648 = vmatprep.subr.bf16.mxu0 0
        %2649 = vmatpush2.bf16.xpose.msra.mxu0 0
        %2650 = vmatprep.subr.bf16.mxu0 0
        %2651 = vmatpush2.bf16.xpose.msra.mxu0 0
        %2652 = vmatprep.subr.bf16.mxu0 0
        %2653 = vmatpush2.bf16.xpose.msra.mxu0 0
        %2654 = vmatprep.subr.bf16.mxu0 0
        %2655 = vmatpush2.bf16.xpose.msra.mxu0 0
        %2656 = vmatprep.subr.bf16.mxu0 0
        %2657 = vmatpush2.bf16.xpose.msra.mxu0 0
        %2658 = vmatprep.subr.bf16.mxu0 0
        %2659 = vmatpush2.bf16.xpose.msra.mxu0 0
        %2660 = vmatprep.subr.bf16.mxu0 0
        %2661 = vmatpush2.bf16.xpose.msra.mxu0 0
        %2662 = vmatprep.subr.bf16.mxu0 0
        %2663 = vmatpush2.bf16.xpose.msra.mxu0 0
        %2664 = vmatprep.mubr.bf16.mxu0 0
        %2665 = vmatmul.mubr.bf16.gmra.mxu0 %v2627
        %v2666 = vpop.f32.mrf.mxu0
        %v2667 = vadd.f32 0.0, %v2666
        %v2668 = vpop.f32.mrf.mxu0
        %v2669 = vpop.f32.mrf.mxu0
        %v2670 = vadd.f32 0.0, %v2669
        %v2671 = vpop.f32.mrf.mxu0
        %2672 = vdwg.mxu0
        %v2674 = vsel %vm1945, %v2625, 0
        %v2677 = vsel %vm1945, %v1969, 0
        %2679 = vmatprep.subr.bf16.mxu0 0
        %2680 = vmatpush1.bf16.xpose.msra.mxu0 0
        %2681 = vmatprep.subr.bf16.mxu0 0
        %2682 = vmatpush1.bf16.xpose.msra.mxu0 0
        %2683 = vmatprep.subr.bf16.mxu0 0
        %2684 = vmatpush1.bf16.xpose.msra.mxu0 0
        %2685 = vmatprep.subr.bf16.mxu0 0
        %2686 = vmatpush1.bf16.xpose.msra.mxu0 0
        %2687 = vmatprep.subr.bf16.mxu0 0
        %2688 = vmatpush1.bf16.xpose.msra.mxu0 0
        %2689 = vmatprep.subr.bf16.mxu0 0
        %2690 = vmatpush1.bf16.xpose.msra.mxu0 0
        %2691 = vmatprep.subr.bf16.mxu0 0
        %2692 = vmatpush1.bf16.xpose.msra.mxu0 0
        %2693 = vmatprep.subr.bf16.mxu0 0
        %2694 = vmatpush1.bf16.xpose.msra.mxu0 %v2677
        %2695 = vmatprep.subr.bf16.mxu0 0
        %2696 = vmatpush2.bf16.xpose.msra.mxu0 0
        %2697 = vmatprep.subr.bf16.mxu0 0
        %2698 = vmatpush2.bf16.xpose.msra.mxu0 0
        %2699 = vmatprep.subr.bf16.mxu0 0
        %2700 = vmatpush2.bf16.xpose.msra.mxu0 0
        %2701 = vmatprep.subr.bf16.mxu0 0
        %2702 = vmatpush2.bf16.xpose.msra.mxu0 0
        %2703 = vmatprep.subr.bf16.mxu0 0
        %2704 = vmatpush2.bf16.xpose.msra.mxu0 0
        %2705 = vmatprep.subr.bf16.mxu0 0
        %2706 = vmatpush2.bf16.xpose.msra.mxu0 0
        %2707 = vmatprep.subr.bf16.mxu0 0
        %2708 = vmatpush2.bf16.xpose.msra.mxu0 0
        %2709 = vmatprep.subr.bf16.mxu0 0
        %2710 = vmatpush2.bf16.xpose.msra.mxu0 0
        %2711 = vmatprep.mubr.bf16.mxu0 0
        %2712 = vmatmul.mubr.bf16.gmra.mxu0 %v2674
        %v2713 = vpop.f32.mrf.mxu0
        %v2714 = vadd.f32 0.0, %v2713
        %v2715 = vpop.f32.mrf.mxu0
        %v2716 = vpop.f32.mrf.mxu0
        %v2717 = vadd.f32 0.0, %v2716
        %v2718 = vpop.f32.mrf.mxu0
        %2719 = vdwg.mxu0
        %2720 = vxpose.xlu0.b32.start [1/16] %v2667, 128
        %2721 = vxpose.xlu0.b32.cont [2/16] %v2670, 128
        %2722 = vxpose.xlu0.b32.cont [3/16] 0.0, 128
        %2723 = vxpose.xlu0.b32.cont [4/16] 0.0, 128
        %2724 = vxpose.xlu0.b32.cont [5/16] 0.0, 128
        %2725 = vxpose.xlu0.b32.cont [6/16] 0.0, 128
        %2726 = vxpose.xlu0.b32.cont [7/16] 0.0, 128
        %2727 = vxpose.xlu0.b32.cont [8/16] 0.0, 128
        %2728 = vxpose.xlu0.b32.cont [9/16] 0.0, 128
        %2729 = vxpose.xlu0.b32.cont [10/16] 0.0, 128
        %2730 = vxpose.xlu0.b32.cont [11/16] 0.0, 128
        %2731 = vxpose.xlu0.b32.cont [12/16] 0.0, 128
        %2732 = vxpose.xlu0.b32.cont [13/16] 0.0, 128
        %2733 = vxpose.xlu0.b32.cont [14/16] 0.0, 128
        %2734 = vxpose.xlu0.b32.cont [15/16] 0.0, 128
        %2735 = vxpose.xlu0.b32.end [16/16] 0.0, 128
        %v2736 = vpop.trf.xlu0
        %v2737 = vpop.trf.xlu0
        %v2738 = vpop.trf.xlu0
        %v2739 = vpop.trf.xlu0
        %v2740 = vpop.trf.xlu0
        %v2741 = vpop.trf.xlu0
        %v2742 = vpop.trf.xlu0
        %v2743 = vpop.trf.xlu0
        %v2744 = vpop.trf.xlu0
        %v2745 = vpop.trf.xlu0
        %v2746 = vpop.trf.xlu0
        %v2747 = vpop.trf.xlu0
        %v2748 = vpop.trf.xlu0
        %v2749 = vpop.trf.xlu0
        %v2750 = vpop.trf.xlu0
        %v2751 = vpop.trf.xlu0
        %2752 = vxpose.xlu0.b32.start [1/16] %v2714, 128
        %2753 = vxpose.xlu0.b32.cont [2/16] %v2717, 128
        %2754 = vxpose.xlu0.b32.cont [3/16] 0.0, 128
        %2755 = vxpose.xlu0.b32.cont [4/16] 0.0, 128
        %2756 = vxpose.xlu0.b32.cont [5/16] 0.0, 128
        %2757 = vxpose.xlu0.b32.cont [6/16] 0.0, 128
        %2758 = vxpose.xlu0.b32.cont [7/16] 0.0, 128
        %2759 = vxpose.xlu0.b32.cont [8/16] 0.0, 128
        %2760 = vxpose.xlu0.b32.cont [9/16] 0.0, 128
        %2761 = vxpose.xlu0.b32.cont [10/16] 0.0, 128
        %2762 = vxpose.xlu0.b32.cont [11/16] 0.0, 128
        %2763 = vxpose.xlu0.b32.cont [12/16] 0.0, 128
        %2764 = vxpose.xlu0.b32.cont [13/16] 0.0, 128
        %2765 = vxpose.xlu0.b32.cont [14/16] 0.0, 128
        %2766 = vxpose.xlu0.b32.cont [15/16] 0.0, 128
        %2767 = vxpose.xlu0.b32.end [16/16] 0.0, 128
        %v2768 = vpop.trf.xlu0
        %v2769 = vpop.trf.xlu0
        %v2770 = vpop.trf.xlu0
        %v2771 = vpop.trf.xlu0
        %v2772 = vpop.trf.xlu0
        %v2773 = vpop.trf.xlu0
        %v2774 = vpop.trf.xlu0
        %v2775 = vpop.trf.xlu0
        %v2776 = vpop.trf.xlu0
        %v2777 = vpop.trf.xlu0
        %v2778 = vpop.trf.xlu0
        %v2779 = vpop.trf.xlu0
        %v2780 = vpop.trf.xlu0
        %v2781 = vpop.trf.xlu0
        %v2782 = vpop.trf.xlu0
        %v2783 = vpop.trf.xlu0
        %v2784 = vcombine.high %v2736, 0.0
        %v2786 = vunpack.c.l.s4 1983009808
        %v2787 = vunpack.c.0.s8 %v2786
        %v2788 = vlaneseq
        %v2789 = vshrl.u32 %v2788, 7
        %v2790 = vsub.s32 %v2787, %v2789
        %v2791 = vrot.slane %v2736, %v2790
        %v2793 = vunpack.c.l.s4 1983009808
        %v2794 = vunpack.c.0.s8 %v2793
        %v2795 = vlaneseq
        %v2796 = vshrl.u32 %v2795, 7
        %v2797 = vsub.s32 %v2794, %v2796
        %v2798 = vrot.slane %v2784, %v2797
        %v2799 = vcombine.high %v2768, 0.0
        %v2801 = vunpack.c.l.s4 1983009808
        %v2802 = vunpack.c.0.s8 %v2801
        %v2803 = vlaneseq
        %v2804 = vshrl.u32 %v2803, 7
        %v2805 = vsub.s32 %v2802, %v2804
        %v2806 = vrot.slane %v2768, %v2805
        %v2808 = vunpack.c.l.s4 1983009808
        %v2809 = vunpack.c.0.s8 %v2808
        %v2810 = vlaneseq
        %v2811 = vshrl.u32 %v2810, 7
        %v2812 = vsub.s32 %v2809, %v2811
        %v2813 = vrot.slane %v2799, %v2812
        %v2814 = vcombine.low %v2791, %v2806
        %v2815 = vcombine.high %v2791, %v2806
        %v2817 = vunpack.c.l.s4 1934713408
        %v2818 = vunpack.c.0.s8 %v2817
        %v2819 = vlaneseq
        %v2820 = vshrl.u32 %v2819, 7
        %v2821 = vsub.s32 %v2818, %v2820
        %v2822 = vrot.slane %v2814, %v2821
        %v2824 = vunpack.c.l.s4 1934713408
        %v2825 = vunpack.c.0.s8 %v2824
        %v2826 = vlaneseq
        %v2827 = vshrl.u32 %v2826, 7
        %v2828 = vsub.s32 %v2825, %v2827
        %v2829 = vrot.slane %v2815, %v2828
        %v2830 = vcombine.low %v2798, %v2813
        %v2831 = vcombine.high %v2798, %v2813
        %v2833 = vunpack.c.l.s4 1934713408
        %v2834 = vunpack.c.0.s8 %v2833
        %v2835 = vlaneseq
        %v2836 = vshrl.u32 %v2835, 7
        %v2837 = vsub.s32 %v2834, %v2836
        %v2838 = vrot.slane %v2830, %v2837
        %v2840 = vunpack.c.l.s4 1934713408
        %v2841 = vunpack.c.0.s8 %v2840
        %v2842 = vlaneseq
        %v2843 = vshrl.u32 %v2842, 7
        %v2844 = vsub.s32 %v2841, %v2843
        %v2845 = vrot.slane %v2831, %v2844
        %v2846 = vcombine.high %v2822, 0.0
        %v2847 = vcombine.high %v2829, 0.0
        %v2848 = vcombine.high %v2838, 0.0
        %v2849 = vcombine.high %v2845, 0.0
        %v2850 = vcombine.low %v2822, %v2829
        %v2852 = vunpack.c.l.s4 1983009808
        %v2853 = vunpack.c.0.s8 %v2852
        %v2854 = vlaneseq
        %v2855 = vshrl.u32 %v2854, 7
        %v2856 = vsub.s32 %v2853, %v2855
        %v2857 = vrot.slane %v2850, %v2856
        %v2858 = vcombine.low %v2846, %v2847
        %v2860 = vunpack.c.l.s4 1983009808
        %v2861 = vunpack.c.0.s8 %v2860
        %v2862 = vlaneseq
        %v2863 = vshrl.u32 %v2862, 7
        %v2864 = vsub.s32 %v2861, %v2863
        %v2865 = vrot.slane %v2858, %v2864
        %v2866 = vcombine.low %v2838, %v2845
        %v2868 = vunpack.c.l.s4 1983009808
        %v2869 = vunpack.c.0.s8 %v2868
        %v2870 = vlaneseq
        %v2871 = vshrl.u32 %v2870, 7
        %v2872 = vsub.s32 %v2869, %v2871
        %v2873 = vrot.slane %v2866, %v2872
        %v2874 = vcombine.low %v2848, %v2849
        %v2876 = vunpack.c.l.s4 1983009808
        %v2877 = vunpack.c.0.s8 %v2876
        %v2878 = vlaneseq
        %v2879 = vshrl.u32 %v2878, 7
        %v2880 = vsub.s32 %v2877, %v2879
        %v2881 = vrot.slane %v2874, %v2880
        %v2882 = vcombine.low %v2857, %v2865
        %v2884 = vunpack.c.l.s4 1934713408
        %v2885 = vunpack.c.0.s8 %v2884
        %v2886 = vlaneseq
        %v2887 = vshrl.u32 %v2886, 7
        %v2888 = vsub.s32 %v2885, %v2887
        %v2889 = vrot.slane %v2882, %v2888
        %v2890 = vcombine.low %v2873, %v2881
        %v2892 = vunpack.c.l.s4 1934713408
        %v2893 = vunpack.c.0.s8 %v2892
        %v2894 = vlaneseq
        %v2895 = vshrl.u32 %v2894, 7
        %v2896 = vsub.s32 %v2893, %v2895
        %v2897 = vrot.slane %v2890, %v2896
        %v2898 = vcombine.low %v2889, %v2897
        %v2899 = vcombine.high %v2889, %v2897
        %2901 = vrot.lane.b32.xlu0 %v2899, 16
        %v2902 = vpop.permute.xlu0 %2901
        %v2904 = vsel %vm1848, %v2898, %v2902
        %v2905 = vpack.c.bf16 %v2904, %v2904
        %v2906 = vld [vmem:[#allocation11] sm:$0xf]
        %v2907 = vld [vmem:[#allocation11 + $0x4] sm:$0xf]
        %v2908 = vld [vmem:[#allocation11 + $0x8] sm:$0xf]
        %v2909 = vld [vmem:[#allocation11 + $0xc] sm:$0xf]
        %v2910 = vld [vmem:[#allocation13] sm:$0x1]
        %v2912 = vlaneseq
        %v2913 = vshrl.u32 %v2912, 7
        %v2914 = vsub.s32 0, %v2913
        %v2915 = vrot.slane %v2910, %v2914
        %v2921 = vunpack.c.l.b16 %v2906
        %v2922 = vunpack.c.l.b16 %v2907
        %v2923 = vunpack.c.l.b16 %v2908
        %v2924 = vunpack.c.l.b16 %v2909
        %v2925 = vpack.c.b16 %v2922, %v2921
        %v2926 = vpack.c.b16 %v2924, %v2923
        %v2930 = vsel %vm729, %v2905, 0
        %2932 = vmatprep.subr.bf16.mxu0 0
        %2933 = vmatpush1.bf16.msra.mxu0 0
        %2934 = vmatprep.subr.bf16.mxu0 0
        %2935 = vmatpush1.bf16.msra.mxu0 0
        %2936 = vmatprep.subr.bf16.mxu0 0
        %2937 = vmatpush1.bf16.msra.mxu0 0
        %2938 = vmatprep.subr.bf16.mxu0 0
        %2939 = vmatpush1.bf16.msra.mxu0 0
        %2940 = vmatprep.subr.bf16.mxu0 0
        %2941 = vmatpush1.bf16.msra.mxu0 0
        %2942 = vmatprep.subr.bf16.mxu0 0
        %2943 = vmatpush1.bf16.msra.mxu0 0
        %2944 = vmatprep.subr.bf16.mxu0 0
        %2945 = vmatpush1.bf16.msra.mxu0 %v2926
        %2946 = vmatprep.subr.bf16.mxu0 0
        %2947 = vmatpush1.bf16.msra.mxu0 %v2925
        %2948 = vmatprep.subr.bf16.mxu0 0
        %2949 = vmatpush2.bf16.msra.mxu0 0
        %2950 = vmatprep.subr.bf16.mxu0 0
        %2951 = vmatpush2.bf16.msra.mxu0 0
        %2952 = vmatprep.subr.bf16.mxu0 0
        %2953 = vmatpush2.bf16.msra.mxu0 0
        %2954 = vmatprep.subr.bf16.mxu0 0
        %2955 = vmatpush2.bf16.msra.mxu0 0
        %2956 = vmatprep.subr.bf16.mxu0 0
        %2957 = vmatpush2.bf16.msra.mxu0 0
        %2958 = vmatprep.subr.bf16.mxu0 0
        %2959 = vmatpush2.bf16.msra.mxu0 0
        %2960 = vmatprep.subr.bf16.mxu0 0
        %2961 = vmatpush2.bf16.msra.mxu0 0
        %2962 = vmatprep.subr.bf16.mxu0 0
        %2963 = vmatpush2.bf16.msra.mxu0 0
        %2964 = vmatprep.mubr.bf16.mxu0 0
        %2965 = vmatmul.mubr.bf16.gmra.mxu0 %v2930
        %v2966 = vpop.f32.mrf.mxu0
        %v2967 = vadd.f32 %v2915, %v2966
        %v2968 = vpop.f32.mrf.mxu0
        %v2969 = vpop.f32.mrf.mxu0
        %v2970 = vpop.f32.mrf.mxu0
        %2971 = vdwg.mxu0
        %v2972 = vadd.f32 %v2967, %v702
        %v2973 = vld [vmem:[%s10] sm:$0x1]
        %v2974 = vld [vmem:[%s11] sm:$0x1]
        %v2975 = vsel %vm729, %v2972, 0.0
        %2976 = vadd.xlane.f32.xlu0 %v2975
        %v2977 = vpop.xlane.xlu0 %2976
        %v2978 = vrcp.pop 32.0
        %v2979 = vmul.f32 %v2977, %v2978
        %v2980 = vsub.f32 %v2972, %v2979
        %v2981 = vmul.f32 %v2980, %v2980
        %v2982 = vsel %vm729, %v2981, 0.0
        %2983 = vadd.xlane.f32.xlu0 %v2982
        %v2984 = vpop.xlane.xlu0 %2983
        %v2985 = vmul.f32 %v2984, %v2978
        %v2986 = vadd.f32 %v2985, 1e-12
        %v2987 = vrsqrt.pop %v2986
        %v2988 = vmul.f32 %v2980, %v2987
        %v2990 = vlaneseq
        %v2991 = vshrl.u32 %v2990, 7
        %v2992 = vsub.s32 0, %v2991
        %v2993 = vrot.slane %v2973, %v2992
        %v2995 = vmul.f32 %v2988, %v2993
        %v2997 = vlaneseq
        %v2998 = vshrl.u32 %v2997, 7
        %v2999 = vsub.s32 0, %v2998
        %v3000 = vrot.slane %v2974, %v2999
        %v3002 = vadd.f32 %v2995, %v3000
        %v3003 = vpack.c.bf16 %v3002, %v3002
        %v3004 = vld [vmem:[%s12] sm:$0xf]
        %v3005 = vld [vmem:[%s12 + $0x4] sm:$0xf]
        %v3006 = vld [vmem:[%s12 + $0x8] sm:$0xf]
        %v3007 = vld [vmem:[%s12 + $0xc] sm:$0xf]
        %v3008 = vld [vmem:[%s13] sm:$0x1]
        %v3010 = vlaneseq
        %v3011 = vshrl.u32 %v3010, 7
        %v3012 = vsub.s32 0, %v3011
        %v3013 = vrot.slane %v3008, %v3012
        %v3019 = vunpack.c.l.b16 %v3004
        %v3020 = vunpack.c.l.b16 %v3005
        %v3021 = vunpack.c.l.b16 %v3006
        %v3022 = vunpack.c.l.b16 %v3007
        %v3023 = vpack.c.b16 %v3020, %v3019
        %v3024 = vpack.c.b16 %v3022, %v3021
        %v3028 = vsel %vm729, %v3003, 0
        %3030 = vmatprep.subr.bf16.mxu0 0
        %3031 = vmatpush1.bf16.msra.mxu0 0
        %3032 = vmatprep.subr.bf16.mxu0 0
        %3033 = vmatpush1.bf16.msra.mxu0 0
        %3034 = vmatprep.subr.bf16.mxu0 0
        %3035 = vmatpush1.bf16.msra.mxu0 0
        %3036 = vmatprep.subr.bf16.mxu0 0
        %3037 = vmatpush1.bf16.msra.mxu0 0
        %3038 = vmatprep.subr.bf16.mxu0 0
        %3039 = vmatpush1.bf16.msra.mxu0 0
        %3040 = vmatprep.subr.bf16.mxu0 0
        %3041 = vmatpush1.bf16.msra.mxu0 0
        %3042 = vmatprep.subr.bf16.mxu0 0
        %3043 = vmatpush1.bf16.msra.mxu0 %v3024
        %3044 = vmatprep.subr.bf16.mxu0 0
        %3045 = vmatpush1.bf16.msra.mxu0 %v3023
        %3046 = vmatprep.subr.bf16.mxu0 0
        %3047 = vmatpush2.bf16.msra.mxu0 0
        %3048 = vmatprep.subr.bf16.mxu0 0
        %3049 = vmatpush2.bf16.msra.mxu0 0
        %3050 = vmatprep.subr.bf16.mxu0 0
        %3051 = vmatpush2.bf16.msra.mxu0 0
        %3052 = vmatprep.subr.bf16.mxu0 0
        %3053 = vmatpush2.bf16.msra.mxu0 0
        %3054 = vmatprep.subr.bf16.mxu0 0
        %3055 = vmatpush2.bf16.msra.mxu0 0
        %3056 = vmatprep.subr.bf16.mxu0 0
        %3057 = vmatpush2.bf16.msra.mxu0 0
        %3058 = vmatprep.subr.bf16.mxu0 0
        %3059 = vmatpush2.bf16.msra.mxu0 0
        %3060 = vmatprep.subr.bf16.mxu0 0
        %3061 = vmatpush2.bf16.msra.mxu0 0
        %3062 = vmatprep.mubr.bf16.mxu0 0
        %3063 = vmatmul.mubr.bf16.gmra.mxu0 %v3028
        %v3064 = vpop.f32.mrf.mxu0
        %v3065 = vadd.f32 %v3013, %v3064
        %v3066 = vpop.f32.mrf.mxu0
        %v3067 = vpop.f32.mrf.mxu0
        %v3068 = vpop.f32.mrf.mxu0
        %3069 = vdwg.mxu0
        %v3070 = vmul.f32 %v3065, 0.5
        %v3071 = vmul.f32 %v3065, 0.70710677
        %v3072 = verf.f32.pop %v3071
        %v3073 = vadd.f32 %v3072, 1.0
        %v3074 = vmul.f32 %v3070, %v3073
        %v3075 = vpack.c.bf16 %v3074, %v3074
        %v3076 = vld [vmem:[%s14] sm:$0xf]
        %v3077 = vld [vmem:[%s14 + $0x4] sm:$0xf]
        %v3078 = vld [vmem:[%s14 + $0x8] sm:$0xf]
        %v3079 = vld [vmem:[%s14 + $0xc] sm:$0xf]
        %v3080 = vld [vmem:[%s14 + $0x10] sm:$0xf]
        %v3081 = vld [vmem:[%s14 + $0x14] sm:$0xf]
        %v3082 = vld [vmem:[%s14 + $0x18] sm:$0xf]
        %v3083 = vld [vmem:[%s14 + $0x1c] sm:$0xf]
        %v3084 = vld [vmem:[%s15] sm:$0x1]
        %v3086 = vlaneseq
        %v3087 = vshrl.u32 %v3086, 7
        %v3088 = vsub.s32 0, %v3087
        %v3089 = vrot.slane %v3084, %v3088
        %v3099 = vunpack.c.l.b16 %v3076
        %v3100 = vunpack.c.l.b16 %v3077
        %v3101 = vunpack.c.l.b16 %v3078
        %v3102 = vunpack.c.l.b16 %v3079
        %v3103 = vunpack.c.l.b16 %v3080
        %v3104 = vunpack.c.l.b16 %v3081
        %v3105 = vunpack.c.l.b16 %v3082
        %v3106 = vunpack.c.l.b16 %v3083
        %v3107 = vpack.c.b16 %v3100, %v3099
        %v3108 = vpack.c.b16 %v3102, %v3101
        %v3109 = vpack.c.b16 %v3104, %v3103
        %v3110 = vpack.c.b16 %v3106, %v3105
        %vm3115 = vcmask 523264
        %v3117 = vsel %vm3115, %v3075, 0
        %3119 = vmatprep.subr.bf16.mxu0 0
        %3120 = vmatpush1.bf16.msra.mxu0 0
        %3121 = vmatprep.subr.bf16.mxu0 0
        %3122 = vmatpush1.bf16.msra.mxu0 0
        %3123 = vmatprep.subr.bf16.mxu0 0
        %3124 = vmatpush1.bf16.msra.mxu0 0
        %3125 = vmatprep.subr.bf16.mxu0 0
        %3126 = vmatpush1.bf16.msra.mxu0 0
        %3127 = vmatprep.subr.bf16.mxu0 0
        %3128 = vmatpush1.bf16.msra.mxu0 %v3110
        %3129 = vmatprep.subr.bf16.mxu0 0
        %3130 = vmatpush1.bf16.msra.mxu0 %v3109
        %3131 = vmatprep.subr.bf16.mxu0 0
        %3132 = vmatpush1.bf16.msra.mxu0 %v3108
        %3133 = vmatprep.subr.bf16.mxu0 0
        %3134 = vmatpush1.bf16.msra.mxu0 %v3107
        %3135 = vmatprep.subr.bf16.mxu0 0
        %3136 = vmatpush2.bf16.msra.mxu0 0
        %3137 = vmatprep.subr.bf16.mxu0 0
        %3138 = vmatpush2.bf16.msra.mxu0 0
        %3139 = vmatprep.subr.bf16.mxu0 0
        %3140 = vmatpush2.bf16.msra.mxu0 0
        %3141 = vmatprep.subr.bf16.mxu0 0
        %3142 = vmatpush2.bf16.msra.mxu0 0
        %3143 = vmatprep.subr.bf16.mxu0 0
        %3144 = vmatpush2.bf16.msra.mxu0 0
        %3145 = vmatprep.subr.bf16.mxu0 0
        %3146 = vmatpush2.bf16.msra.mxu0 0
        %3147 = vmatprep.subr.bf16.mxu0 0
        %3148 = vmatpush2.bf16.msra.mxu0 0
        %3149 = vmatprep.subr.bf16.mxu0 0
        %3150 = vmatpush2.bf16.msra.mxu0 0
        %3151 = vmatprep.mubr.bf16.mxu0 0
        %3152 = vmatmul.mubr.bf16.gmra.mxu0 %v3117
        %v3153 = vpop.f32.mrf.mxu0
        %v3154 = vadd.f32 %v3089, %v3153
        %v3155 = vpop.f32.mrf.mxu0
        %v3156 = vpop.f32.mrf.mxu0
        %v3157 = vpop.f32.mrf.mxu0
        %3158 = vdwg.mxu0
        %v3159 = vadd.f32 %v3154, %v3002
        %v3160 = vld [vmem:[%s16] sm:$0x1]
        %v3161 = vld [vmem:[%s17] sm:$0x1]
        %v3162 = vsel %vm729, %v3159, 0.0
        %3163 = vadd.xlane.f32.xlu0 %v3162
        %v3164 = vpop.xlane.xlu0 %3163
        %v3165 = vmul.f32 %v3164, %v2978
        %v3166 = vsub.f32 %v3159, %v3165
        %v3167 = vmul.f32 %v3166, %v3166
        %v3168 = vsel %vm729, %v3167, 0.0
        %3169 = vadd.xlane.f32.xlu0 %v3168
        %v3170 = vpop.xlane.xlu0 %3169
        %v3171 = vmul.f32 %v3170, %v2978
        %v3172 = vadd.f32 %v3171, 1e-12
        %v3173 = vrsqrt.pop %v3172
        %v3174 = vmul.f32 %v3166, %v3173
        %v3176 = vlaneseq
        %v3177 = vshrl.u32 %v3176, 7
        %v3178 = vsub.s32 0, %v3177
        %v3179 = vrot.slane %v3160, %v3178
        %v3181 = vmul.f32 %v3174, %v3179
        %v3183 = vlaneseq
        %v3184 = vshrl.u32 %v3183, 7
        %v3185 = vsub.s32 0, %v3184
        %v3186 = vrot.slane %v3161, %v3185
        %v3188 = vadd.f32 %v3181, %v3186
        %3189 = vst.msk [vmem:[%s693] sm:$0xff] %vm729, %v3188
        %s3190 = sand.u32 %s448, 1
        %s3191 = scalar_lea.sflag [#allocation4], %s3190
        %s3192 = sand.u32 %s448, 1
        %s3193 = smul.addr %s3192, 8
        %s3194 = scalar_lea.vmem [#allocation14], %s3193
        // Predicated region
        $region121: #{tpu_custom_call.1} parent=91 // pred_check
          %p3195 = pneg %p458
        $region122: #{tpu_custom_call.1} parent=91 // pred_check_branch
          %3197 = sbr.rel (%p3195) target = $region124
        $region123: #{tpu_custom_call.1} parent=91 // pred_region
          %s3199 = ssub.s32 128, 128
          %3200 = vsyncadd %s3191, %s3199
          %s3201 = sadd.s32 %s43, %s42
          %s3202 = smul.addr %s3201, 128
          %s3203 = scalar_lea.hbm %s18, %s3202
          %s3205 = sshll.u32 %s3194, 4
          %s3206 = int_to_ptr.vmem [resolvable:$true] %s3205
          %3208 = dma.vmem_to_hbm [thread:$0]  %s3206, 128, %s3203, %s3191
        $region124: #{tpu_custom_call.1} parent=91 // pred_fallthru
          _
      $region92: #{tpu_custom_call.1} parent=5 // pred_fallthru
        _
      %p3209 = scmp.le.s32.totalorder 2, %s33
      // Predicated region
      $region125: #{tpu_custom_call.1} parent=5 // pred_check
        %p3210 = pneg %p3209
      $region126: #{tpu_custom_call.1} parent=5 // pred_check_branch
        %3212 = sbr.rel (%p3210) target = $region128
      $region127: #{tpu_custom_call.1} parent=5 // pred_region
        %s3213 = ssub.s32 %s33, 2
        // Predicated region
        $region129: #{tpu_custom_call.1} parent=127 // pred_check
          %p3214 = pneg %p464
        $region130: #{tpu_custom_call.1} parent=127 // pred_check_branch
          %3216 = sbr.rel (%p3214) target = $region132
        $region131: #{tpu_custom_call.1} parent=127 // pred_region
          %s3217 = sand.u32 %s449, 1
          %s3218 = scalar_lea.sflag [#allocation4], %s3217
          %s3219 = sand.u32 %s449, 1
          %s3220 = smul.addr %s3219, 8
          %s3221 = scalar_lea.vmem [#allocation14], %s3220
          %3222 = dma.done %s3218, 128
        $region132: #{tpu_custom_call.1} parent=127 // pred_fallthru
          _
      $region128: #{tpu_custom_call.1} parent=5 // pred_fallthru
        _
    $region6: #{tpu_custom_call.1} parent=1 // loop_footer
      %s37 = sadd.s32 1, %s33
    $region7: #{tpu_custom_call.1} parent=1 // loop_footer_branch
      %32 = sbr.rel target = $region3
    $region8: #{tpu_custom_call.1} parent=1 // loop_exit
      _
    %3223 = vsyncpa [#allocation3], 1
    %s3224 = scalar_lea.sflag [#allocation3], 1
    %3225 = vsyncpa %s3224, 1
    %3226 = vsyncpa [#allocation6], 1
    %3227 = vsyncpa [#allocation9], 1
    %3228 = vsyncpa [#allocation12], 1
    %3229 = vsyncpa [#allocation4], 1
    %s3230 = scalar_lea.sflag [#allocation4], 1
    %3231 = vsyncpa %s3230, 1

</llo_original>
